<compile_context>
chip_gen: v6e
topology: v6e:2x2x1
jax: 0.10.0
libtpu: 0.0.40
codegen_flags: <defaults>
</compile_context>

<pallas_src>
import functools

import jax
import jax.numpy as jnp
from jax.experimental import pallas as pl
from jax.experimental.pallas import tpu as pltpu

BN_EPS = 1e-5
K = 5        # conv kernel size
PAD = 2      # spatial padding
LANE = 128   # TPU lane width


def _round_up(x, m):
    return (x + m - 1) // m * m


# ---------------------------------------------------------------------------
# Kernel 1: Conv3d (+bias) for one (n, d) output plane, plus BN partial sums.
# The contraction folds all K^3 taps and Cin into a single GEMM.
# ---------------------------------------------------------------------------
def _conv_plane_kernel(x_ref, w_ref, b_ref, y_ref, s_ref, *, H, W):
    # x_ref: (Dp, Hp*W, K*Cin)   W-folded, spatially padded input (f32)
    # w_ref: (K^3*Cin, Cpad)     bf16 weight matrix (channel-padded)
    # b_ref: (1, Cpad)           f32 conv bias (channel-padded)
    # y_ref: (H*W, Cpad)         f32 conv output plane
    # s_ref: (2, Cpad)           f32 per-plane [sum, sum-of-squares]
    d = pl.program_id(1)
    xwin = x_ref[pl.ds(d, K), :, :]                      # (K, Hp*W, K*Cin)

    # Gather the (kd, kh) taps: each piece is a sublane-aligned static slice.
    cols = []
    for kd in range(K):
        for kh in range(K):
            cols.append(xwin[kd, kh * W:(kh + H) * W, :])    # (H*W, K*Cin)
    patches = jnp.concatenate(cols, axis=1)              # (H*W, K^3*Cin), (kd,kh,kw,c)

    acc = jnp.dot(patches.astype(jnp.bfloat16), w_ref[...],
                  preferred_element_type=jnp.float32)    # (H*W, Cpad), f32 accumulate
    y = acc + b_ref[...]                                 # conv bias
    y_ref[...] = y

    s = jnp.sum(y, axis=0, keepdims=True)                # per-channel partial sums
    ss = jnp.sum(y * y, axis=0, keepdims=True)
    s_ref[...] = jnp.concatenate([s, ss], axis=0)


def _conv3d_plane_call(x_folded, w_mat, bias_pad, *, N, D, H, W, Cin, Cpad):
    Dp = D + 2 * PAD
    HpW = (H + 2 * PAD) * W
    KC = K * Cin
    KKKC = K * K * K * Cin
    HW = H * W

    kernel = functools.partial(_conv_plane_kernel, H=H, W=W)

    return pl.pallas_call(
        kernel,
        out_shape=(
            jax.ShapeDtypeStruct((N, D, HW, Cpad), jnp.float32),   # conv output
            jax.ShapeDtypeStruct((N, D, 2, Cpad), jnp.float32),    # BN partial sums
        ),
        grid_spec=pltpu.PrefetchScalarGridSpec(
            num_scalar_prefetch=0,
            grid=(N, D),
            in_specs=[
                # whole padded sample (re-used across the d axis; no re-DMA)
                pl.BlockSpec((None, Dp, HpW, KC), lambda n, d: (n, 0, 0, 0)),
                pl.BlockSpec((KKKC, Cpad), lambda n, d: (0, 0)),
                pl.BlockSpec((1, Cpad), lambda n, d: (0, 0)),
            ],
            out_specs=[
                pl.BlockSpec((None, None, HW, Cpad), lambda n, d: (n, d, 0, 0)),
                pl.BlockSpec((None, None, 2, Cpad), lambda n, d: (n, d, 0, 0)),
            ],
        ),
        compiler_params=pltpu.CompilerParams(
            dimension_semantics=("parallel", "parallel"),
            vmem_limit_bytes=32 * 1024 * 1024,
        ),
    )(x_folded, w_mat, bias_pad)


# ---------------------------------------------------------------------------
# Kernel 2: fused BatchNorm (precomputed scale/shift) + ReLU, lane-dense.
# ---------------------------------------------------------------------------
def _bn_relu_kernel(y_ref, ss_ref, o_ref):
    scale = ss_ref[0:1, :]
    shift = ss_ref[1:2, :]
    o_ref[...] = jnp.maximum(y_ref[...] * scale + shift, 0.0)


def _bn_relu_call(y, scale_shift, *, N, D, HW, Cpad):
    return pl.pallas_call(
        _bn_relu_kernel,
        out_shape=jax.ShapeDtypeStruct((N, D, HW, Cpad), jnp.float32),
        grid_spec=pltpu.PrefetchScalarGridSpec(
            num_scalar_prefetch=0,
            grid=(N, D),
            in_specs=[
                pl.BlockSpec((None, None, HW, Cpad), lambda n, d: (n, d, 0, 0)),
                pl.BlockSpec((2, Cpad), lambda n, d: (0, 0)),
            ],
            out_specs=pl.BlockSpec((None, None, HW, Cpad), lambda n, d: (n, d, 0, 0)),
        ),
        compiler_params=pltpu.CompilerParams(
            dimension_semantics=("parallel", "parallel"),
            vmem_limit_bytes=32 * 1024 * 1024,
        ),
    )(y, scale_shift)


# ---------------------------------------------------------------------------
# JAX glue
# ---------------------------------------------------------------------------
def _pad_and_fold_w(x_ndhwc):
    """(N,D,H,W,C) -> spatial pad + im2col along W only -> (N, Dp, Hp*W, K*C)."""
    n, d, h, w, c = x_ndhwc.shape
    xp = jnp.pad(x_ndhwc, ((0, 0), (PAD, PAD), (PAD, PAD), (PAD, PAD), (0, 0)))
    cols = jnp.stack([xp[:, :, :, kw:kw + w, :] for kw in range(K)], axis=4)
    # (N, Dp, Hp, W, K, C): row-major fuse keeps (hp, w) rows and (kw, c) cols.
    return cols.reshape(n, d + 2 * PAD, (h + 2 * PAD) * w, K * c)


def _prep_conv_params(w_dhwio, bias, Cpad):
    kkkc = w_dhwio.shape[0] * w_dhwio.shape[1] * w_dhwio.shape[2] * w_dhwio.shape[3]
    cout = w_dhwio.shape[4]
    w_mat = w_dhwio.reshape(kkkc, cout)                       # rows: (kd, kh, kw, ci)
    w_mat = jnp.pad(w_mat, ((0, 0), (0, Cpad - cout))).astype(jnp.bfloat16)
    b = jnp.pad(bias, (0, Cpad - cout)).astype(jnp.float32).reshape(1, Cpad)
    return w_mat, b


def _bn_scale_shift(stats, gamma, beta, count, Cpad):
    """Combine per-plane sums -> batch mean/var -> fused scale/shift (2, Cpad)."""
    cout = gamma.shape[0]
    total = jnp.sum(stats, axis=(0, 1))                       # (2, Cpad)
    mean = total[0] / count
    var = jnp.maximum(total[1] / count - mean * mean, 0.0)    # biased var (torch BN)
    g = jnp.pad(gamma, (0, Cpad - cout))
    b = jnp.pad(beta, (0, Cpad - cout))
    scale = g * jax.lax.rsqrt(var + BN_EPS)
    shift = b - mean * scale
    return jnp.stack([scale, shift], axis=0).astype(jnp.float32)


def conv_bn_relu(x_ndhwc, w_dhwio, bias, gamma, beta):
    """One Conv3d(5, pad=2) -> BatchNorm3d (batch stats) -> ReLU stage."""
    n, d, h, w, cin = x_ndhwc.shape
    cout = w_dhwio.shape[-1]
    cpad = _round_up(cout, LANE)

    x_folded = _pad_and_fold_w(x_ndhwc)
    w_mat, b_pad = _prep_conv_params(w_dhwio, bias, cpad)

    y, stats = _conv3d_plane_call(x_folded, w_mat, b_pad,
                                  N=n, D=d, H=h, W=w, Cin=cin, Cpad=cpad)
    ss = _bn_scale_shift(stats, gamma, beta, n * d * h * w, cpad)
    a = _bn_relu_call(y, ss, N=n, D=d, HW=h * w, Cpad=cpad)
    return a[:, :, :, :cout].reshape(n, d, h, w, cout)


def init_params(key, in_ch, out_ch):
    """Deterministic params matching DoubleConv.__init__ shapes/init."""
    k1, k2 = jax.random.split(key)

    def kaiming(k, ci, co):
        fan_in = ci * K * K * K
        std = (2.0 / fan_in) ** 0.5        # kaiming_normal_, nonlinearity='relu'
        return std * jax.random.normal(k, (K, K, K, ci, co), jnp.float32)

    return dict(
        w1=kaiming(k1, in_ch, out_ch), b1=jnp.zeros((out_ch,), jnp.float32),
        g1=jnp.ones((out_ch,), jnp.float32), beta1=jnp.zeros((out_ch,), jnp.float32),
        w2=kaiming(k2, out_ch, out_ch), b2=jnp.zeros((out_ch,), jnp.float32),
        g2=jnp.ones((out_ch,), jnp.float32), beta2=jnp.zeros((out_ch,), jnp.float32),
    )


@jax.jit
def double_conv(x_ncdhw, params):
    x = jnp.transpose(x_ncdhw, (0, 2, 3, 4, 1))               # NCDHW -> NDHWC
    y = conv_bn_relu(x, params["w1"], params["b1"], params["g1"], params["beta1"])
    y = conv_bn_relu(y, params["w2"], params["b2"], params["g2"], params["beta2"])
    return jnp.transpose(y, (0, 4, 1, 2, 3))                  # NDHWC -> NCDHW


def reference_double_conv(x_ncdhw, params):
    """Pure-JAX reference (mirrors torch: Conv3d -> BN3d(train) -> ReLU, twice)."""
    def step(x, w_dhwio, b, g, beta):
        w_oidhw = jnp.transpose(w_dhwio, (4, 3, 0, 1, 2))
        y = jax.lax.conv_general_dilated(
            x, w_oidhw, window_strides=(1, 1, 1), padding=[(PAD, PAD)] * 3,
            dimension_numbers=("NCDHW", "OIDHW", "NCDHW"),
            precision=jax.lax.Precision.HIGHEST)
        y = y + b[None, :, None, None, None]
        mean = jnp.mean(y, axis=(0, 2, 3, 4), keepdims=True)
        var = jnp.mean((y - mean) ** 2, axis=(0, 2, 3, 4), keepdims=True)
        y = (y - mean) * jax.lax.rsqrt(var + BN_EPS)
        y = y * g[None, :, None, None, None] + beta[None, :, None, None, None]
        return jnp.maximum(y, 0.0)

    y = step(x_ncdhw, params["w1"], params["b1"], params["g1"], params["beta1"])
    y = step(y, params["w2"], params["b2"], params["g2"], params["beta2"])
    return y


if __name__ == "__main__":
    # TODO(synk): BatchNorm3d running-stat buffer updates (training-time side
    # effect) are not modeled; they do not affect the forward output.
    key = jax.random.PRNGKey(0)
    kx, kp = jax.random.split(key)
    N, IN_CH, OUT_CH, D, H, W = 2, 4, 8, 8, 8, 8
    x = jax.random.normal(kx, (N, IN_CH, D, H, W), jnp.float32)   # NCDHW like torch
    params = init_params(kp, IN_CH, OUT_CH)

    out = jax.block_until_ready(double_conv(x, params))
    assert out.shape == (N, OUT_CH, D, H, W), out.shape

    ref = reference_double_conv(x, params)
    max_err = float(jnp.max(jnp.abs(out - ref)))
    # bf16 MXU operands (per perf review) vs the f32 HIGHEST-precision
    # reference -> tolerance loosened accordingly.
    assert jnp.allclose(out, ref, atol=3e-2, rtol=3e-2), max_err

    print("KERNEL_OK")
</pallas_src>

<mosaic_0001>
module attributes {stable_mosaic.version = 11 : i64} {
  func.func @_conv_plane_kernel(%arg0: i32, %arg1: i32, %arg2: memref<1x12x96x20xf32, #tpu.memory_space<vmem>>, %arg3: memref<500x128xbf16, #tpu.memory_space<vmem>>, %arg4: memref<1x128xf32, #tpu.memory_space<vmem>>, %arg5: memref<1x1x64x128xf32, #tpu.memory_space<vmem>>, %arg6: memref<1x1x2x128xf32, #tpu.memory_space<vmem>>) attributes {dimension_semantics = [#tpu.dimension_semantics<parallel>, #tpu.dimension_semantics<parallel>], iteration_bounds = array<i64: 2, 8>, scalar_prefetch = 0 : i64, scratch_operands = 0 : i64, tpu.core_type = #tpu.core_type<tc>, window_params = [{transform_indices = @transform_0, window_bounds = array<i64: 1, 12, 96, 20>}, {pipeline_mode = #tpu.pipeline_mode<synchronous>, transform_indices = @transform_1, window_bounds = array<i64: 500, 128>}, {pipeline_mode = #tpu.pipeline_mode<synchronous>, transform_indices = @transform_2, window_bounds = array<i64: 1, 128>}, {transform_indices = @transform_3, window_bounds = array<i64: 1, 1, 64, 128>}, {transform_indices = @transform_4, window_bounds = array<i64: 1, 1, 2, 128>}]} {
    %c0 = arith.constant 0 : index
    %0 = arith.index_cast %arg1 : i32 to index
    %c0_0 = arith.constant 0 : index
    %c0_1 = arith.constant 0 : index
    %1 = vector.load %arg2[%c0, %0, %c0_0, %c0_1] : memref<1x12x96x20xf32, #tpu.memory_space<vmem>>, vector<1x5x96x20xf32>
    %2 = vector.shape_cast %1 : vector<1x5x96x20xf32> to vector<5x96x20xf32>
    %3 = vector.extract_strided_slice %2 {offsets = [0, 0, 0], sizes = [1, 64, 20], strides = [1, 1, 1]} : vector<5x96x20xf32> to vector<1x64x20xf32>
    %4 = vector.shape_cast %3 : vector<1x64x20xf32> to vector<64x20xf32>
    %5 = vector.extract_strided_slice %2 {offsets = [0, 8, 0], sizes = [1, 64, 20], strides = [1, 1, 1]} : vector<5x96x20xf32> to vector<1x64x20xf32>
    %6 = vector.shape_cast %5 : vector<1x64x20xf32> to vector<64x20xf32>
    %7 = vector.extract_strided_slice %2 {offsets = [0, 16, 0], sizes = [1, 64, 20], strides = [1, 1, 1]} : vector<5x96x20xf32> to vector<1x64x20xf32>
    %8 = vector.shape_cast %7 : vector<1x64x20xf32> to vector<64x20xf32>
    %9 = vector.extract_strided_slice %2 {offsets = [0, 24, 0], sizes = [1, 64, 20], strides = [1, 1, 1]} : vector<5x96x20xf32> to vector<1x64x20xf32>
    %10 = vector.shape_cast %9 : vector<1x64x20xf32> to vector<64x20xf32>
    %11 = vector.extract_strided_slice %2 {offsets = [0, 32, 0], sizes = [1, 64, 20], strides = [1, 1, 1]} : vector<5x96x20xf32> to vector<1x64x20xf32>
    %12 = vector.shape_cast %11 : vector<1x64x20xf32> to vector<64x20xf32>
    %13 = vector.extract_strided_slice %2 {offsets = [1, 0, 0], sizes = [1, 64, 20], strides = [1, 1, 1]} : vector<5x96x20xf32> to vector<1x64x20xf32>
    %14 = vector.shape_cast %13 : vector<1x64x20xf32> to vector<64x20xf32>
    %15 = vector.extract_strided_slice %2 {offsets = [1, 8, 0], sizes = [1, 64, 20], strides = [1, 1, 1]} : vector<5x96x20xf32> to vector<1x64x20xf32>
    %16 = vector.shape_cast %15 : vector<1x64x20xf32> to vector<64x20xf32>
    %17 = vector.extract_strided_slice %2 {offsets = [1, 16, 0], sizes = [1, 64, 20], strides = [1, 1, 1]} : vector<5x96x20xf32> to vector<1x64x20xf32>
    %18 = vector.shape_cast %17 : vector<1x64x20xf32> to vector<64x20xf32>
    %19 = vector.extract_strided_slice %2 {offsets = [1, 24, 0], sizes = [1, 64, 20], strides = [1, 1, 1]} : vector<5x96x20xf32> to vector<1x64x20xf32>
    %20 = vector.shape_cast %19 : vector<1x64x20xf32> to vector<64x20xf32>
    %21 = vector.extract_strided_slice %2 {offsets = [1, 32, 0], sizes = [1, 64, 20], strides = [1, 1, 1]} : vector<5x96x20xf32> to vector<1x64x20xf32>
    %22 = vector.shape_cast %21 : vector<1x64x20xf32> to vector<64x20xf32>
    %23 = vector.extract_strided_slice %2 {offsets = [2, 0, 0], sizes = [1, 64, 20], strides = [1, 1, 1]} : vector<5x96x20xf32> to vector<1x64x20xf32>
    %24 = vector.shape_cast %23 : vector<1x64x20xf32> to vector<64x20xf32>
    %25 = vector.extract_strided_slice %2 {offsets = [2, 8, 0], sizes = [1, 64, 20], strides = [1, 1, 1]} : vector<5x96x20xf32> to vector<1x64x20xf32>
    %26 = vector.shape_cast %25 : vector<1x64x20xf32> to vector<64x20xf32>
    %27 = vector.extract_strided_slice %2 {offsets = [2, 16, 0], sizes = [1, 64, 20], strides = [1, 1, 1]} : vector<5x96x20xf32> to vector<1x64x20xf32>
    %28 = vector.shape_cast %27 : vector<1x64x20xf32> to vector<64x20xf32>
    %29 = vector.extract_strided_slice %2 {offsets = [2, 24, 0], sizes = [1, 64, 20], strides = [1, 1, 1]} : vector<5x96x20xf32> to vector<1x64x20xf32>
    %30 = vector.shape_cast %29 : vector<1x64x20xf32> to vector<64x20xf32>
    %31 = vector.extract_strided_slice %2 {offsets = [2, 32, 0], sizes = [1, 64, 20], strides = [1, 1, 1]} : vector<5x96x20xf32> to vector<1x64x20xf32>
    %32 = vector.shape_cast %31 : vector<1x64x20xf32> to vector<64x20xf32>
    %33 = vector.extract_strided_slice %2 {offsets = [3, 0, 0], sizes = [1, 64, 20], strides = [1, 1, 1]} : vector<5x96x20xf32> to vector<1x64x20xf32>
    %34 = vector.shape_cast %33 : vector<1x64x20xf32> to vector<64x20xf32>
    %35 = vector.extract_strided_slice %2 {offsets = [3, 8, 0], sizes = [1, 64, 20], strides = [1, 1, 1]} : vector<5x96x20xf32> to vector<1x64x20xf32>
    %36 = vector.shape_cast %35 : vector<1x64x20xf32> to vector<64x20xf32>
    %37 = vector.extract_strided_slice %2 {offsets = [3, 16, 0], sizes = [1, 64, 20], strides = [1, 1, 1]} : vector<5x96x20xf32> to vector<1x64x20xf32>
    %38 = vector.shape_cast %37 : vector<1x64x20xf32> to vector<64x20xf32>
    %39 = vector.extract_strided_slice %2 {offsets = [3, 24, 0], sizes = [1, 64, 20], strides = [1, 1, 1]} : vector<5x96x20xf32> to vector<1x64x20xf32>
    %40 = vector.shape_cast %39 : vector<1x64x20xf32> to vector<64x20xf32>
    %41 = vector.extract_strided_slice %2 {offsets = [3, 32, 0], sizes = [1, 64, 20], strides = [1, 1, 1]} : vector<5x96x20xf32> to vector<1x64x20xf32>
    %42 = vector.shape_cast %41 : vector<1x64x20xf32> to vector<64x20xf32>
    %43 = vector.extract_strided_slice %2 {offsets = [4, 0, 0], sizes = [1, 64, 20], strides = [1, 1, 1]} : vector<5x96x20xf32> to vector<1x64x20xf32>
    %44 = vector.shape_cast %43 : vector<1x64x20xf32> to vector<64x20xf32>
    %45 = vector.extract_strided_slice %2 {offsets = [4, 8, 0], sizes = [1, 64, 20], strides = [1, 1, 1]} : vector<5x96x20xf32> to vector<1x64x20xf32>
    %46 = vector.shape_cast %45 : vector<1x64x20xf32> to vector<64x20xf32>
    %47 = vector.extract_strided_slice %2 {offsets = [4, 16, 0], sizes = [1, 64, 20], strides = [1, 1, 1]} : vector<5x96x20xf32> to vector<1x64x20xf32>
    %48 = vector.shape_cast %47 : vector<1x64x20xf32> to vector<64x20xf32>
    %49 = vector.extract_strided_slice %2 {offsets = [4, 24, 0], sizes = [1, 64, 20], strides = [1, 1, 1]} : vector<5x96x20xf32> to vector<1x64x20xf32>
    %50 = vector.shape_cast %49 : vector<1x64x20xf32> to vector<64x20xf32>
    %51 = vector.extract_strided_slice %2 {offsets = [4, 32, 0], sizes = [1, 64, 20], strides = [1, 1, 1]} : vector<5x96x20xf32> to vector<1x64x20xf32>
    %52 = vector.shape_cast %51 : vector<1x64x20xf32> to vector<64x20xf32>
    %53 = tpu.concatenate %4, %6, %8, %10, %12, %14, %16, %18, %20, %22, %24, %26, %28, %30, %32, %34 in 1 : vector<64x20xf32>, vector<64x20xf32>, vector<64x20xf32>, vector<64x20xf32>, vector<64x20xf32>, vector<64x20xf32>, vector<64x20xf32>, vector<64x20xf32>, vector<64x20xf32>, vector<64x20xf32>, vector<64x20xf32>, vector<64x20xf32>, vector<64x20xf32>, vector<64x20xf32>, vector<64x20xf32>, vector<64x20xf32> -> vector<64x320xf32>
    %54 = tpu.concatenate %36, %38, %40, %42, %44, %46, %48, %50, %52 in 1 : vector<64x20xf32>, vector<64x20xf32>, vector<64x20xf32>, vector<64x20xf32>, vector<64x20xf32>, vector<64x20xf32>, vector<64x20xf32>, vector<64x20xf32>, vector<64x20xf32> -> vector<64x180xf32>
    %55 = tpu.concatenate %53, %54 in 1 : vector<64x320xf32>, vector<64x180xf32> -> vector<64x500xf32>
    %56 = arith.truncf %55 : vector<64x500xf32> to vector<64x500xbf16>
    %c0_2 = arith.constant 0 : index
    %c0_3 = arith.constant 0 : index
    %57 = vector.load %arg3[%c0_2, %c0_3] : memref<500x128xbf16, #tpu.memory_space<vmem>>, vector<500x128xbf16>
    %cst = arith.constant dense<0.000000e+00> : vector<64x128xf32>
    %58 = tpu.matmul %56, %57, %cst {dimension_numbers = #tpu.dot_dimension_numbers<[1], [0], [0], [1], [0, 0, 1, 1], [], []>} : vector<64x500xbf16>, vector<500x128xbf16>, vector<64x128xf32> -> vector<64x128xf32>
    %c0_4 = arith.constant 0 : index
    %c0_5 = arith.constant 0 : index
    %59 = vector.load %arg4[%c0_4, %c0_5] : memref<1x128xf32, #tpu.memory_space<vmem>>, vector<1x128xf32>
    %60 = vector.broadcast %59 : vector<1x128xf32> to vector<64x128xf32>
    %61 = arith.addf %58, %60 : vector<64x128xf32>
    %c0_6 = arith.constant 0 : index
    %c0_7 = arith.constant 0 : index
    %c0_8 = arith.constant 0 : index
    %c0_9 = arith.constant 0 : index
    %62 = vector.load %arg5[%c0_6, %c0_7, %c0_8, %c0_9] : memref<1x1x64x128xf32, #tpu.memory_space<vmem>>, vector<1x1x64x128xf32>
    %63 = vector.shape_cast %62 : vector<1x1x64x128xf32> to vector<64x128xf32>
    %64 = vector.shape_cast %61 : vector<64x128xf32> to vector<1x1x64x128xf32>
    tpu.vector_store %arg5[%c0_6, %c0_7, %c0_8, %c0_9], %64 {strides = array<i32>} : memref<1x1x64x128xf32, #tpu.memory_space<vmem>>, vector<1x1x64x128xf32>,
    %cst_10 = arith.constant dense<0.000000e+00> : vector<128xf32>
    %65 = vector.multi_reduction <add>, %61, %cst_10 [0] : vector<64x128xf32> to vector<128xf32>
    %66 = vector.shape_cast %65 : vector<128xf32> to vector<1x128xf32>
    %67 = arith.mulf %61, %61 : vector<64x128xf32>
    %cst_11 = arith.constant dense<0.000000e+00> : vector<128xf32>
    %68 = vector.multi_reduction <add>, %67, %cst_11 [0] : vector<64x128xf32> to vector<128xf32>
    %69 = vector.shape_cast %68 : vector<128xf32> to vector<1x128xf32>
    %70 = tpu.concatenate %66, %69 in 0 : vector<1x128xf32>, vector<1x128xf32> -> vector<2x128xf32>
    %c0_12 = arith.constant 0 : index
    %c0_13 = arith.constant 0 : index
    %c0_14 = arith.constant 0 : index
    %c0_15 = arith.constant 0 : index
    %71 = vector.load %arg6[%c0_12, %c0_13, %c0_14, %c0_15] : memref<1x1x2x128xf32, #tpu.memory_space<vmem>>, vector<1x1x2x128xf32>
    %72 = vector.shape_cast %71 : vector<1x1x2x128xf32> to vector<2x128xf32>
    %73 = vector.shape_cast %70 : vector<2x128xf32> to vector<1x1x2x128xf32>
    tpu.vector_store %arg6[%c0_12, %c0_13, %c0_14, %c0_15], %73 {strides = array<i32>} : memref<1x1x2x128xf32, #tpu.memory_space<vmem>>, vector<1x1x2x128xf32>,
    return
  }
  func.func @transform_0(%arg0: i32, %arg1: i32) -> (i32, i32, i32, i32) {
    %c0_i32 = arith.constant 0 : i32
    %c0_i32_0 = arith.constant 0 : i32
    %c0_i32_1 = arith.constant 0 : i32
    %c0_i32_2 = arith.constant 0 : i32
    return %arg0, %c0_i32, %c0_i32_0, %c0_i32_1 : i32, i32, i32, i32
  }
  func.func @transform_1(%arg0: i32, %arg1: i32) -> (i32, i32) {
    %c0_i32 = arith.constant 0 : i32
    %c0_i32_0 = arith.constant 0 : i32
    %c0_i32_1 = arith.constant 0 : i32
    return %c0_i32, %c0_i32_0 : i32, i32
  }
  func.func @transform_2(%arg0: i32, %arg1: i32) -> (i32, i32) {
    %c0_i32 = arith.constant 0 : i32
    %c0_i32_0 = arith.constant 0 : i32
    %c0_i32_1 = arith.constant 0 : i32
    return %c0_i32, %c0_i32_0 : i32, i32
  }
  func.func @transform_3(%arg0: i32, %arg1: i32) -> (i32, i32, i32, i32) {
    %c0_i32 = arith.constant 0 : i32
    %c0_i32_0 = arith.constant 0 : i32
    %c0_i32_1 = arith.constant 0 : i32
    return %arg0, %arg1, %c0_i32, %c0_i32_0 : i32, i32, i32, i32
  }
  func.func @transform_4(%arg0: i32, %arg1: i32) -> (i32, i32, i32, i32) {
    %c0_i32 = arith.constant 0 : i32
    %c0_i32_0 = arith.constant 0 : i32
    %c0_i32_1 = arith.constant 0 : i32
    return %arg0, %arg1, %c0_i32, %c0_i32_0 : i32, i32, i32, i32
  }
}

module attributes {stable_mosaic.version = 11 : i64} {
  func.func @_bn_relu_kernel(%arg0: i32, %arg1: i32, %arg2: memref<1x1x64x128xf32, #tpu.memory_space<vmem>>, %arg3: memref<2x128xf32, #tpu.memory_space<vmem>>, %arg4: memref<1x1x64x128xf32, #tpu.memory_space<vmem>>) attributes {dimension_semantics = [#tpu.dimension_semantics<parallel>, #tpu.dimension_semantics<parallel>], iteration_bounds = array<i64: 2, 8>, scalar_prefetch = 0 : i64, scratch_operands = 0 : i64, tpu.core_type = #tpu.core_type<tc>, window_params = [{transform_indices = @transform_0, window_bounds = array<i64: 1, 1, 64, 128>}, {pipeline_mode = #tpu.pipeline_mode<synchronous>, transform_indices = @transform_1, window_bounds = array<i64: 2, 128>}, {transform_indices = @transform_2, window_bounds = array<i64: 1, 1, 64, 128>}]} {
    %c0 = arith.constant 0 : index
    %c0_0 = arith.constant 0 : index
    %0 = vector.load %arg3[%c0, %c0_0] : memref<2x128xf32, #tpu.memory_space<vmem>>, vector<1x128xf32>
    %c1 = arith.constant 1 : index
    %c0_1 = arith.constant 0 : index
    %1 = vector.load %arg3[%c1, %c0_1] : memref<2x128xf32, #tpu.memory_space<vmem>>, vector<1x128xf32>
    %c0_2 = arith.constant 0 : index
    %c0_3 = arith.constant 0 : index
    %c0_4 = arith.constant 0 : index
    %c0_5 = arith.constant 0 : index
    %2 = vector.load %arg2[%c0_2, %c0_3, %c0_4, %c0_5] : memref<1x1x64x128xf32, #tpu.memory_space<vmem>>, vector<1x1x64x128xf32>
    %3 = vector.shape_cast %2 : vector<1x1x64x128xf32> to vector<64x128xf32>
    %4 = vector.broadcast %0 : vector<1x128xf32> to vector<64x128xf32>
    %5 = arith.mulf %3, %4 : vector<64x128xf32>
    %6 = vector.broadcast %1 : vector<1x128xf32> to vector<64x128xf32>
    %7 = arith.addf %5, %6 : vector<64x128xf32>
    %cst = arith.constant 0.000000e+00 : f32
    %8 = vector.broadcast %cst : f32 to vector<64x128xf32>
    %9 = arith.maximumf %7, %8 : vector<64x128xf32>
    %c0_6 = arith.constant 0 : index
    %c0_7 = arith.constant 0 : index
    %c0_8 = arith.constant 0 : index
    %c0_9 = arith.constant 0 : index
    %10 = vector.load %arg4[%c0_6, %c0_7, %c0_8, %c0_9] : memref<1x1x64x128xf32, #tpu.memory_space<vmem>>, vector<1x1x64x128xf32>
    %11 = vector.shape_cast %10 : vector<1x1x64x128xf32> to vector<64x128xf32>
    %12 = vector.shape_cast %9 : vector<64x128xf32> to vector<1x1x64x128xf32>
    tpu.vector_store %arg4[%c0_6, %c0_7, %c0_8, %c0_9], %12 {strides = array<i32>} : memref<1x1x64x128xf32, #tpu.memory_space<vmem>>, vector<1x1x64x128xf32>,
    return
  }
  func.func @transform_0(%arg0: i32, %arg1: i32) -> (i32, i32, i32, i32) {
    %c0_i32 = arith.constant 0 : i32
    %c0_i32_0 = arith.constant 0 : i32
    %c0_i32_1 = arith.constant 0 : i32
    return %arg0, %arg1, %c0_i32, %c0_i32_0 : i32, i32, i32, i32
  }
  func.func @transform_1(%arg0: i32, %arg1: i32) -> (i32, i32) {
    %c0_i32 = arith.constant 0 : i32
    %c0_i32_0 = arith.constant 0 : i32
    %c0_i32_1 = arith.constant 0 : i32
    return %c0_i32, %c0_i32_0 : i32, i32
  }
  func.func @transform_2(%arg0: i32, %arg1: i32) -> (i32, i32, i32, i32) {
    %c0_i32 = arith.constant 0 : i32
    %c0_i32_0 = arith.constant 0 : i32
    %c0_i32_1 = arith.constant 0 : i32
    return %arg0, %arg1, %c0_i32, %c0_i32_0 : i32, i32, i32, i32
  }
}

module attributes {stable_mosaic.version = 11 : i64} {
  func.func @_conv_plane_kernel(%arg0: i32, %arg1: i32, %arg2: memref<1x12x96x40xf32, #tpu.memory_space<vmem>>, %arg3: memref<1000x128xbf16, #tpu.memory_space<vmem>>, %arg4: memref<1x128xf32, #tpu.memory_space<vmem>>, %arg5: memref<1x1x64x128xf32, #tpu.memory_space<vmem>>, %arg6: memref<1x1x2x128xf32, #tpu.memory_space<vmem>>) attributes {dimension_semantics = [#tpu.dimension_semantics<parallel>, #tpu.dimension_semantics<parallel>], iteration_bounds = array<i64: 2, 8>, scalar_prefetch = 0 : i64, scratch_operands = 0 : i64, tpu.core_type = #tpu.core_type<tc>, window_params = [{transform_indices = @transform_0, window_bounds = array<i64: 1, 12, 96, 40>}, {pipeline_mode = #tpu.pipeline_mode<synchronous>, transform_indices = @transform_1, window_bounds = array<i64: 1000, 128>}, {pipeline_mode = #tpu.pipeline_mode<synchronous>, transform_indices = @transform_2, window_bounds = array<i64: 1, 128>}, {transform_indices = @transform_3, window_bounds = array<i64: 1, 1, 64, 128>}, {transform_indices = @transform_4, window_bounds = array<i64: 1, 1, 2, 128>}]} {
    %c0 = arith.constant 0 : index
    %0 = arith.index_cast %arg1 : i32 to index
    %c0_0 = arith.constant 0 : index
    %c0_1 = arith.constant 0 : index
    %1 = vector.load %arg2[%c0, %0, %c0_0, %c0_1] : memref<1x12x96x40xf32, #tpu.memory_space<vmem>>, vector<1x5x96x40xf32>
    %2 = vector.shape_cast %1 : vector<1x5x96x40xf32> to vector<5x96x40xf32>
    %3 = vector.extract_strided_slice %2 {offsets = [0, 0, 0], sizes = [1, 64, 40], strides = [1, 1, 1]} : vector<5x96x40xf32> to vector<1x64x40xf32>
    %4 = vector.shape_cast %3 : vector<1x64x40xf32> to vector<64x40xf32>
    %5 = vector.extract_strided_slice %2 {offsets = [0, 8, 0], sizes = [1, 64, 40], strides = [1, 1, 1]} : vector<5x96x40xf32> to vector<1x64x40xf32>
    %6 = vector.shape_cast %5 : vector<1x64x40xf32> to vector<64x40xf32>
    %7 = vector.extract_strided_slice %2 {offsets = [0, 16, 0], sizes = [1, 64, 40], strides = [1, 1, 1]} : vector<5x96x40xf32> to vector<1x64x40xf32>
    %8 = vector.shape_cast %7 : vector<1x64x40xf32> to vector<64x40xf32>
    %9 = vector.extract_strided_slice %2 {offsets = [0, 24, 0], sizes = [1, 64, 40], strides = [1, 1, 1]} : vector<5x96x40xf32> to vector<1x64x40xf32>
    %10 = vector.shape_cast %9 : vector<1x64x40xf32> to vector<64x40xf32>
    %11 = vector.extract_strided_slice %2 {offsets = [0, 32, 0], sizes = [1, 64, 40], strides = [1, 1, 1]} : vector<5x96x40xf32> to vector<1x64x40xf32>
    %12 = vector.shape_cast %11 : vector<1x64x40xf32> to vector<64x40xf32>
    %13 = vector.extract_strided_slice %2 {offsets = [1, 0, 0], sizes = [1, 64, 40], strides = [1, 1, 1]} : vector<5x96x40xf32> to vector<1x64x40xf32>
    %14 = vector.shape_cast %13 : vector<1x64x40xf32> to vector<64x40xf32>
    %15 = vector.extract_strided_slice %2 {offsets = [1, 8, 0], sizes = [1, 64, 40], strides = [1, 1, 1]} : vector<5x96x40xf32> to vector<1x64x40xf32>
    %16 = vector.shape_cast %15 : vector<1x64x40xf32> to vector<64x40xf32>
    %17 = vector.extract_strided_slice %2 {offsets = [1, 16, 0], sizes = [1, 64, 40], strides = [1, 1, 1]} : vector<5x96x40xf32> to vector<1x64x40xf32>
    %18 = vector.shape_cast %17 : vector<1x64x40xf32> to vector<64x40xf32>
    %19 = vector.extract_strided_slice %2 {offsets = [1, 24, 0], sizes = [1, 64, 40], strides = [1, 1, 1]} : vector<5x96x40xf32> to vector<1x64x40xf32>
    %20 = vector.shape_cast %19 : vector<1x64x40xf32> to vector<64x40xf32>
    %21 = vector.extract_strided_slice %2 {offsets = [1, 32, 0], sizes = [1, 64, 40], strides = [1, 1, 1]} : vector<5x96x40xf32> to vector<1x64x40xf32>
    %22 = vector.shape_cast %21 : vector<1x64x40xf32> to vector<64x40xf32>
    %23 = vector.extract_strided_slice %2 {offsets = [2, 0, 0], sizes = [1, 64, 40], strides = [1, 1, 1]} : vector<5x96x40xf32> to vector<1x64x40xf32>
    %24 = vector.shape_cast %23 : vector<1x64x40xf32> to vector<64x40xf32>
    %25 = vector.extract_strided_slice %2 {offsets = [2, 8, 0], sizes = [1, 64, 40], strides = [1, 1, 1]} : vector<5x96x40xf32> to vector<1x64x40xf32>
    %26 = vector.shape_cast %25 : vector<1x64x40xf32> to vector<64x40xf32>
    %27 = vector.extract_strided_slice %2 {offsets = [2, 16, 0], sizes = [1, 64, 40], strides = [1, 1, 1]} : vector<5x96x40xf32> to vector<1x64x40xf32>
    %28 = vector.shape_cast %27 : vector<1x64x40xf32> to vector<64x40xf32>
    %29 = vector.extract_strided_slice %2 {offsets = [2, 24, 0], sizes = [1, 64, 40], strides = [1, 1, 1]} : vector<5x96x40xf32> to vector<1x64x40xf32>
    %30 = vector.shape_cast %29 : vector<1x64x40xf32> to vector<64x40xf32>
    %31 = vector.extract_strided_slice %2 {offsets = [2, 32, 0], sizes = [1, 64, 40], strides = [1, 1, 1]} : vector<5x96x40xf32> to vector<1x64x40xf32>
    %32 = vector.shape_cast %31 : vector<1x64x40xf32> to vector<64x40xf32>
    %33 = vector.extract_strided_slice %2 {offsets = [3, 0, 0], sizes = [1, 64, 40], strides = [1, 1, 1]} : vector<5x96x40xf32> to vector<1x64x40xf32>
    %34 = vector.shape_cast %33 : vector<1x64x40xf32> to vector<64x40xf32>
    %35 = vector.extract_strided_slice %2 {offsets = [3, 8, 0], sizes = [1, 64, 40], strides = [1, 1, 1]} : vector<5x96x40xf32> to vector<1x64x40xf32>
    %36 = vector.shape_cast %35 : vector<1x64x40xf32> to vector<64x40xf32>
    %37 = vector.extract_strided_slice %2 {offsets = [3, 16, 0], sizes = [1, 64, 40], strides = [1, 1, 1]} : vector<5x96x40xf32> to vector<1x64x40xf32>
    %38 = vector.shape_cast %37 : vector<1x64x40xf32> to vector<64x40xf32>
    %39 = vector.extract_strided_slice %2 {offsets = [3, 24, 0], sizes = [1, 64, 40], strides = [1, 1, 1]} : vector<5x96x40xf32> to vector<1x64x40xf32>
    %40 = vector.shape_cast %39 : vector<1x64x40xf32> to vector<64x40xf32>
    %41 = vector.extract_strided_slice %2 {offsets = [3, 32, 0], sizes = [1, 64, 40], strides = [1, 1, 1]} : vector<5x96x40xf32> to vector<1x64x40xf32>
    %42 = vector.shape_cast %41 : vector<1x64x40xf32> to vector<64x40xf32>
    %43 = vector.extract_strided_slice %2 {offsets = [4, 0, 0], sizes = [1, 64, 40], strides = [1, 1, 1]} : vector<5x96x40xf32> to vector<1x64x40xf32>
    %44 = vector.shape_cast %43 : vector<1x64x40xf32> to vector<64x40xf32>
    %45 = vector.extract_strided_slice %2 {offsets = [4, 8, 0], sizes = [1, 64, 40], strides = [1, 1, 1]} : vector<5x96x40xf32> to vector<1x64x40xf32>
    %46 = vector.shape_cast %45 : vector<1x64x40xf32> to vector<64x40xf32>
    %47 = vector.extract_strided_slice %2 {offsets = [4, 16, 0], sizes = [1, 64, 40], strides = [1, 1, 1]} : vector<5x96x40xf32> to vector<1x64x40xf32>
    %48 = vector.shape_cast %47 : vector<1x64x40xf32> to vector<64x40xf32>
    %49 = vector.extract_strided_slice %2 {offsets = [4, 24, 0], sizes = [1, 64, 40], strides = [1, 1, 1]} : vector<5x96x40xf32> to vector<1x64x40xf32>
    %50 = vector.shape_cast %49 : vector<1x64x40xf32> to vector<64x40xf32>
    %51 = vector.extract_strided_slice %2 {offsets = [4, 32, 0], sizes = [1, 64, 40], strides = [1, 1, 1]} : vector<5x96x40xf32> to vector<1x64x40xf32>
    %52 = vector.shape_cast %51 : vector<1x64x40xf32> to vector<64x40xf32>
    %53 = tpu.concatenate %4, %6, %8, %10, %12, %14, %16, %18, %20, %22, %24, %26, %28, %30, %32, %34 in 1 : vector<64x40xf32>, vector<64x40xf32>, vector<64x40xf32>, vector<64x40xf32>, vector<64x40xf32>, vector<64x40xf32>, vector<64x40xf32>, vector<64x40xf32>, vector<64x40xf32>, vector<64x40xf32>, vector<64x40xf32>, vector<64x40xf32>, vector<64x40xf32>, vector<64x40xf32>, vector<64x40xf32>, vector<64x40xf32> -> vector<64x640xf32>
    %54 = tpu.concatenate %36, %38, %40, %42, %44, %46, %48, %50, %52 in 1 : vector<64x40xf32>, vector<64x40xf32>, vector<64x40xf32>, vector<64x40xf32>, vector<64x40xf32>, vector<64x40xf32>, vector<64x40xf32>, vector<64x40xf32>, vector<64x40xf32> -> vector<64x360xf32>
    %55 = tpu.concatenate %53, %54 in 1 : vector<64x640xf32>, vector<64x360xf32> -> vector<64x1000xf32>
    %56 = arith.truncf %55 : vector<64x1000xf32> to vector<64x1000xbf16>
    %c0_2 = arith.constant 0 : index
    %c0_3 = arith.constant 0 : index
    %57 = vector.load %arg3[%c0_2, %c0_3] : memref<1000x128xbf16, #tpu.memory_space<vmem>>, vector<1000x128xbf16>
    %cst = arith.constant dense<0.000000e+00> : vector<64x128xf32>
    %58 = tpu.matmul %56, %57, %cst {dimension_numbers = #tpu.dot_dimension_numbers<[1], [0], [0], [1], [0, 0, 1, 1], [], []>} : vector<64x1000xbf16>, vector<1000x128xbf16>, vector<64x128xf32> -> vector<64x128xf32>
    %c0_4 = arith.constant 0 : index
    %c0_5 = arith.constant 0 : index
    %59 = vector.load %arg4[%c0_4, %c0_5] : memref<1x128xf32, #tpu.memory_space<vmem>>, vector<1x128xf32>
    %60 = vector.broadcast %59 : vector<1x128xf32> to vector<64x128xf32>
    %61 = arith.addf %58, %60 : vector<64x128xf32>
    %c0_6 = arith.constant 0 : index
    %c0_7 = arith.constant 0 : index
    %c0_8 = arith.constant 0 : index
    %c0_9 = arith.constant 0 : index
    %62 = vector.load %arg5[%c0_6, %c0_7, %c0_8, %c0_9] : memref<1x1x64x128xf32, #tpu.memory_space<vmem>>, vector<1x1x64x128xf32>
    %63 = vector.shape_cast %62 : vector<1x1x64x128xf32> to vector<64x128xf32>
    %64 = vector.shape_cast %61 : vector<64x128xf32> to vector<1x1x64x128xf32>
    tpu.vector_store %arg5[%c0_6, %c0_7, %c0_8, %c0_9], %64 {strides = array<i32>} : memref<1x1x64x128xf32, #tpu.memory_space<vmem>>, vector<1x1x64x128xf32>,
    %cst_10 = arith.constant dense<0.000000e+00> : vector<128xf32>
    %65 = vector.multi_reduction <add>, %61, %cst_10 [0] : vector<64x128xf32> to vector<128xf32>
    %66 = vector.shape_cast %65 : vector<128xf32> to vector<1x128xf32>
    %67 = arith.mulf %61, %61 : vector<64x128xf32>
    %cst_11 = arith.constant dense<0.000000e+00> : vector<128xf32>
    %68 = vector.multi_reduction <add>, %67, %cst_11 [0] : vector<64x128xf32> to vector<128xf32>
    %69 = vector.shape_cast %68 : vector<128xf32> to vector<1x128xf32>
    %70 = tpu.concatenate %66, %69 in 0 : vector<1x128xf32>, vector<1x128xf32> -> vector<2x128xf32>
    %c0_12 = arith.constant 0 : index
    %c0_13 = arith.constant 0 : index
    %c0_14 = arith.constant 0 : index
    %c0_15 = arith.constant 0 : index
    %71 = vector.load %arg6[%c0_12, %c0_13, %c0_14, %c0_15] : memref<1x1x2x128xf32, #tpu.memory_space<vmem>>, vector<1x1x2x128xf32>
    %72 = vector.shape_cast %71 : vector<1x1x2x128xf32> to vector<2x128xf32>
    %73 = vector.shape_cast %70 : vector<2x128xf32> to vector<1x1x2x128xf32>
    tpu.vector_store %arg6[%c0_12, %c0_13, %c0_14, %c0_15], %73 {strides = array<i32>} : memref<1x1x2x128xf32, #tpu.memory_space<vmem>>, vector<1x1x2x128xf32>,
    return
  }
  func.func @transform_0(%arg0: i32, %arg1: i32) -> (i32, i32, i32, i32) {
    %c0_i32 = arith.constant 0 : i32
    %c0_i32_0 = arith.constant 0 : i32
    %c0_i32_1 = arith.constant 0 : i32
    %c0_i32_2 = arith.constant 0 : i32
    return %arg0, %c0_i32, %c0_i32_0, %c0_i32_1 : i32, i32, i32, i32
  }
  func.func @transform_1(%arg0: i32, %arg1: i32) -> (i32, i32) {
    %c0_i32 = arith.constant 0 : i32
    %c0_i32_0 = arith.constant 0 : i32
    %c0_i32_1 = arith.constant 0 : i32
    return %c0_i32, %c0_i32_0 : i32, i32
  }
  func.func @transform_2(%arg0: i32, %arg1: i32) -> (i32, i32) {
    %c0_i32 = arith.constant 0 : i32
    %c0_i32_0 = arith.constant 0 : i32
    %c0_i32_1 = arith.constant 0 : i32
    return %c0_i32, %c0_i32_0 : i32, i32
  }
  func.func @transform_3(%arg0: i32, %arg1: i32) -> (i32, i32, i32, i32) {
    %c0_i32 = arith.constant 0 : i32
    %c0_i32_0 = arith.constant 0 : i32
    %c0_i32_1 = arith.constant 0 : i32
    return %arg0, %arg1, %c0_i32, %c0_i32_0 : i32, i32, i32, i32
  }
  func.func @transform_4(%arg0: i32, %arg1: i32) -> (i32, i32, i32, i32) {
    %c0_i32 = arith.constant 0 : i32
    %c0_i32_0 = arith.constant 0 : i32
    %c0_i32_1 = arith.constant 0 : i32
    return %arg0, %arg1, %c0_i32, %c0_i32_0 : i32, i32, i32, i32
  }
}

</mosaic_0001>

<llo_original>
// kernel: double_conv.5
$region0: #{double_conv.5}
  #allocation0 [shape = 'u32[]', space=smem, size = 0x4, offset = 0x4, fixed_abs, tag = 'smem constant byte address 0x4 - core index']
  #allocation1 [shape = 'u32[144,128]{1,0:T(1,128)}', space=vmem, size = 0x12000, scoped, tag = 'internal scratch']
  %s0 = inlined_call_operand.vmem [shape: f32[2,8,64,128], index: 0, kind: input, shape index: {}]
  %s1 = inlined_call_operand.vmem [shape: f32[2,128], index: 1, kind: input, shape index: {}]
  %s2 = inlined_call_operand.vmem [shape: f32[2,8,64,128], index: 2, kind: output, shape index: {}]
  %s3 = sld [smem:[#allocation0]]
  $region41: #{double_conv.5} parent=0
    _
  %s5 = ssub.s32 1, %s3
  %s6 = scalar_select 0, %s5, %s3
  loop: start=0, step=1, limit=18
  $region2: #{double_conv.5} parent=0 // loop_pre_header
    _
  $region3: #{double_conv.5} parent=0 // loop_header
    %s8 = sphi 0, %s12
    %p9 = scmp.ge.s32.totalorder %s8, 18
    %s15 = sphi 0, %s27
    %s16 = sphi 0, %s23
    %s17 = sphi 0, %s15
    %s18 = sphi 0, %s16
    %s19 = sphi 0, %s17
    %s20 = sphi 0, %s18
    %s32 = sphi 0, %s34
    %s35 = sphi 0, %s32
    %s36 = sphi 0, %s35
    %s52 = sphi 0, %s36
    %s56 = sphi 0, %s56
    %s58 = sphi 0, %s56
    %s59 = sphi 0, %s58
    %s73 = sphi 0, %s59
    %s81 = sphi 0, %s83
    %s84 = sphi 0, %s81
    %s85 = sphi 0, %s84
    %s101 = sphi 0, %s85
  $region4: #{double_conv.5} parent=0 // loop_header_branch
    %11 = sbr.rel (%p9) target = $region8
  $region5: #{double_conv.5} parent=0 // loop_body
    %s13 = ssub.s32 %s8, 1
    %s14 = ssub.s32 %s8, 2
    %s21 = sadd.s32 1, %s16
    %p22 = scmp.ge.s32.totalorder %s21, 8
    %s23 = scalar_select %p22, 0, %s21
    %s24 = sadd.s32 1, %s15
    %s25 = scalar_select %p22, %s24, %s15
    %p26 = scmp.ge.s32.totalorder %s25, 2
    %s27 = scalar_select %p26, 0, %s25
    %s28 = ssub.s32 %s15, %s27
    %s29 = ssub.s32 %s16, %s23
    %s30 = sor.u32 %s28, %s29
    %p31 = scmp.eq.s32.totalorder %s30, 0
    %s33 = sadd.s32 %s32, 1
    %s34 = scalar_select %p31, %s32, %s33
    %p37 = pneg %p31
    %p38 = scmp.eq.s32.totalorder %s8, 15
    %p39 = por %p37, %p38
    %p40 = scmp.ne.s32.totalorder %s32, %s35
    %p41 = scmp.eq.s32.totalorder %s8, 0
    %p42 = por %p40, %p41
    %p43 = scmp.ne.s32.totalorder %s32, %s35
    %p44 = scmp.eq.s32.totalorder %s13, 15
    %p45 = por %p43, %p44
    %p46 = scmp.ne.s32.totalorder %s35, %s36
    %p47 = scmp.eq.s32.totalorder %s13, 0
    %p48 = por %p46, %p47
    %p49 = scmp.ne.s32.totalorder %s35, %s36
    %p50 = scmp.eq.s32.totalorder %s14, 15
    %p51 = por %p49, %p50
    %p53 = scmp.ne.s32.totalorder %s36, %s52
    %p54 = scmp.eq.s32.totalorder %s14, 0
    %p55 = por %p53, %p54
    %s57 = sadd.s32 %s56, 1
    %p60 = scmp.eq.s32.totalorder %s8, 15
    %p61 = scmp.ne.s32.totalorder %s56, %s58
    %p62 = scmp.eq.s32.totalorder %s8, 0
    %p63 = por %p61, %p62
    %p64 = scmp.ne.s32.totalorder %s56, %s58
    %p65 = scmp.eq.s32.totalorder %s13, 15
    %p66 = por %p64, %p65
    %p67 = scmp.ne.s32.totalorder %s58, %s59
    %p68 = scmp.eq.s32.totalorder %s13, 0
    %p69 = por %p67, %p68
    %p70 = scmp.ne.s32.totalorder %s58, %s59
    %p71 = scmp.eq.s32.totalorder %s14, 15
    %p72 = por %p70, %p71
    %p74 = scmp.ne.s32.totalorder %s59, %s73
    %p75 = scmp.eq.s32.totalorder %s14, 0
    %p76 = por %p74, %p75
    %s77 = ssub.s32 %s15, %s27
    %s78 = ssub.s32 %s16, %s23
    %s79 = sor.u32 %s77, %s78
    %p80 = scmp.eq.s32.totalorder %s79, 0
    %s82 = sadd.s32 %s81, 1
    %s83 = scalar_select %p80, %s81, %s82
    %p86 = pneg %p80
    %p87 = scmp.eq.s32.totalorder %s8, 15
    %p88 = por %p86, %p87
    %p89 = scmp.ne.s32.totalorder %s81, %s84
    %p90 = scmp.eq.s32.totalorder %s8, 0
    %p91 = por %p89, %p90
    %p92 = scmp.ne.s32.totalorder %s81, %s84
    %p93 = scmp.eq.s32.totalorder %s13, 15
    %p94 = por %p92, %p93
    %p95 = scmp.ne.s32.totalorder %s84, %s85
    %p96 = scmp.eq.s32.totalorder %s13, 0
    %p97 = por %p95, %p96
    %p98 = scmp.ne.s32.totalorder %s84, %s85
    %p99 = scmp.eq.s32.totalorder %s14, 15
    %p100 = por %p98, %p99
    %p102 = scmp.ne.s32.totalorder %s85, %s101
    %p103 = scmp.eq.s32.totalorder %s14, 0
    %p104 = por %p102, %p103
    %p105 = scmp.le.s32.totalorder 1, %s8
    %p106 = scmp.lt.s32.totalorder %s8, 17
    %p107 = pnand %p105, %p106
    %p108 = pneg %p107
    // Predicated region
    $region9: #{double_conv.5} parent=5 // pred_check
      _
    $region10: #{double_conv.5} parent=5 // pred_check_branch
      %110 = sbr.rel (%p107) target = $region12
    $region11: #{double_conv.5} parent=5 // pred_region
      %s111 = ssub.s32 %s8, 1
      // Predicated region
      $region13: #{double_conv.5} parent=11 // pred_check
        %p112 = pneg %p69
      $region14: #{double_conv.5} parent=11 // pred_check_branch
        %114 = sbr.rel (%p112) target = $region16
      $region15: #{double_conv.5} parent=11 // pred_region
        _
      $region16: #{double_conv.5} parent=11 // pred_fallthru
        _
    $region12: #{double_conv.5} parent=5 // pred_fallthru
      _
    %p115 = scmp.lt.s32.totalorder %s8, 16
    // Predicated region
    $region17: #{double_conv.5} parent=5 // pred_check
      %p116 = pneg %p115
    $region18: #{double_conv.5} parent=5 // pred_check_branch
      %118 = sbr.rel (%p116) target = $region20
    $region19: #{double_conv.5} parent=5 // pred_region
      // Predicated region
      $region21: #{double_conv.5} parent=19 // pred_check
        %p119 = pneg %p42
      $region22: #{double_conv.5} parent=19 // pred_check_branch
        %121 = sbr.rel (%p119) target = $region24
      $region23: #{double_conv.5} parent=19 // pred_region
        %p122 = scmp.lt.s32.totalorder %s15, 1
        %s123 = scalar_select %p122, %s15, 1
        %p124 = scmp.lt.s32.totalorder %s16, 7
        %s125 = scalar_select %p124, %s16, 7
        %s126 = smul.addr %s125, 8
        %s127 = smul.addr %s123, 64
        %s128 = sadd.s32 %s126, %s127
        %s129 = smul.addr %s128, 8
        %s130 = scalar_lea.vmem %s0, %s129
      $region24: #{double_conv.5} parent=19 // pred_fallthru
        _
    $region20: #{double_conv.5} parent=5 // pred_fallthru
      _
    %p131 = scmp.le.s32.totalorder 1, %s8
    %p132 = scmp.lt.s32.totalorder %s8, 17
    %p133 = pnand %p131, %p132
    %p134 = pneg %p133
    // Predicated region
    $region25: #{double_conv.5} parent=5 // pred_check
      _
    $region26: #{double_conv.5} parent=5 // pred_check_branch
      %136 = sbr.rel (%p133) target = $region28
    $region27: #{double_conv.5} parent=5 // pred_region
      %s137 = ssub.s32 %s8, 1
      %p138 = scmp.lt.s32.totalorder %s17, 1
      %s139 = scalar_select %p138, %s17, 1
      %p140 = scmp.lt.s32.totalorder %s18, 7
      %s141 = scalar_select %p140, %s18, 7
      %s142 = smul.addr %s141, 8
      %s143 = smul.addr %s139, 64
      %s144 = sadd.s32 %s142, %s143
      %s145 = smul.addr %s144, 8
      %s146 = scalar_lea.vmem %s0, %s145
      %p147 = pneg %p48
      %p148 = pneg %p45
      %p149 = pneg %p69
      %p150 = pneg %p66
      %p151 = pneg %p97
      %p152 = pneg %p94
      %p153 = scmp.lt.s32.totalorder %s17, 1
      %s154 = scalar_select %p153, %s17, 1
      %p155 = scmp.lt.s32.totalorder %s18, 7
      %s156 = scalar_select %p155, %s18, 7
      %s157 = smul.addr %s156, 8
      %s158 = smul.addr %s154, 64
      %s159 = sadd.s32 %s157, %s158
      %s160 = smul.addr %s159, 8
      %s161 = scalar_lea.vmem %s2, %s160
      %p162 = scmp.lt.s32.totalorder %s17, 1
      %s163 = scalar_select %p162, %s17, 1
      %p164 = scmp.lt.s32.totalorder %s18, 7
      %s165 = scalar_select %p164, %s18, 7
      %s166 = smul.addr %s165, 8
      %s167 = smul.addr %s163, 64
      %s168 = sadd.s32 %s166, %s167
      %s169 = smul.addr %s168, 8
      %s170 = scalar_lea.vmem %s0, %s169
      %p171 = scmp.lt.s32.totalorder %s17, 1
      %s172 = scalar_select %p171, %s17, 1
      %p173 = scmp.lt.s32.totalorder %s18, 7
      %s174 = scalar_select %p173, %s18, 7
      %s175 = smul.addr %s174, 8
      %s176 = smul.addr %s172, 64
      %s177 = sadd.s32 %s175, %s176
      %s178 = smul.addr %s177, 8
      %s179 = scalar_lea.vmem %s2, %s178
      %v180 = vld [vmem:[%s1] sm:$0x1]
      %v181 = vld [vmem:[%s1 + $0x1] sm:$0x1]
      %v182 = vld [vmem:[%s170] sm:$0xff]
      %v183 = vld [vmem:[%s170 + $0x8] sm:$0xff]
      %v184 = vld [vmem:[%s170 + $0x10] sm:$0xff]
      %v185 = vld [vmem:[%s170 + $0x18] sm:$0xff]
      %v186 = vld [vmem:[%s170 + $0x20] sm:$0xff]
      %v187 = vld [vmem:[%s170 + $0x28] sm:$0xff]
      %v188 = vld [vmem:[%s170 + $0x30] sm:$0xff]
      %v189 = vld [vmem:[%s170 + $0x38] sm:$0xff]
      %v190 = vlaneseq
      %v191 = vshrl.u32 %v190, 7
      %v192 = vsub.s32 0, %v191
      %v193 = vrot.slane %v180, %v192
      %v194 = vmul.f32 %v182, %v193
      %v195 = vmul.f32 %v183, %v193
      %v196 = vmul.f32 %v184, %v193
      %v197 = vmul.f32 %v185, %v193
      %v198 = vmul.f32 %v186, %v193
      %v199 = vmul.f32 %v187, %v193
      %v200 = vmul.f32 %v188, %v193
      %v201 = vmul.f32 %v189, %v193
      %v202 = vlaneseq
      %v203 = vshrl.u32 %v202, 7
      %v204 = vsub.s32 0, %v203
      %v205 = vrot.slane %v181, %v204
      %v206 = vadd.f32 %v194, %v205
      %v207 = vadd.f32 %v195, %v205
      %v208 = vadd.f32 %v196, %v205
      %v209 = vadd.f32 %v197, %v205
      %v210 = vadd.f32 %v198, %v205
      %v211 = vadd.f32 %v199, %v205
      %v212 = vadd.f32 %v200, %v205
      %v213 = vadd.f32 %v201, %v205
      %v214 = vmax.f32 %v206, 0.0
      %v215 = vmax.f32 %v207, 0.0
      %v216 = vmax.f32 %v208, 0.0
      %v217 = vmax.f32 %v209, 0.0
      %v218 = vmax.f32 %v210, 0.0
      %v219 = vmax.f32 %v211, 0.0
      %v220 = vmax.f32 %v212, 0.0
      %v221 = vmax.f32 %v213, 0.0
      %222 = vst [vmem:[%s179] sm:$0xff] %v214
      %223 = vst [vmem:[%s179 + $0x8] sm:$0xff] %v215
      %224 = vst [vmem:[%s179 + $0x10] sm:$0xff] %v216
      %225 = vst [vmem:[%s179 + $0x18] sm:$0xff] %v217
      %226 = vst [vmem:[%s179 + $0x20] sm:$0xff] %v218
      %227 = vst [vmem:[%s179 + $0x28] sm:$0xff] %v219
      %228 = vst [vmem:[%s179 + $0x30] sm:$0xff] %v220
      %229 = vst [vmem:[%s179 + $0x38] sm:$0xff] %v221
      %p230 = scmp.lt.s32.totalorder %s17, 1
      %s231 = scalar_select %p230, %s17, 1
      %p232 = scmp.lt.s32.totalorder %s18, 7
      %s233 = scalar_select %p232, %s18, 7
      %s234 = smul.addr %s233, 8
      %s235 = smul.addr %s231, 64
      %s236 = sadd.s32 %s234, %s235
      %s237 = smul.addr %s236, 8
      %s238 = scalar_lea.vmem %s2, %s237
      // Predicated region
      $region29: #{double_conv.5} parent=27 // pred_check
        %p239 = pneg %p94
      $region30: #{double_conv.5} parent=27 // pred_check_branch
        %241 = sbr.rel (%p239) target = $region32
      $region31: #{double_conv.5} parent=27 // pred_region
        _
      $region32: #{double_conv.5} parent=27 // pred_fallthru
        _
    $region28: #{double_conv.5} parent=5 // pred_fallthru
      _
    %p242 = scmp.le.s32.totalorder 2, %s8
    // Predicated region
    $region33: #{double_conv.5} parent=5 // pred_check
      %p243 = pneg %p242
    $region34: #{double_conv.5} parent=5 // pred_check_branch
      %245 = sbr.rel (%p243) target = $region36
    $region35: #{double_conv.5} parent=5 // pred_region
      %s246 = ssub.s32 %s8, 2
      // Predicated region
      $region37: #{double_conv.5} parent=35 // pred_check
        %p247 = pneg %p100
      $region38: #{double_conv.5} parent=35 // pred_check_branch
        %249 = sbr.rel (%p247) target = $region40
      $region39: #{double_conv.5} parent=35 // pred_region
        %p250 = scmp.lt.s32.totalorder %s19, 1
        %s251 = scalar_select %p250, %s19, 1
        %p252 = scmp.lt.s32.totalorder %s20, 7
        %s253 = scalar_select %p252, %s20, 7
        %s254 = smul.addr %s253, 8
        %s255 = smul.addr %s251, 64
        %s256 = sadd.s32 %s254, %s255
        %s257 = smul.addr %s256, 8
        %s258 = scalar_lea.vmem %s2, %s257
      $region40: #{double_conv.5} parent=35 // pred_fallthru
        _
    $region36: #{double_conv.5} parent=5 // pred_fallthru
      _
  $region6: #{double_conv.5} parent=0 // loop_footer
    %s12 = sadd.s32 1, %s8
  $region7: #{double_conv.5} parent=0 // loop_footer_branch
    %7 = sbr.rel target = $region3
  $region8: #{double_conv.5} parent=0 // loop_exit
    _

// kernel: double_conv.4
$region0: #{double_conv.4}
  #allocation0 [shape = 'u32[]', space=smem, size = 0x4, offset = 0x4, fixed_abs, tag = 'smem constant byte address 0x4 - core index']
  #allocation1 [shape = 'u32[144,128]{1,0:T(1,128)}', space=vmem, size = 0x12000, scoped, tag = 'internal scratch']
  %s0 = inlined_call_operand.vmem [shape: f32[2,12,96,20], index: 0, kind: input, shape index: {}]
  %s1 = inlined_call_operand.vmem [shape: bf16[500,128], index: 1, kind: input, shape index: {}]
  %s2 = inlined_call_operand.vmem [shape: f32[1,128], index: 2, kind: input, shape index: {}]
  %s3 = inlined_call_operand.vmem [shape: f32[2,8,64,128], index: 3, kind: output, shape index: {0}]
  %s4 = inlined_call_operand.vmem [shape: f32[2,8,2,128], index: 4, kind: output, shape index: {1}]
  %5 = xla_tuple %s3, %s4
  %s6 = sld [smem:[#allocation0]]
  $region53: #{double_conv.4} parent=0
    _
  %s8 = ssub.s32 1, %s6
  %s9 = scalar_select 0, %s8, %s6
  loop: start=0, step=1, limit=18
  $region2: #{double_conv.4} parent=0 // loop_pre_header
    _
  $region3: #{double_conv.4} parent=0 // loop_header
    %s11 = sphi 0, %s15
    %p12 = scmp.ge.s32.totalorder %s11, 18
    %s18 = sphi 0, %s30
    %s19 = sphi 0, %s26
    %s20 = sphi 0, %s18
    %s21 = sphi 0, %s19
    %s22 = sphi 0, %s20
    %s23 = sphi 0, %s21
    %s33 = sphi 0, %s35
    %s36 = sphi 0, %s33
    %s37 = sphi 0, %s36
    %s53 = sphi 0, %s37
    %s57 = sphi 0, %s57
    %s59 = sphi 0, %s57
    %s60 = sphi 0, %s59
    %s74 = sphi 0, %s60
    %s78 = sphi 0, %s78
    %s80 = sphi 0, %s78
    %s81 = sphi 0, %s80
    %s95 = sphi 0, %s81
    %s103 = sphi 0, %s105
    %s106 = sphi 0, %s103
    %s107 = sphi 0, %s106
    %s123 = sphi 0, %s107
    %s131 = sphi 0, %s133
    %s134 = sphi 0, %s131
    %s135 = sphi 0, %s134
    %s151 = sphi 0, %s135
  $region4: #{double_conv.4} parent=0 // loop_header_branch
    %14 = sbr.rel (%p12) target = $region8
  $region5: #{double_conv.4} parent=0 // loop_body
    %s16 = ssub.s32 %s11, 1
    %s17 = ssub.s32 %s11, 2
    %s24 = sadd.s32 1, %s19
    %p25 = scmp.ge.s32.totalorder %s24, 8
    %s26 = scalar_select %p25, 0, %s24
    %s27 = sadd.s32 1, %s18
    %s28 = scalar_select %p25, %s27, %s18
    %p29 = scmp.ge.s32.totalorder %s28, 2
    %s30 = scalar_select %p29, 0, %s28
    %s31 = ssub.s32 %s18, %s30
    %p32 = scmp.eq.s32.totalorder %s31, 0
    %s34 = sadd.s32 %s33, 1
    %s35 = scalar_select %p32, %s33, %s34
    %p38 = pneg %p32
    %p39 = scmp.eq.s32.totalorder %s11, 15
    %p40 = por %p38, %p39
    %p41 = scmp.ne.s32.totalorder %s33, %s36
    %p42 = scmp.eq.s32.totalorder %s11, 0
    %p43 = por %p41, %p42
    %p44 = scmp.ne.s32.totalorder %s33, %s36
    %p45 = scmp.eq.s32.totalorder %s16, 15
    %p46 = por %p44, %p45
    %p47 = scmp.ne.s32.totalorder %s36, %s37
    %p48 = scmp.eq.s32.totalorder %s16, 0
    %p49 = por %p47, %p48
    %p50 = scmp.ne.s32.totalorder %s36, %s37
    %p51 = scmp.eq.s32.totalorder %s17, 15
    %p52 = por %p50, %p51
    %p54 = scmp.ne.s32.totalorder %s37, %s53
    %p55 = scmp.eq.s32.totalorder %s17, 0
    %p56 = por %p54, %p55
    %s58 = sadd.s32 %s57, 1
    %p61 = scmp.eq.s32.totalorder %s11, 15
    %p62 = scmp.ne.s32.totalorder %s57, %s59
    %p63 = scmp.eq.s32.totalorder %s11, 0
    %p64 = por %p62, %p63
    %p65 = scmp.ne.s32.totalorder %s57, %s59
    %p66 = scmp.eq.s32.totalorder %s16, 15
    %p67 = por %p65, %p66
    %p68 = scmp.ne.s32.totalorder %s59, %s60
    %p69 = scmp.eq.s32.totalorder %s16, 0
    %p70 = por %p68, %p69
    %p71 = scmp.ne.s32.totalorder %s59, %s60
    %p72 = scmp.eq.s32.totalorder %s17, 15
    %p73 = por %p71, %p72
    %p75 = scmp.ne.s32.totalorder %s60, %s74
    %p76 = scmp.eq.s32.totalorder %s17, 0
    %p77 = por %p75, %p76
    %s79 = sadd.s32 %s78, 1
    %p82 = scmp.eq.s32.totalorder %s11, 15
    %p83 = scmp.ne.s32.totalorder %s78, %s80
    %p84 = scmp.eq.s32.totalorder %s11, 0
    %p85 = por %p83, %p84
    %p86 = scmp.ne.s32.totalorder %s78, %s80
    %p87 = scmp.eq.s32.totalorder %s16, 15
    %p88 = por %p86, %p87
    %p89 = scmp.ne.s32.totalorder %s80, %s81
    %p90 = scmp.eq.s32.totalorder %s16, 0
    %p91 = por %p89, %p90
    %p92 = scmp.ne.s32.totalorder %s80, %s81
    %p93 = scmp.eq.s32.totalorder %s17, 15
    %p94 = por %p92, %p93
    %p96 = scmp.ne.s32.totalorder %s81, %s95
    %p97 = scmp.eq.s32.totalorder %s17, 0
    %p98 = por %p96, %p97
    %s99 = ssub.s32 %s18, %s30
    %s100 = ssub.s32 %s19, %s26
    %s101 = sor.u32 %s99, %s100
    %p102 = scmp.eq.s32.totalorder %s101, 0
    %s104 = sadd.s32 %s103, 1
    %s105 = scalar_select %p102, %s103, %s104
    %p108 = pneg %p102
    %p109 = scmp.eq.s32.totalorder %s11, 15
    %p110 = por %p108, %p109
    %p111 = scmp.ne.s32.totalorder %s103, %s106
    %p112 = scmp.eq.s32.totalorder %s11, 0
    %p113 = por %p111, %p112
    %p114 = scmp.ne.s32.totalorder %s103, %s106
    %p115 = scmp.eq.s32.totalorder %s16, 15
    %p116 = por %p114, %p115
    %p117 = scmp.ne.s32.totalorder %s106, %s107
    %p118 = scmp.eq.s32.totalorder %s16, 0
    %p119 = por %p117, %p118
    %p120 = scmp.ne.s32.totalorder %s106, %s107
    %p121 = scmp.eq.s32.totalorder %s17, 15
    %p122 = por %p120, %p121
    %p124 = scmp.ne.s32.totalorder %s107, %s123
    %p125 = scmp.eq.s32.totalorder %s17, 0
    %p126 = por %p124, %p125
    %s127 = ssub.s32 %s18, %s30
    %s128 = ssub.s32 %s19, %s26
    %s129 = sor.u32 %s127, %s128
    %p130 = scmp.eq.s32.totalorder %s129, 0
    %s132 = sadd.s32 %s131, 1
    %s133 = scalar_select %p130, %s131, %s132
    %p136 = pneg %p130
    %p137 = scmp.eq.s32.totalorder %s11, 15
    %p138 = por %p136, %p137
    %p139 = scmp.ne.s32.totalorder %s131, %s134
    %p140 = scmp.eq.s32.totalorder %s11, 0
    %p141 = por %p139, %p140
    %p142 = scmp.ne.s32.totalorder %s131, %s134
    %p143 = scmp.eq.s32.totalorder %s16, 15
    %p144 = por %p142, %p143
    %p145 = scmp.ne.s32.totalorder %s134, %s135
    %p146 = scmp.eq.s32.totalorder %s16, 0
    %p147 = por %p145, %p146
    %p148 = scmp.ne.s32.totalorder %s134, %s135
    %p149 = scmp.eq.s32.totalorder %s17, 15
    %p150 = por %p148, %p149
    %p152 = scmp.ne.s32.totalorder %s135, %s151
    %p153 = scmp.eq.s32.totalorder %s17, 0
    %p154 = por %p152, %p153
    %p155 = scmp.le.s32.totalorder 1, %s11
    %p156 = scmp.lt.s32.totalorder %s11, 17
    %p157 = pnand %p155, %p156
    %p158 = pneg %p157
    // Predicated region
    $region9: #{double_conv.4} parent=5 // pred_check
      _
    $region10: #{double_conv.4} parent=5 // pred_check_branch
      %160 = sbr.rel (%p157) target = $region12
    $region11: #{double_conv.4} parent=5 // pred_region
      %s161 = ssub.s32 %s11, 1
      // Predicated region
      $region13: #{double_conv.4} parent=11 // pred_check
        %p162 = pneg %p70
      $region14: #{double_conv.4} parent=11 // pred_check_branch
        %164 = sbr.rel (%p162) target = $region16
      $region15: #{double_conv.4} parent=11 // pred_region
        _
      $region16: #{double_conv.4} parent=11 // pred_fallthru
        _
      // Predicated region
      $region17: #{double_conv.4} parent=11 // pred_check
        %p165 = pneg %p91
      $region18: #{double_conv.4} parent=11 // pred_check_branch
        %167 = sbr.rel (%p165) target = $region20
      $region19: #{double_conv.4} parent=11 // pred_region
        _
      $region20: #{double_conv.4} parent=11 // pred_fallthru
        _
    $region12: #{double_conv.4} parent=5 // pred_fallthru
      _
    %p168 = scmp.lt.s32.totalorder %s11, 16
    // Predicated region
    $region21: #{double_conv.4} parent=5 // pred_check
      %p169 = pneg %p168
    $region22: #{double_conv.4} parent=5 // pred_check_branch
      %171 = sbr.rel (%p169) target = $region24
    $region23: #{double_conv.4} parent=5 // pred_region
      // Predicated region
      $region25: #{double_conv.4} parent=23 // pred_check
        %p172 = pneg %p43
      $region26: #{double_conv.4} parent=23 // pred_check_branch
        %174 = sbr.rel (%p172) target = $region28
      $region27: #{double_conv.4} parent=23 // pred_region
        %p175 = scmp.lt.s32.totalorder %s18, 1
        %s176 = scalar_select %p175, %s18, 1
        %s177 = smul.addr %s176, 144
        %s178 = smul.addr %s177, 8
        %s179 = scalar_lea.vmem %s0, %s178
      $region28: #{double_conv.4} parent=23 // pred_fallthru
        _
    $region24: #{double_conv.4} parent=5 // pred_fallthru
      _
    %p180 = scmp.le.s32.totalorder 1, %s11
    %p181 = scmp.lt.s32.totalorder %s11, 17
    %p182 = pnand %p180, %p181
    %p183 = pneg %p182
    // Predicated region
    $region29: #{double_conv.4} parent=5 // pred_check
      _
    $region30: #{double_conv.4} parent=5 // pred_check_branch
      %185 = sbr.rel (%p182) target = $region32
    $region31: #{double_conv.4} parent=5 // pred_region
      %s186 = ssub.s32 %s11, 1
      %p187 = scmp.lt.s32.totalorder %s20, 1
      %s188 = scalar_select %p187, %s20, 1
      %s189 = smul.addr %s188, 144
      %s190 = smul.addr %s189, 8
      %s191 = scalar_lea.vmem %s0, %s190
      %p192 = pneg %p49
      %p193 = pneg %p46
      %p194 = pneg %p70
      %p195 = pneg %p67
      %p196 = pneg %p91
      %p197 = pneg %p88
      %p198 = pneg %p119
      %p199 = pneg %p116
      %p200 = scmp.lt.s32.totalorder %s20, 1
      %s201 = scalar_select %p200, %s20, 1
      %p202 = scmp.lt.s32.totalorder %s21, 7
      %s203 = scalar_select %p202, %s21, 7
      %s204 = smul.addr %s203, 8
      %s205 = smul.addr %s201, 64
      %s206 = sadd.s32 %s204, %s205
      %s207 = smul.addr %s206, 8
      %s208 = scalar_lea.vmem %s3, %s207
      %p209 = pneg %p147
      %p210 = pneg %p144
      %p211 = scmp.lt.s32.totalorder %s20, 1
      %s212 = scalar_select %p211, %s20, 1
      %p213 = scmp.lt.s32.totalorder %s21, 7
      %s214 = scalar_select %p213, %s21, 7
      %s215 = smul.addr %s212, 8
      %s216 = sadd.s32 %s214, %s215
      %s217 = smul.addr %s216, 2
      %s218 = scalar_lea.vmem %s4, %s217
      %p219 = scmp.lt.s32.totalorder %s20, 1
      %s220 = scalar_select %p219, %s20, 1
      %s221 = smul.addr %s220, 144
      %s222 = smul.addr %s221, 8
      %s223 = scalar_lea.vmem %s0, %s222
      %p224 = scmp.lt.s32.totalorder %s20, 1
      %s225 = scalar_select %p224, %s20, 1
      %p226 = scmp.lt.s32.totalorder %s21, 7
      %s227 = scalar_select %p226, %s21, 7
      %s228 = smul.addr %s227, 8
      %s229 = smul.addr %s225, 64
      %s230 = sadd.s32 %s228, %s229
      %s231 = smul.addr %s230, 8
      %s232 = scalar_lea.vmem %s3, %s231
      %p233 = scmp.lt.s32.totalorder %s20, 1
      %s234 = scalar_select %p233, %s20, 1
      %p235 = scmp.lt.s32.totalorder %s21, 7
      %s236 = scalar_select %p235, %s21, 7
      %s237 = smul.addr %s234, 8
      %s238 = sadd.s32 %s236, %s237
      %s239 = smul.addr %s238, 2
      %s240 = scalar_lea.vmem %s4, %s239
      %s242 = smul.u32 %s21, 96
      %s243 = scalar_lea.vmem %s223, %s242
      %v244 = vld [vmem:[%s243] sm:$0xff]
      %v245 = vld [vmem:[%s243 + $0x8] sm:$0xff]
      %v246 = vld [vmem:[%s243 + $0x10] sm:$0xff]
      %v247 = vld [vmem:[%s243 + $0x18] sm:$0xff]
      %v248 = vld [vmem:[%s243 + $0x20] sm:$0xff]
      %v249 = vld [vmem:[%s243 + $0x28] sm:$0xff]
      %v250 = vld [vmem:[%s243 + $0x30] sm:$0xff]
      %v251 = vld [vmem:[%s243 + $0x38] sm:$0xff]
      %v252 = vld [vmem:[%s243 + $0x40] sm:$0xff]
      %v253 = vld [vmem:[%s243 + $0x48] sm:$0xff]
      %v254 = vld [vmem:[%s243 + $0x50] sm:$0xff]
      %v255 = vld [vmem:[%s243 + $0x58] sm:$0xff]
      %v256 = vld [vmem:[%s243 + $0x60] sm:$0xff]
      %v257 = vld [vmem:[%s243 + $0x68] sm:$0xff]
      %v258 = vld [vmem:[%s243 + $0x70] sm:$0xff]
      %v259 = vld [vmem:[%s243 + $0x78] sm:$0xff]
      %v260 = vld [vmem:[%s243 + $0x80] sm:$0xff]
      %v261 = vld [vmem:[%s243 + $0x88] sm:$0xff]
      %v262 = vld [vmem:[%s243 + $0x90] sm:$0xff]
      %v263 = vld [vmem:[%s243 + $0x98] sm:$0xff]
      %v264 = vld [vmem:[%s243 + $0xa0] sm:$0xff]
      %v265 = vld [vmem:[%s243 + $0xa8] sm:$0xff]
      %v266 = vld [vmem:[%s243 + $0xb0] sm:$0xff]
      %v267 = vld [vmem:[%s243 + $0xb8] sm:$0xff]
      %v268 = vld [vmem:[%s243 + $0xc0] sm:$0xff]
      %v269 = vld [vmem:[%s243 + $0xc8] sm:$0xff]
      %v270 = vld [vmem:[%s243 + $0xd0] sm:$0xff]
      %v271 = vld [vmem:[%s243 + $0xd8] sm:$0xff]
      %v272 = vld [vmem:[%s243 + $0xe0] sm:$0xff]
      %v273 = vld [vmem:[%s243 + $0xe8] sm:$0xff]
      %v274 = vld [vmem:[%s243 + $0xf0] sm:$0xff]
      %v275 = vld [vmem:[%s243 + $0xf8] sm:$0xff]
      %v276 = vld [vmem:[%s243 + $0x100] sm:$0xff]
      %v277 = vld [vmem:[%s243 + $0x108] sm:$0xff]
      %v278 = vld [vmem:[%s243 + $0x110] sm:$0xff]
      %v279 = vld [vmem:[%s243 + $0x118] sm:$0xff]
      %v280 = vld [vmem:[%s243 + $0x120] sm:$0xff]
      %v281 = vld [vmem:[%s243 + $0x128] sm:$0xff]
      %v282 = vld [vmem:[%s243 + $0x130] sm:$0xff]
      %v283 = vld [vmem:[%s243 + $0x138] sm:$0xff]
      %v284 = vld [vmem:[%s243 + $0x140] sm:$0xff]
      %v285 = vld [vmem:[%s243 + $0x148] sm:$0xff]
      %v286 = vld [vmem:[%s243 + $0x150] sm:$0xff]
      %v287 = vld [vmem:[%s243 + $0x158] sm:$0xff]
      %v288 = vld [vmem:[%s243 + $0x160] sm:$0xff]
      %v289 = vld [vmem:[%s243 + $0x168] sm:$0xff]
      %v290 = vld [vmem:[%s243 + $0x170] sm:$0xff]
      %v291 = vld [vmem:[%s243 + $0x178] sm:$0xff]
      %v292 = vld [vmem:[%s243 + $0x180] sm:$0xff]
      %v293 = vld [vmem:[%s243 + $0x188] sm:$0xff]
      %v294 = vld [vmem:[%s243 + $0x190] sm:$0xff]
      %v295 = vld [vmem:[%s243 + $0x198] sm:$0xff]
      %v296 = vld [vmem:[%s243 + $0x1a0] sm:$0xff]
      %v297 = vld [vmem:[%s243 + $0x1a8] sm:$0xff]
      %v298 = vld [vmem:[%s243 + $0x1b0] sm:$0xff]
      %v299 = vld [vmem:[%s243 + $0x1b8] sm:$0xff]
      %v300 = vld [vmem:[%s243 + $0x1c0] sm:$0xff]
      %v301 = vld [vmem:[%s243 + $0x1c8] sm:$0xff]
      %v302 = vld [vmem:[%s243 + $0x1d0] sm:$0xff]
      %v303 = vld [vmem:[%s243 + $0x1d8] sm:$0xff]
      %312 = vrot.lane.b32.xlu0 %v245, 20
      %v313 = vpop.permute.xlu0 %312
      %314 = vrot.lane.b32.xlu0 %v246, 20
      %v315 = vpop.permute.xlu0 %314
      %316 = vrot.lane.b32.xlu0 %v247, 20
      %v317 = vpop.permute.xlu0 %316
      %318 = vrot.lane.b32.xlu0 %v248, 20
      %v319 = vpop.permute.xlu0 %318
      %320 = vrot.lane.b32.xlu0 %v249, 20
      %v321 = vpop.permute.xlu0 %320
      %322 = vrot.lane.b32.xlu0 %v250, 20
      %v323 = vpop.permute.xlu0 %322
      %324 = vrot.lane.b32.xlu0 %v251, 20
      %v325 = vpop.permute.xlu0 %324
      %326 = vrot.lane.b32.xlu0 %v252, 20
      %v327 = vpop.permute.xlu0 %326
      %337 = vrot.lane.b32.xlu0 %v246, 40
      %v338 = vpop.permute.xlu0 %337
      %339 = vrot.lane.b32.xlu0 %v247, 40
      %v340 = vpop.permute.xlu0 %339
      %341 = vrot.lane.b32.xlu0 %v248, 40
      %v342 = vpop.permute.xlu0 %341
      %343 = vrot.lane.b32.xlu0 %v249, 40
      %v344 = vpop.permute.xlu0 %343
      %345 = vrot.lane.b32.xlu0 %v250, 40
      %v346 = vpop.permute.xlu0 %345
      %347 = vrot.lane.b32.xlu0 %v251, 40
      %v348 = vpop.permute.xlu0 %347
      %349 = vrot.lane.b32.xlu0 %v252, 40
      %v350 = vpop.permute.xlu0 %349
      %351 = vrot.lane.b32.xlu0 %v253, 40
      %v352 = vpop.permute.xlu0 %351
      %362 = vrot.lane.b32.xlu0 %v247, 60
      %v363 = vpop.permute.xlu0 %362
      %364 = vrot.lane.b32.xlu0 %v248, 60
      %v365 = vpop.permute.xlu0 %364
      %366 = vrot.lane.b32.xlu0 %v249, 60
      %v367 = vpop.permute.xlu0 %366
      %368 = vrot.lane.b32.xlu0 %v250, 60
      %v369 = vpop.permute.xlu0 %368
      %370 = vrot.lane.b32.xlu0 %v251, 60
      %v371 = vpop.permute.xlu0 %370
      %372 = vrot.lane.b32.xlu0 %v252, 60
      %v373 = vpop.permute.xlu0 %372
      %374 = vrot.lane.b32.xlu0 %v253, 60
      %v375 = vpop.permute.xlu0 %374
      %376 = vrot.lane.b32.xlu0 %v254, 60
      %v377 = vpop.permute.xlu0 %376
      %387 = vrot.lane.b32.xlu0 %v248, 80
      %v388 = vpop.permute.xlu0 %387
      %389 = vrot.lane.b32.xlu0 %v249, 80
      %v390 = vpop.permute.xlu0 %389
      %391 = vrot.lane.b32.xlu0 %v250, 80
      %v392 = vpop.permute.xlu0 %391
      %393 = vrot.lane.b32.xlu0 %v251, 80
      %v394 = vpop.permute.xlu0 %393
      %395 = vrot.lane.b32.xlu0 %v252, 80
      %v396 = vpop.permute.xlu0 %395
      %397 = vrot.lane.b32.xlu0 %v253, 80
      %v398 = vpop.permute.xlu0 %397
      %399 = vrot.lane.b32.xlu0 %v254, 80
      %v400 = vpop.permute.xlu0 %399
      %401 = vrot.lane.b32.xlu0 %v255, 80
      %v402 = vpop.permute.xlu0 %401
      %419 = vrot.lane.b32.xlu0 %v256, 100
      %v420 = vpop.permute.xlu0 %419
      %421 = vrot.lane.b32.xlu0 %v257, 100
      %v422 = vpop.permute.xlu0 %421
      %423 = vrot.lane.b32.xlu0 %v258, 100
      %v424 = vpop.permute.xlu0 %423
      %425 = vrot.lane.b32.xlu0 %v259, 100
      %v426 = vpop.permute.xlu0 %425
      %427 = vrot.lane.b32.xlu0 %v260, 100
      %v428 = vpop.permute.xlu0 %427
      %429 = vrot.lane.b32.xlu0 %v261, 100
      %v430 = vpop.permute.xlu0 %429
      %431 = vrot.lane.b32.xlu0 %v262, 100
      %v432 = vpop.permute.xlu0 %431
      %433 = vrot.lane.b32.xlu0 %v263, 100
      %v434 = vpop.permute.xlu0 %433
      %444 = vrot.lane.b32.xlu0 %v257, 120
      %v445 = vpop.permute.xlu0 %444
      %446 = vrot.lane.b32.xlu0 %v258, 120
      %v447 = vpop.permute.xlu0 %446
      %448 = vrot.lane.b32.xlu0 %v259, 120
      %v449 = vpop.permute.xlu0 %448
      %450 = vrot.lane.b32.xlu0 %v260, 120
      %v451 = vpop.permute.xlu0 %450
      %452 = vrot.lane.b32.xlu0 %v261, 120
      %v453 = vpop.permute.xlu0 %452
      %454 = vrot.lane.b32.xlu0 %v262, 120
      %v455 = vpop.permute.xlu0 %454
      %456 = vrot.lane.b32.xlu0 %v263, 120
      %v457 = vpop.permute.xlu0 %456
      %458 = vrot.lane.b32.xlu0 %v264, 120
      %v459 = vpop.permute.xlu0 %458
      %469 = vrot.lane.b32.xlu0 %v258, 12
      %v470 = vpop.permute.xlu0 %469
      %471 = vrot.lane.b32.xlu0 %v259, 12
      %v472 = vpop.permute.xlu0 %471
      %473 = vrot.lane.b32.xlu0 %v260, 12
      %v474 = vpop.permute.xlu0 %473
      %475 = vrot.lane.b32.xlu0 %v261, 12
      %v476 = vpop.permute.xlu0 %475
      %477 = vrot.lane.b32.xlu0 %v262, 12
      %v478 = vpop.permute.xlu0 %477
      %479 = vrot.lane.b32.xlu0 %v263, 12
      %v480 = vpop.permute.xlu0 %479
      %481 = vrot.lane.b32.xlu0 %v264, 12
      %v482 = vpop.permute.xlu0 %481
      %483 = vrot.lane.b32.xlu0 %v265, 12
      %v484 = vpop.permute.xlu0 %483
      %494 = vrot.lane.b32.xlu0 %v259, 32
      %v495 = vpop.permute.xlu0 %494
      %496 = vrot.lane.b32.xlu0 %v260, 32
      %v497 = vpop.permute.xlu0 %496
      %498 = vrot.lane.b32.xlu0 %v261, 32
      %v499 = vpop.permute.xlu0 %498
      %500 = vrot.lane.b32.xlu0 %v262, 32
      %v501 = vpop.permute.xlu0 %500
      %502 = vrot.lane.b32.xlu0 %v263, 32
      %v503 = vpop.permute.xlu0 %502
      %504 = vrot.lane.b32.xlu0 %v264, 32
      %v505 = vpop.permute.xlu0 %504
      %506 = vrot.lane.b32.xlu0 %v265, 32
      %v507 = vpop.permute.xlu0 %506
      %508 = vrot.lane.b32.xlu0 %v266, 32
      %v509 = vpop.permute.xlu0 %508
      %519 = vrot.lane.b32.xlu0 %v260, 52
      %v520 = vpop.permute.xlu0 %519
      %521 = vrot.lane.b32.xlu0 %v261, 52
      %v522 = vpop.permute.xlu0 %521
      %523 = vrot.lane.b32.xlu0 %v262, 52
      %v524 = vpop.permute.xlu0 %523
      %525 = vrot.lane.b32.xlu0 %v263, 52
      %v526 = vpop.permute.xlu0 %525
      %527 = vrot.lane.b32.xlu0 %v264, 52
      %v528 = vpop.permute.xlu0 %527
      %529 = vrot.lane.b32.xlu0 %v265, 52
      %v530 = vpop.permute.xlu0 %529
      %531 = vrot.lane.b32.xlu0 %v266, 52
      %v532 = vpop.permute.xlu0 %531
      %533 = vrot.lane.b32.xlu0 %v267, 52
      %v534 = vpop.permute.xlu0 %533
      %551 = vrot.lane.b32.xlu0 %v268, 72
      %v552 = vpop.permute.xlu0 %551
      %553 = vrot.lane.b32.xlu0 %v269, 72
      %v554 = vpop.permute.xlu0 %553
      %555 = vrot.lane.b32.xlu0 %v270, 72
      %v556 = vpop.permute.xlu0 %555
      %557 = vrot.lane.b32.xlu0 %v271, 72
      %v558 = vpop.permute.xlu0 %557
      %559 = vrot.lane.b32.xlu0 %v272, 72
      %v560 = vpop.permute.xlu0 %559
      %561 = vrot.lane.b32.xlu0 %v273, 72
      %v562 = vpop.permute.xlu0 %561
      %563 = vrot.lane.b32.xlu0 %v274, 72
      %v564 = vpop.permute.xlu0 %563
      %565 = vrot.lane.b32.xlu0 %v275, 72
      %v566 = vpop.permute.xlu0 %565
      %576 = vrot.lane.b32.xlu0 %v269, 92
      %v577 = vpop.permute.xlu0 %576
      %578 = vrot.lane.b32.xlu0 %v270, 92
      %v579 = vpop.permute.xlu0 %578
      %580 = vrot.lane.b32.xlu0 %v271, 92
      %v581 = vpop.permute.xlu0 %580
      %582 = vrot.lane.b32.xlu0 %v272, 92
      %v583 = vpop.permute.xlu0 %582
      %584 = vrot.lane.b32.xlu0 %v273, 92
      %v585 = vpop.permute.xlu0 %584
      %586 = vrot.lane.b32.xlu0 %v274, 92
      %v587 = vpop.permute.xlu0 %586
      %588 = vrot.lane.b32.xlu0 %v275, 92
      %v589 = vpop.permute.xlu0 %588
      %590 = vrot.lane.b32.xlu0 %v276, 92
      %v591 = vpop.permute.xlu0 %590
      %601 = vrot.lane.b32.xlu0 %v270, 112
      %v602 = vpop.permute.xlu0 %601
      %603 = vrot.lane.b32.xlu0 %v271, 112
      %v604 = vpop.permute.xlu0 %603
      %605 = vrot.lane.b32.xlu0 %v272, 112
      %v606 = vpop.permute.xlu0 %605
      %607 = vrot.lane.b32.xlu0 %v273, 112
      %v608 = vpop.permute.xlu0 %607
      %609 = vrot.lane.b32.xlu0 %v274, 112
      %v610 = vpop.permute.xlu0 %609
      %611 = vrot.lane.b32.xlu0 %v275, 112
      %v612 = vpop.permute.xlu0 %611
      %613 = vrot.lane.b32.xlu0 %v276, 112
      %v614 = vpop.permute.xlu0 %613
      %615 = vrot.lane.b32.xlu0 %v277, 112
      %v616 = vpop.permute.xlu0 %615
      %626 = vrot.lane.b32.xlu0 %v271, 4
      %v627 = vpop.permute.xlu0 %626
      %628 = vrot.lane.b32.xlu0 %v272, 4
      %v629 = vpop.permute.xlu0 %628
      %630 = vrot.lane.b32.xlu0 %v273, 4
      %v631 = vpop.permute.xlu0 %630
      %632 = vrot.lane.b32.xlu0 %v274, 4
      %v633 = vpop.permute.xlu0 %632
      %634 = vrot.lane.b32.xlu0 %v275, 4
      %v635 = vpop.permute.xlu0 %634
      %636 = vrot.lane.b32.xlu0 %v276, 4
      %v637 = vpop.permute.xlu0 %636
      %638 = vrot.lane.b32.xlu0 %v277, 4
      %v639 = vpop.permute.xlu0 %638
      %640 = vrot.lane.b32.xlu0 %v278, 4
      %v641 = vpop.permute.xlu0 %640
      %651 = vrot.lane.b32.xlu0 %v272, 24
      %v652 = vpop.permute.xlu0 %651
      %653 = vrot.lane.b32.xlu0 %v273, 24
      %v654 = vpop.permute.xlu0 %653
      %655 = vrot.lane.b32.xlu0 %v274, 24
      %v656 = vpop.permute.xlu0 %655
      %657 = vrot.lane.b32.xlu0 %v275, 24
      %v658 = vpop.permute.xlu0 %657
      %659 = vrot.lane.b32.xlu0 %v276, 24
      %v660 = vpop.permute.xlu0 %659
      %661 = vrot.lane.b32.xlu0 %v277, 24
      %v662 = vpop.permute.xlu0 %661
      %663 = vrot.lane.b32.xlu0 %v278, 24
      %v664 = vpop.permute.xlu0 %663
      %665 = vrot.lane.b32.xlu0 %v279, 24
      %v666 = vpop.permute.xlu0 %665
      %683 = vrot.lane.b32.xlu0 %v280, 44
      %v684 = vpop.permute.xlu0 %683
      %685 = vrot.lane.b32.xlu0 %v281, 44
      %v686 = vpop.permute.xlu0 %685
      %687 = vrot.lane.b32.xlu0 %v282, 44
      %v688 = vpop.permute.xlu0 %687
      %689 = vrot.lane.b32.xlu0 %v283, 44
      %v690 = vpop.permute.xlu0 %689
      %691 = vrot.lane.b32.xlu0 %v284, 44
      %v692 = vpop.permute.xlu0 %691
      %693 = vrot.lane.b32.xlu0 %v285, 44
      %v694 = vpop.permute.xlu0 %693
      %695 = vrot.lane.b32.xlu0 %v286, 44
      %v696 = vpop.permute.xlu0 %695
      %697 = vrot.lane.b32.xlu0 %v287, 44
      %v698 = vpop.permute.xlu0 %697
      %vm707 = vcmask 162816
      %v708 = vsel %vm707, %v244, %v313
      %v709 = vsel %vm707, %v245, %v315
      %v710 = vsel %vm707, %v246, %v317
      %v711 = vsel %vm707, %v247, %v319
      %v712 = vsel %vm707, %v248, %v321
      %v713 = vsel %vm707, %v249, %v323
      %v714 = vsel %vm707, %v250, %v325
      %v715 = vsel %vm707, %v251, %v327
      %vm716 = vcmask 326656
      %v717 = vsel %vm716, %v708, %v338
      %v718 = vsel %vm716, %v709, %v340
      %v719 = vsel %vm716, %v710, %v342
      %v720 = vsel %vm716, %v711, %v344
      %v721 = vsel %vm716, %v712, %v346
      %v722 = vsel %vm716, %v713, %v348
      %v723 = vsel %vm716, %v714, %v350
      %v724 = vsel %vm716, %v715, %v352
      %vm725 = vcmask 490496
      %v726 = vsel %vm725, %v717, %v363
      %v727 = vsel %vm725, %v718, %v365
      %v728 = vsel %vm725, %v719, %v367
      %v729 = vsel %vm725, %v720, %v369
      %v730 = vsel %vm725, %v721, %v371
      %v731 = vsel %vm725, %v722, %v373
      %v732 = vsel %vm725, %v723, %v375
      %v733 = vsel %vm725, %v724, %v377
      %vm734 = vcmask 654336
      %v735 = vsel %vm734, %v726, %v388
      %v736 = vsel %vm734, %v727, %v390
      %v737 = vsel %vm734, %v728, %v392
      %v738 = vsel %vm734, %v729, %v394
      %v739 = vsel %vm734, %v730, %v396
      %v740 = vsel %vm734, %v731, %v398
      %v741 = vsel %vm734, %v732, %v400
      %v742 = vsel %vm734, %v733, %v402
      %vm743 = vcmask 818176
      %v744 = vsel %vm743, %v735, %v420
      %v745 = vsel %vm743, %v736, %v422
      %v746 = vsel %vm743, %v737, %v424
      %v747 = vsel %vm743, %v738, %v426
      %v748 = vsel %vm743, %v739, %v428
      %v749 = vsel %vm743, %v740, %v430
      %v750 = vsel %vm743, %v741, %v432
      %v751 = vsel %vm743, %v742, %v434
      %vm752 = vcmask 982016
      %v753 = vsel %vm752, %v744, %v445
      %v754 = vsel %vm752, %v745, %v447
      %v755 = vsel %vm752, %v746, %v449
      %v756 = vsel %vm752, %v747, %v451
      %v757 = vsel %vm752, %v748, %v453
      %v758 = vsel %vm752, %v749, %v455
      %v759 = vsel %vm752, %v750, %v457
      %v760 = vsel %vm752, %v751, %v459
      %vm761 = vcmask 97280
      %v762 = vsel %vm761, %v445, %v470
      %v763 = vsel %vm761, %v447, %v472
      %v764 = vsel %vm761, %v449, %v474
      %v765 = vsel %vm761, %v451, %v476
      %v766 = vsel %vm761, %v453, %v478
      %v767 = vsel %vm761, %v455, %v480
      %v768 = vsel %vm761, %v457, %v482
      %v769 = vsel %vm761, %v459, %v484
      %vm770 = vcmask 261120
      %v771 = vsel %vm770, %v762, %v495
      %v772 = vsel %vm770, %v763, %v497
      %v773 = vsel %vm770, %v764, %v499
      %v774 = vsel %vm770, %v765, %v501
      %v775 = vsel %vm770, %v766, %v503
      %v776 = vsel %vm770, %v767, %v505
      %v777 = vsel %vm770, %v768, %v507
      %v778 = vsel %vm770, %v769, %v509
      %vm779 = vcmask 424960
      %v780 = vsel %vm779, %v771, %v520
      %v781 = vsel %vm779, %v772, %v522
      %v782 = vsel %vm779, %v773, %v524
      %v783 = vsel %vm779, %v774, %v526
      %v784 = vsel %vm779, %v775, %v528
      %v785 = vsel %vm779, %v776, %v530
      %v786 = vsel %vm779, %v777, %v532
      %v787 = vsel %vm779, %v778, %v534
      %vm788 = vcmask 588800
      %v789 = vsel %vm788, %v780, %v552
      %v790 = vsel %vm788, %v781, %v554
      %v791 = vsel %vm788, %v782, %v556
      %v792 = vsel %vm788, %v783, %v558
      %v793 = vsel %vm788, %v784, %v560
      %v794 = vsel %vm788, %v785, %v562
      %v795 = vsel %vm788, %v786, %v564
      %v796 = vsel %vm788, %v787, %v566
      %vm797 = vcmask 752640
      %v798 = vsel %vm797, %v789, %v577
      %v799 = vsel %vm797, %v790, %v579
      %v800 = vsel %vm797, %v791, %v581
      %v801 = vsel %vm797, %v792, %v583
      %v802 = vsel %vm797, %v793, %v585
      %v803 = vsel %vm797, %v794, %v587
      %v804 = vsel %vm797, %v795, %v589
      %v805 = vsel %vm797, %v796, %v591
      %vm806 = vcmask 916480
      %v807 = vsel %vm806, %v798, %v602
      %v808 = vsel %vm806, %v799, %v604
      %v809 = vsel %vm806, %v800, %v606
      %v810 = vsel %vm806, %v801, %v608
      %v811 = vsel %vm806, %v802, %v610
      %v812 = vsel %vm806, %v803, %v612
      %v813 = vsel %vm806, %v804, %v614
      %v814 = vsel %vm806, %v805, %v616
      %vm815 = vcmask 31744
      %v816 = vsel %vm815, %v602, %v627
      %v817 = vsel %vm815, %v604, %v629
      %v818 = vsel %vm815, %v606, %v631
      %v819 = vsel %vm815, %v608, %v633
      %v820 = vsel %vm815, %v610, %v635
      %v821 = vsel %vm815, %v612, %v637
      %v822 = vsel %vm815, %v614, %v639
      %v823 = vsel %vm815, %v616, %v641
      %vm824 = vcmask 195584
      %v825 = vsel %vm824, %v816, %v652
      %v826 = vsel %vm824, %v817, %v654
      %v827 = vsel %vm824, %v818, %v656
      %v828 = vsel %vm824, %v819, %v658
      %v829 = vsel %vm824, %v820, %v660
      %v830 = vsel %vm824, %v821, %v662
      %v831 = vsel %vm824, %v822, %v664
      %v832 = vsel %vm824, %v823, %v666
      %vm833 = vcmask 359424
      %v834 = vsel %vm833, %v825, %v684
      %v835 = vsel %vm833, %v826, %v686
      %v836 = vsel %vm833, %v827, %v688
      %v837 = vsel %vm833, %v828, %v690
      %v838 = vsel %vm833, %v829, %v692
      %v839 = vsel %vm833, %v830, %v694
      %v840 = vsel %vm833, %v831, %v696
      %v841 = vsel %vm833, %v832, %v698
      %844 = vrot.lane.b32.xlu0 %v282, 20
      %v845 = vpop.permute.xlu0 %844
      %846 = vrot.lane.b32.xlu0 %v283, 20
      %v847 = vpop.permute.xlu0 %846
      %848 = vrot.lane.b32.xlu0 %v284, 20
      %v849 = vpop.permute.xlu0 %848
      %850 = vrot.lane.b32.xlu0 %v285, 20
      %v851 = vpop.permute.xlu0 %850
      %852 = vrot.lane.b32.xlu0 %v286, 20
      %v853 = vpop.permute.xlu0 %852
      %854 = vrot.lane.b32.xlu0 %v287, 20
      %v855 = vpop.permute.xlu0 %854
      %856 = vrot.lane.b32.xlu0 %v288, 20
      %v857 = vpop.permute.xlu0 %856
      %858 = vrot.lane.b32.xlu0 %v289, 20
      %v859 = vpop.permute.xlu0 %858
      %869 = vrot.lane.b32.xlu0 %v283, 40
      %v870 = vpop.permute.xlu0 %869
      %871 = vrot.lane.b32.xlu0 %v284, 40
      %v872 = vpop.permute.xlu0 %871
      %873 = vrot.lane.b32.xlu0 %v285, 40
      %v874 = vpop.permute.xlu0 %873
      %875 = vrot.lane.b32.xlu0 %v286, 40
      %v876 = vpop.permute.xlu0 %875
      %877 = vrot.lane.b32.xlu0 %v287, 40
      %v878 = vpop.permute.xlu0 %877
      %879 = vrot.lane.b32.xlu0 %v288, 40
      %v880 = vpop.permute.xlu0 %879
      %881 = vrot.lane.b32.xlu0 %v289, 40
      %v882 = vpop.permute.xlu0 %881
      %883 = vrot.lane.b32.xlu0 %v290, 40
      %v884 = vpop.permute.xlu0 %883
      %894 = vrot.lane.b32.xlu0 %v284, 60
      %v895 = vpop.permute.xlu0 %894
      %896 = vrot.lane.b32.xlu0 %v285, 60
      %v897 = vpop.permute.xlu0 %896
      %898 = vrot.lane.b32.xlu0 %v286, 60
      %v899 = vpop.permute.xlu0 %898
      %900 = vrot.lane.b32.xlu0 %v287, 60
      %v901 = vpop.permute.xlu0 %900
      %902 = vrot.lane.b32.xlu0 %v288, 60
      %v903 = vpop.permute.xlu0 %902
      %904 = vrot.lane.b32.xlu0 %v289, 60
      %v905 = vpop.permute.xlu0 %904
      %906 = vrot.lane.b32.xlu0 %v290, 60
      %v907 = vpop.permute.xlu0 %906
      %908 = vrot.lane.b32.xlu0 %v291, 60
      %v909 = vpop.permute.xlu0 %908
      %926 = vrot.lane.b32.xlu0 %v292, 80
      %v927 = vpop.permute.xlu0 %926
      %928 = vrot.lane.b32.xlu0 %v293, 80
      %v929 = vpop.permute.xlu0 %928
      %930 = vrot.lane.b32.xlu0 %v294, 80
      %v931 = vpop.permute.xlu0 %930
      %932 = vrot.lane.b32.xlu0 %v295, 80
      %v933 = vpop.permute.xlu0 %932
      %934 = vrot.lane.b32.xlu0 %v296, 80
      %v935 = vpop.permute.xlu0 %934
      %936 = vrot.lane.b32.xlu0 %v297, 80
      %v937 = vpop.permute.xlu0 %936
      %938 = vrot.lane.b32.xlu0 %v298, 80
      %v939 = vpop.permute.xlu0 %938
      %940 = vrot.lane.b32.xlu0 %v299, 80
      %v941 = vpop.permute.xlu0 %940
      %951 = vrot.lane.b32.xlu0 %v293, 100
      %v952 = vpop.permute.xlu0 %951
      %953 = vrot.lane.b32.xlu0 %v294, 100
      %v954 = vpop.permute.xlu0 %953
      %955 = vrot.lane.b32.xlu0 %v295, 100
      %v956 = vpop.permute.xlu0 %955
      %957 = vrot.lane.b32.xlu0 %v296, 100
      %v958 = vpop.permute.xlu0 %957
      %959 = vrot.lane.b32.xlu0 %v297, 100
      %v960 = vpop.permute.xlu0 %959
      %961 = vrot.lane.b32.xlu0 %v298, 100
      %v962 = vpop.permute.xlu0 %961
      %963 = vrot.lane.b32.xlu0 %v299, 100
      %v964 = vpop.permute.xlu0 %963
      %965 = vrot.lane.b32.xlu0 %v300, 100
      %v966 = vpop.permute.xlu0 %965
      %976 = vrot.lane.b32.xlu0 %v294, 120
      %v977 = vpop.permute.xlu0 %976
      %978 = vrot.lane.b32.xlu0 %v295, 120
      %v979 = vpop.permute.xlu0 %978
      %980 = vrot.lane.b32.xlu0 %v296, 120
      %v981 = vpop.permute.xlu0 %980
      %982 = vrot.lane.b32.xlu0 %v297, 120
      %v983 = vpop.permute.xlu0 %982
      %984 = vrot.lane.b32.xlu0 %v298, 120
      %v985 = vpop.permute.xlu0 %984
      %986 = vrot.lane.b32.xlu0 %v299, 120
      %v987 = vpop.permute.xlu0 %986
      %988 = vrot.lane.b32.xlu0 %v300, 120
      %v989 = vpop.permute.xlu0 %988
      %990 = vrot.lane.b32.xlu0 %v301, 120
      %v991 = vpop.permute.xlu0 %990
      %1001 = vrot.lane.b32.xlu0 %v295, 12
      %v1002 = vpop.permute.xlu0 %1001
      %1003 = vrot.lane.b32.xlu0 %v296, 12
      %v1004 = vpop.permute.xlu0 %1003
      %1005 = vrot.lane.b32.xlu0 %v297, 12
      %v1006 = vpop.permute.xlu0 %1005
      %1007 = vrot.lane.b32.xlu0 %v298, 12
      %v1008 = vpop.permute.xlu0 %1007
      %1009 = vrot.lane.b32.xlu0 %v299, 12
      %v1010 = vpop.permute.xlu0 %1009
      %1011 = vrot.lane.b32.xlu0 %v300, 12
      %v1012 = vpop.permute.xlu0 %1011
      %1013 = vrot.lane.b32.xlu0 %v301, 12
      %v1014 = vpop.permute.xlu0 %1013
      %1015 = vrot.lane.b32.xlu0 %v302, 12
      %v1016 = vpop.permute.xlu0 %1015
      %1026 = vrot.lane.b32.xlu0 %v296, 32
      %v1027 = vpop.permute.xlu0 %1026
      %1028 = vrot.lane.b32.xlu0 %v297, 32
      %v1029 = vpop.permute.xlu0 %1028
      %1030 = vrot.lane.b32.xlu0 %v298, 32
      %v1031 = vpop.permute.xlu0 %1030
      %1032 = vrot.lane.b32.xlu0 %v299, 32
      %v1033 = vpop.permute.xlu0 %1032
      %1034 = vrot.lane.b32.xlu0 %v300, 32
      %v1035 = vpop.permute.xlu0 %1034
      %1036 = vrot.lane.b32.xlu0 %v301, 32
      %v1037 = vpop.permute.xlu0 %1036
      %1038 = vrot.lane.b32.xlu0 %v302, 32
      %v1039 = vpop.permute.xlu0 %1038
      %1040 = vrot.lane.b32.xlu0 %v303, 32
      %v1041 = vpop.permute.xlu0 %1040
      %v1050 = vsel %vm707, %v281, %v845
      %v1051 = vsel %vm707, %v282, %v847
      %v1052 = vsel %vm707, %v283, %v849
      %v1053 = vsel %vm707, %v284, %v851
      %v1054 = vsel %vm707, %v285, %v853
      %v1055 = vsel %vm707, %v286, %v855
      %v1056 = vsel %vm707, %v287, %v857
      %v1057 = vsel %vm707, %v288, %v859
      %v1058 = vsel %vm716, %v1050, %v870
      %v1059 = vsel %vm716, %v1051, %v872
      %v1060 = vsel %vm716, %v1052, %v874
      %v1061 = vsel %vm716, %v1053, %v876
      %v1062 = vsel %vm716, %v1054, %v878
      %v1063 = vsel %vm716, %v1055, %v880
      %v1064 = vsel %vm716, %v1056, %v882
      %v1065 = vsel %vm716, %v1057, %v884
      %v1066 = vsel %vm725, %v1058, %v895
      %v1067 = vsel %vm725, %v1059, %v897
      %v1068 = vsel %vm725, %v1060, %v899
      %v1069 = vsel %vm725, %v1061, %v901
      %v1070 = vsel %vm725, %v1062, %v903
      %v1071 = vsel %vm725, %v1063, %v905
      %v1072 = vsel %vm725, %v1064, %v907
      %v1073 = vsel %vm725, %v1065, %v909
      %v1074 = vsel %vm734, %v1066, %v927
      %v1075 = vsel %vm734, %v1067, %v929
      %v1076 = vsel %vm734, %v1068, %v931
      %v1077 = vsel %vm734, %v1069, %v933
      %v1078 = vsel %vm734, %v1070, %v935
      %v1079 = vsel %vm734, %v1071, %v937
      %v1080 = vsel %vm734, %v1072, %v939
      %v1081 = vsel %vm734, %v1073, %v941
      %v1082 = vsel %vm743, %v1074, %v952
      %v1083 = vsel %vm743, %v1075, %v954
      %v1084 = vsel %vm743, %v1076, %v956
      %v1085 = vsel %vm743, %v1077, %v958
      %v1086 = vsel %vm743, %v1078, %v960
      %v1087 = vsel %vm743, %v1079, %v962
      %v1088 = vsel %vm743, %v1080, %v964
      %v1089 = vsel %vm743, %v1081, %v966
      %v1090 = vsel %vm752, %v1082, %v977
      %v1091 = vsel %vm752, %v1083, %v979
      %v1092 = vsel %vm752, %v1084, %v981
      %v1093 = vsel %vm752, %v1085, %v983
      %v1094 = vsel %vm752, %v1086, %v985
      %v1095 = vsel %vm752, %v1087, %v987
      %v1096 = vsel %vm752, %v1088, %v989
      %v1097 = vsel %vm752, %v1089, %v991
      %v1098 = vsel %vm761, %v977, %v1002
      %v1099 = vsel %vm761, %v979, %v1004
      %v1100 = vsel %vm761, %v981, %v1006
      %v1101 = vsel %vm761, %v983, %v1008
      %v1102 = vsel %vm761, %v985, %v1010
      %v1103 = vsel %vm761, %v987, %v1012
      %v1104 = vsel %vm761, %v989, %v1014
      %v1105 = vsel %vm761, %v991, %v1016
      %v1106 = vsel %vm770, %v1098, %v1027
      %v1107 = vsel %vm770, %v1099, %v1029
      %v1108 = vsel %vm770, %v1100, %v1031
      %v1109 = vsel %vm770, %v1101, %v1033
      %v1110 = vsel %vm770, %v1102, %v1035
      %v1111 = vsel %vm770, %v1103, %v1037
      %v1112 = vsel %vm770, %v1104, %v1039
      %v1113 = vsel %vm770, %v1105, %v1041
      %1130 = vrot.lane.b32.xlu0 %v1090, 64
      %v1131 = vpop.permute.xlu0 %1130
      %1132 = vrot.lane.b32.xlu0 %v1106, 64
      %v1133 = vpop.permute.xlu0 %1132
      %1134 = vrot.lane.b32.xlu0 %v1091, 64
      %v1135 = vpop.permute.xlu0 %1134
      %1136 = vrot.lane.b32.xlu0 %v1107, 64
      %v1137 = vpop.permute.xlu0 %1136
      %1138 = vrot.lane.b32.xlu0 %v1092, 64
      %v1139 = vpop.permute.xlu0 %1138
      %1140 = vrot.lane.b32.xlu0 %v1108, 64
      %v1141 = vpop.permute.xlu0 %1140
      %1142 = vrot.lane.b32.xlu0 %v1093, 64
      %v1143 = vpop.permute.xlu0 %1142
      %1144 = vrot.lane.b32.xlu0 %v1109, 64
      %v1145 = vpop.permute.xlu0 %1144
      %1146 = vrot.lane.b32.xlu0 %v1094, 64
      %v1147 = vpop.permute.xlu0 %1146
      %1148 = vrot.lane.b32.xlu0 %v1110, 64
      %v1149 = vpop.permute.xlu0 %1148
      %1150 = vrot.lane.b32.xlu0 %v1095, 64
      %v1151 = vpop.permute.xlu0 %1150
      %1152 = vrot.lane.b32.xlu0 %v1111, 64
      %v1153 = vpop.permute.xlu0 %1152
      %1154 = vrot.lane.b32.xlu0 %v1096, 64
      %v1155 = vpop.permute.xlu0 %1154
      %1156 = vrot.lane.b32.xlu0 %v1112, 64
      %v1157 = vpop.permute.xlu0 %1156
      %1158 = vrot.lane.b32.xlu0 %v1097, 64
      %v1159 = vpop.permute.xlu0 %1158
      %1160 = vrot.lane.b32.xlu0 %v1113, 64
      %v1161 = vpop.permute.xlu0 %1160
      %vm1162 = vcmask 523264
      %v1163 = vsel %vm1162, %v1131, %v1133
      %v1164 = vsel %vm1162, %v1135, %v1137
      %v1165 = vsel %vm1162, %v1139, %v1141
      %v1166 = vsel %vm1162, %v1143, %v1145
      %v1167 = vsel %vm1162, %v1147, %v1149
      %v1168 = vsel %vm1162, %v1151, %v1153
      %v1169 = vsel %vm1162, %v1155, %v1157
      %v1170 = vsel %vm1162, %v1159, %v1161
      %v1187 = vsel %vm1162, %v834, %v1131
      %v1188 = vsel %vm1162, %v835, %v1135
      %v1189 = vsel %vm1162, %v836, %v1139
      %v1190 = vsel %vm1162, %v837, %v1143
      %v1191 = vsel %vm1162, %v838, %v1147
      %v1192 = vsel %vm1162, %v839, %v1151
      %v1193 = vsel %vm1162, %v840, %v1155
      %v1194 = vsel %vm1162, %v841, %v1159
      %v1195 = vpack.c.bf16 %v754, %v753
      %v1196 = vpack.c.bf16 %v808, %v807
      %v1197 = vpack.c.bf16 %v1188, %v1187
      %v1198 = vpack.c.bf16 %v1164, %v1163
      %v1199 = vpack.c.bf16 %v756, %v755
      %v1200 = vpack.c.bf16 %v810, %v809
      %v1201 = vpack.c.bf16 %v1190, %v1189
      %v1202 = vpack.c.bf16 %v1166, %v1165
      %v1203 = vpack.c.bf16 %v758, %v757
      %v1204 = vpack.c.bf16 %v812, %v811
      %v1205 = vpack.c.bf16 %v1192, %v1191
      %v1206 = vpack.c.bf16 %v1168, %v1167
      %v1207 = vpack.c.bf16 %v760, %v759
      %v1208 = vpack.c.bf16 %v814, %v813
      %v1209 = vpack.c.bf16 %v1194, %v1193
      %v1210 = vpack.c.bf16 %v1170, %v1169
      %v1211 = vld [vmem:[%s1] sm:$0xf]
      %v1212 = vld [vmem:[%s1 + $0x4] sm:$0xf]
      %v1213 = vld [vmem:[%s1 + $0x8] sm:$0xf]
      %v1214 = vld [vmem:[%s1 + $0xc] sm:$0xf]
      %v1215 = vld [vmem:[%s1 + $0x10] sm:$0xf]
      %v1216 = vld [vmem:[%s1 + $0x14] sm:$0xf]
      %v1217 = vld [vmem:[%s1 + $0x18] sm:$0xf]
      %v1218 = vld [vmem:[%s1 + $0x1c] sm:$0xf]
      %v1219 = vld [vmem:[%s1 + $0x20] sm:$0xf]
      %v1220 = vld [vmem:[%s1 + $0x24] sm:$0xf]
      %v1221 = vld [vmem:[%s1 + $0x28] sm:$0xf]
      %v1222 = vld [vmem:[%s1 + $0x2c] sm:$0xf]
      %v1223 = vld [vmem:[%s1 + $0x30] sm:$0xf]
      %v1224 = vld [vmem:[%s1 + $0x34] sm:$0xf]
      %v1225 = vld [vmem:[%s1 + $0x38] sm:$0xf]
      %v1226 = vld [vmem:[%s1 + $0x3c] sm:$0xf]
      %v1227 = vld [vmem:[%s1 + $0x40] sm:$0xf]
      %v1228 = vld [vmem:[%s1 + $0x44] sm:$0xf]
      %v1229 = vld [vmem:[%s1 + $0x48] sm:$0xf]
      %v1230 = vld [vmem:[%s1 + $0x4c] sm:$0xf]
      %v1231 = vld [vmem:[%s1 + $0x50] sm:$0xf]
      %v1232 = vld [vmem:[%s1 + $0x54] sm:$0xf]
      %v1233 = vld [vmem:[%s1 + $0x58] sm:$0xf]
      %v1234 = vld [vmem:[%s1 + $0x5c] sm:$0xf]
      %v1235 = vld [vmem:[%s1 + $0x60] sm:$0xf]
      %v1236 = vld [vmem:[%s1 + $0x64] sm:$0xf]
      %v1237 = vld [vmem:[%s1 + $0x68] sm:$0xf]
      %v1238 = vld [vmem:[%s1 + $0x6c] sm:$0xf]
      %v1239 = vld [vmem:[%s1 + $0x70] sm:$0xf]
      %v1240 = vld [vmem:[%s1 + $0x74] sm:$0xf]
      %v1241 = vld [vmem:[%s1 + $0x78] sm:$0xf]
      %v1242 = vld [vmem:[%s1 + $0x7c] sm:$0xf]
      %v1243 = vld [vmem:[%s1 + $0x80] sm:$0xf]
      %v1244 = vld [vmem:[%s1 + $0x84] sm:$0xf]
      %v1245 = vld [vmem:[%s1 + $0x88] sm:$0xf]
      %v1246 = vld [vmem:[%s1 + $0x8c] sm:$0xf]
      %v1247 = vld [vmem:[%s1 + $0x90] sm:$0xf]
      %v1248 = vld [vmem:[%s1 + $0x94] sm:$0xf]
      %v1249 = vld [vmem:[%s1 + $0x98] sm:$0xf]
      %v1250 = vld [vmem:[%s1 + $0x9c] sm:$0xf]
      %v1251 = vld [vmem:[%s1 + $0xa0] sm:$0xf]
      %v1252 = vld [vmem:[%s1 + $0xa4] sm:$0xf]
      %v1253 = vld [vmem:[%s1 + $0xa8] sm:$0xf]
      %v1254 = vld [vmem:[%s1 + $0xac] sm:$0xf]
      %v1255 = vld [vmem:[%s1 + $0xb0] sm:$0xf]
      %v1256 = vld [vmem:[%s1 + $0xb4] sm:$0xf]
      %v1257 = vld [vmem:[%s1 + $0xb8] sm:$0xf]
      %v1258 = vld [vmem:[%s1 + $0xbc] sm:$0xf]
      %v1259 = vld [vmem:[%s1 + $0xc0] sm:$0xf]
      %v1260 = vld [vmem:[%s1 + $0xc4] sm:$0xf]
      %v1261 = vld [vmem:[%s1 + $0xc8] sm:$0xf]
      %v1262 = vld [vmem:[%s1 + $0xcc] sm:$0xf]
      %v1263 = vld [vmem:[%s1 + $0xd0] sm:$0xf]
      %v1264 = vld [vmem:[%s1 + $0xd4] sm:$0xf]
      %v1265 = vld [vmem:[%s1 + $0xd8] sm:$0xf]
      %v1266 = vld [vmem:[%s1 + $0xdc] sm:$0xf]
      %v1267 = vld [vmem:[%s1 + $0xe0] sm:$0xf]
      %v1268 = vld [vmem:[%s1 + $0xe4] sm:$0xf]
      %v1269 = vld [vmem:[%s1 + $0xe8] sm:$0xf]
      %v1270 = vld [vmem:[%s1 + $0xec] sm:$0xf]
      %v1271 = vld [vmem:[%s1 + $0xf0] sm:$0xf]
      %v1272 = vld [vmem:[%s1 + $0xf4] sm:$0xf]
      %v1273 = vld [vmem:[%s1 + $0xf8] sm:$0x3]
      %v1274 = vld [vmem:[%s2] sm:$0x1]
      %v1276 = vlaneseq
      %v1277 = vshrl.u32 %v1276, 7
      %v1278 = vsub.s32 0, %v1277
      %v1279 = vrot.slane %v1274, %v1278
      %v1344 = vunpack.c.l.b16 %v1211
      %v1345 = vunpack.c.l.b16 %v1212
      %v1346 = vunpack.c.l.b16 %v1213
      %v1347 = vunpack.c.l.b16 %v1214
      %v1348 = vunpack.c.l.b16 %v1215
      %v1349 = vunpack.c.l.b16 %v1216
      %v1350 = vunpack.c.l.b16 %v1217
      %v1351 = vunpack.c.l.b16 %v1218
      %v1352 = vunpack.c.l.b16 %v1219
      %v1353 = vunpack.c.l.b16 %v1220
      %v1354 = vunpack.c.l.b16 %v1221
      %v1355 = vunpack.c.l.b16 %v1222
      %v1356 = vunpack.c.l.b16 %v1223
      %v1357 = vunpack.c.l.b16 %v1224
      %v1358 = vunpack.c.l.b16 %v1225
      %v1359 = vunpack.c.l.b16 %v1226
      %v1360 = vunpack.c.l.b16 %v1227
      %v1361 = vunpack.c.l.b16 %v1228
      %v1362 = vunpack.c.l.b16 %v1229
      %v1363 = vunpack.c.l.b16 %v1230
      %v1364 = vunpack.c.l.b16 %v1231
      %v1365 = vunpack.c.l.b16 %v1232
      %v1366 = vunpack.c.l.b16 %v1233
      %v1367 = vunpack.c.l.b16 %v1234
      %v1368 = vunpack.c.l.b16 %v1235
      %v1369 = vunpack.c.l.b16 %v1236
      %v1370 = vunpack.c.l.b16 %v1237
      %v1371 = vunpack.c.l.b16 %v1238
      %v1372 = vunpack.c.l.b16 %v1239
      %v1373 = vunpack.c.l.b16 %v1240
      %v1374 = vunpack.c.l.b16 %v1241
      %v1375 = vunpack.c.l.b16 %v1242
      %v1376 = vunpack.c.l.b16 %v1243
      %v1377 = vunpack.c.l.b16 %v1244
      %v1378 = vunpack.c.l.b16 %v1245
      %v1379 = vunpack.c.l.b16 %v1246
      %v1380 = vunpack.c.l.b16 %v1247
      %v1381 = vunpack.c.l.b16 %v1248
      %v1382 = vunpack.c.l.b16 %v1249
      %v1383 = vunpack.c.l.b16 %v1250
      %v1384 = vunpack.c.l.b16 %v1251
      %v1385 = vunpack.c.l.b16 %v1252
      %v1386 = vunpack.c.l.b16 %v1253
      %v1387 = vunpack.c.l.b16 %v1254
      %v1388 = vunpack.c.l.b16 %v1255
      %v1389 = vunpack.c.l.b16 %v1256
      %v1390 = vunpack.c.l.b16 %v1257
      %v1391 = vunpack.c.l.b16 %v1258
      %v1392 = vunpack.c.l.b16 %v1259
      %v1393 = vunpack.c.l.b16 %v1260
      %v1394 = vunpack.c.l.b16 %v1261
      %v1395 = vunpack.c.l.b16 %v1262
      %v1396 = vunpack.c.l.b16 %v1263
      %v1397 = vunpack.c.l.b16 %v1264
      %v1398 = vunpack.c.l.b16 %v1265
      %v1399 = vunpack.c.l.b16 %v1266
      %v1400 = vunpack.c.l.b16 %v1267
      %v1401 = vunpack.c.l.b16 %v1268
      %v1402 = vunpack.c.l.b16 %v1269
      %v1403 = vunpack.c.l.b16 %v1270
      %v1404 = vunpack.c.l.b16 %v1271
      %v1405 = vunpack.c.l.b16 %v1272
      %v1406 = vunpack.c.l.b16 %v1273
      %v1407 = vpack.c.b16 %v1345, %v1344
      %v1408 = vpack.c.b16 %v1347, %v1346
      %v1409 = vpack.c.b16 %v1349, %v1348
      %v1410 = vpack.c.b16 %v1351, %v1350
      %v1411 = vpack.c.b16 %v1353, %v1352
      %v1412 = vpack.c.b16 %v1355, %v1354
      %v1413 = vpack.c.b16 %v1357, %v1356
      %v1414 = vpack.c.b16 %v1359, %v1358
      %v1415 = vpack.c.b16 %v1361, %v1360
      %v1416 = vpack.c.b16 %v1363, %v1362
      %v1417 = vpack.c.b16 %v1365, %v1364
      %v1418 = vpack.c.b16 %v1367, %v1366
      %v1419 = vpack.c.b16 %v1369, %v1368
      %v1420 = vpack.c.b16 %v1371, %v1370
      %v1421 = vpack.c.b16 %v1373, %v1372
      %v1422 = vpack.c.b16 %v1375, %v1374
      %v1423 = vpack.c.b16 %v1377, %v1376
      %v1424 = vpack.c.b16 %v1379, %v1378
      %v1425 = vpack.c.b16 %v1381, %v1380
      %v1426 = vpack.c.b16 %v1383, %v1382
      %v1427 = vpack.c.b16 %v1385, %v1384
      %v1428 = vpack.c.b16 %v1387, %v1386
      %v1429 = vpack.c.b16 %v1389, %v1388
      %v1430 = vpack.c.b16 %v1391, %v1390
      %v1431 = vpack.c.b16 %v1393, %v1392
      %v1432 = vpack.c.b16 %v1395, %v1394
      %v1433 = vpack.c.b16 %v1397, %v1396
      %v1434 = vpack.c.b16 %v1399, %v1398
      %v1435 = vpack.c.b16 %v1401, %v1400
      %v1436 = vpack.c.b16 %v1403, %v1402
      %v1437 = vpack.c.b16 %v1405, %v1404
      %v1438 = vpack.c.b16 %v1406, %v1406
      %vm1470 = vcmask 949248
      %v1472 = vsel %vm1470, %v1198, 0
      %v1475 = vsel %vm1470, %v1202, 0
      %v1478 = vsel %vm1470, %v1206, 0
      %v1481 = vsel %vm1470, %v1210, 0
      %vm1483 = vcmask 1041408
      %v1485 = vsel %vm1483, %v1438, 0
      %1487 = vmatprep.subr.bf16.mxu0 0
      %1488 = vmatpush1.bf16.msra.mxu0 %v1414
      %1489 = vmatprep.subr.bf16.mxu0 0
      %1490 = vmatpush1.bf16.msra.mxu0 %v1413
      %1491 = vmatprep.subr.bf16.mxu0 0
      %1492 = vmatpush1.bf16.msra.mxu0 %v1412
      %1493 = vmatprep.subr.bf16.mxu0 0
      %1494 = vmatpush1.bf16.msra.mxu0 %v1411
      %1495 = vmatprep.subr.bf16.mxu0 0
      %1496 = vmatpush1.bf16.msra.mxu0 %v1410
      %1497 = vmatprep.subr.bf16.mxu0 0
      %1498 = vmatpush1.bf16.msra.mxu0 %v1409
      %1499 = vmatprep.subr.bf16.mxu0 0
      %1500 = vmatpush1.bf16.msra.mxu0 %v1408
      %1501 = vmatprep.subr.bf16.mxu0 0
      %1502 = vmatpush1.bf16.msra.mxu0 %v1407
      %1503 = vmatprep.subr.bf16.mxu0 0
      %1504 = vmatpush2.bf16.msra.mxu0 %v1422
      %1505 = vmatprep.subr.bf16.mxu0 0
      %1506 = vmatpush2.bf16.msra.mxu0 %v1421
      %1507 = vmatprep.subr.bf16.mxu0 0
      %1508 = vmatpush2.bf16.msra.mxu0 %v1420
      %1509 = vmatprep.subr.bf16.mxu0 0
      %1510 = vmatpush2.bf16.msra.mxu0 %v1419
      %1511 = vmatprep.subr.bf16.mxu0 0
      %1512 = vmatpush2.bf16.msra.mxu0 %v1418
      %1513 = vmatprep.subr.bf16.mxu0 0
      %1514 = vmatpush2.bf16.msra.mxu0 %v1417
      %1515 = vmatprep.subr.bf16.mxu0 0
      %1516 = vmatpush2.bf16.msra.mxu0 %v1416
      %1517 = vmatprep.subr.bf16.mxu0 0
      %1518 = vmatpush2.bf16.msra.mxu0 %v1415
      %1519 = vmatprep.mubr.bf16.mxu0 %v1196
      %1520 = vmatmul.mubr.bf16.gmra.mxu0 %v1195
      %v1521 = vpop.f32.mrf.mxu0
      %v1522 = vadd.f32 %v1279, %v1521
      %v1523 = vpop.f32.mrf.mxu0
      %v1524 = vpop.f32.mrf.mxu0
      %v1525 = vadd.f32 %v1279, %v1524
      %v1526 = vpop.f32.mrf.mxu0
      %1527 = vmatprep.mubr.bf16.mxu0 %v1200
      %1528 = vmatmul.mubr.bf16.gmra.mxu0 %v1199
      %v1529 = vpop.f32.mrf.mxu0
      %v1530 = vadd.f32 %v1279, %v1529
      %v1531 = vpop.f32.mrf.mxu0
      %v1532 = vpop.f32.mrf.mxu0
      %v1533 = vadd.f32 %v1279, %v1532
      %v1534 = vpop.f32.mrf.mxu0
      %1535 = vmatprep.mubr.bf16.mxu0 %v1204
      %1536 = vmatmul.mubr.bf16.gmra.mxu0 %v1203
      %v1537 = vpop.f32.mrf.mxu0
      %v1538 = vadd.f32 %v1279, %v1537
      %v1539 = vpop.f32.mrf.mxu0
      %v1540 = vpop.f32.mrf.mxu0
      %v1541 = vadd.f32 %v1279, %v1540
      %v1542 = vpop.f32.mrf.mxu0
      %1543 = vmatprep.mubr.bf16.mxu0 %v1208
      %1544 = vmatmul.mubr.bf16.gmra.mxu0 %v1207
      %v1545 = vpop.f32.mrf.mxu0
      %v1546 = vadd.f32 %v1279, %v1545
      %v1547 = vpop.f32.mrf.mxu0
      %v1548 = vpop.f32.mrf.mxu0
      %v1549 = vadd.f32 %v1279, %v1548
      %v1550 = vpop.f32.mrf.mxu0
      %1551 = vdwg.mxu0
      %1552 = vmatprep.subr.bf16.mxu0 0
      %1553 = vmatpush1.bf16.msra.mxu0 %v1430
      %1554 = vmatprep.subr.bf16.mxu0 0
      %1555 = vmatpush1.bf16.msra.mxu0 %v1429
      %1556 = vmatprep.subr.bf16.mxu0 0
      %1557 = vmatpush1.bf16.msra.mxu0 %v1428
      %1558 = vmatprep.subr.bf16.mxu0 0
      %1559 = vmatpush1.bf16.msra.mxu0 %v1427
      %1560 = vmatprep.subr.bf16.mxu0 0
      %1561 = vmatpush1.bf16.msra.mxu0 %v1426
      %1562 = vmatprep.subr.bf16.mxu0 0
      %1563 = vmatpush1.bf16.msra.mxu0 %v1425
      %1564 = vmatprep.subr.bf16.mxu0 0
      %1565 = vmatpush1.bf16.msra.mxu0 %v1424
      %1566 = vmatprep.subr.bf16.mxu0 0
      %1567 = vmatpush1.bf16.msra.mxu0 %v1423
      %1568 = vmatprep.subr.bf16.mxu0 0
      %1569 = vmatpush2.bf16.msra.mxu0 %v1485
      %1570 = vmatprep.subr.bf16.mxu0 0
      %1571 = vmatpush2.bf16.msra.mxu0 %v1437
      %1572 = vmatprep.subr.bf16.mxu0 0
      %1573 = vmatpush2.bf16.msra.mxu0 %v1436
      %1574 = vmatprep.subr.bf16.mxu0 0
      %1575 = vmatpush2.bf16.msra.mxu0 %v1435
      %1576 = vmatprep.subr.bf16.mxu0 0
      %1577 = vmatpush2.bf16.msra.mxu0 %v1434
      %1578 = vmatprep.subr.bf16.mxu0 0
      %1579 = vmatpush2.bf16.msra.mxu0 %v1433
      %1580 = vmatprep.subr.bf16.mxu0 0
      %1581 = vmatpush2.bf16.msra.mxu0 %v1432
      %1582 = vmatprep.subr.bf16.mxu0 0
      %1583 = vmatpush2.bf16.msra.mxu0 %v1431
      %1584 = vmatprep.mubr.bf16.mxu0 %v1472
      %1585 = vmatmul.mubr.bf16.gmra.mxu0 %v1197
      %v1586 = vpop.f32.mrf.mxu0
      %v1587 = vadd.f32 %v1522, %v1586
      %v1588 = vpop.f32.mrf.mxu0
      %v1589 = vpop.f32.mrf.mxu0
      %v1590 = vadd.f32 %v1525, %v1589
      %v1591 = vpop.f32.mrf.mxu0
      %1592 = vmatprep.mubr.bf16.mxu0 %v1475
      %1593 = vmatmul.mubr.bf16.gmra.mxu0 %v1201
      %v1594 = vpop.f32.mrf.mxu0
      %v1595 = vadd.f32 %v1530, %v1594
      %v1596 = vpop.f32.mrf.mxu0
      %v1597 = vpop.f32.mrf.mxu0
      %v1598 = vadd.f32 %v1533, %v1597
      %v1599 = vpop.f32.mrf.mxu0
      %1600 = vmatprep.mubr.bf16.mxu0 %v1478
      %1601 = vmatmul.mubr.bf16.gmra.mxu0 %v1205
      %v1602 = vpop.f32.mrf.mxu0
      %v1603 = vadd.f32 %v1538, %v1602
      %v1604 = vpop.f32.mrf.mxu0
      %v1605 = vpop.f32.mrf.mxu0
      %v1606 = vadd.f32 %v1541, %v1605
      %v1607 = vpop.f32.mrf.mxu0
      %1608 = vmatprep.mubr.bf16.mxu0 %v1481
      %1609 = vmatmul.mubr.bf16.gmra.mxu0 %v1209
      %v1610 = vpop.f32.mrf.mxu0
      %v1611 = vadd.f32 %v1546, %v1610
      %v1612 = vpop.f32.mrf.mxu0
      %v1613 = vpop.f32.mrf.mxu0
      %v1614 = vadd.f32 %v1549, %v1613
      %v1615 = vpop.f32.mrf.mxu0
      %1616 = vdwg.mxu0
      %1617 = vst [vmem:[%s232] sm:$0xff] %v1587
      %1618 = vst [vmem:[%s232 + $0x8] sm:$0xff] %v1590
      %1619 = vst [vmem:[%s232 + $0x10] sm:$0xff] %v1595
      %1620 = vst [vmem:[%s232 + $0x18] sm:$0xff] %v1598
      %1621 = vst [vmem:[%s232 + $0x20] sm:$0xff] %v1603
      %1622 = vst [vmem:[%s232 + $0x28] sm:$0xff] %v1606
      %1623 = vst [vmem:[%s232 + $0x30] sm:$0xff] %v1611
      %1624 = vst [vmem:[%s232 + $0x38] sm:$0xff] %v1614
      %v1625 = vadd.f32 %v1587, %v1590
      %v1626 = vadd.f32 %v1625, %v1595
      %v1627 = vadd.f32 %v1626, %v1598
      %v1628 = vadd.f32 %v1627, %v1603
      %v1629 = vadd.f32 %v1628, %v1606
      %v1630 = vadd.f32 %v1629, %v1611
      %v1631 = vadd.f32 %v1630, %v1614
      %v1632 = vrot.slane %v1631, 4
      %v1633 = vadd.f32 %v1631, %v1632
      %v1634 = vrot.slane %v1633, 2
      %v1635 = vadd.f32 %v1633, %v1634
      %v1636 = vrot.slane %v1635, 1
      %v1637 = vadd.f32 %v1635, %v1636
      %v1638 = vmul.f32 %v1587, %v1587
      %v1639 = vmul.f32 %v1590, %v1590
      %v1640 = vmul.f32 %v1595, %v1595
      %v1641 = vmul.f32 %v1598, %v1598
      %v1642 = vmul.f32 %v1603, %v1603
      %v1643 = vmul.f32 %v1606, %v1606
      %v1644 = vmul.f32 %v1611, %v1611
      %v1645 = vmul.f32 %v1614, %v1614
      %v1646 = vadd.f32 %v1638, %v1639
      %v1647 = vadd.f32 %v1646, %v1640
      %v1648 = vadd.f32 %v1647, %v1641
      %v1649 = vadd.f32 %v1648, %v1642
      %v1650 = vadd.f32 %v1649, %v1643
      %v1651 = vadd.f32 %v1650, %v1644
      %v1652 = vadd.f32 %v1651, %v1645
      %v1653 = vrot.slane %v1652, 4
      %v1654 = vadd.f32 %v1652, %v1653
      %v1655 = vrot.slane %v1654, 2
      %v1656 = vadd.f32 %v1654, %v1655
      %v1657 = vrot.slane %v1656, 1
      %v1658 = vadd.f32 %v1656, %v1657
      %vm1659 = vcmask 1040384
      %v1660 = vsel %vm1659, %v1637, %v1658
      %1661 = vst [vmem:[%s240] sm:$0x3] %v1660
      %p1662 = scmp.lt.s32.totalorder %s20, 1
      %s1663 = scalar_select %p1662, %s20, 1
      %p1664 = scmp.lt.s32.totalorder %s21, 7
      %s1665 = scalar_select %p1664, %s21, 7
      %s1666 = smul.addr %s1665, 8
      %s1667 = smul.addr %s1663, 64
      %s1668 = sadd.s32 %s1666, %s1667
      %s1669 = smul.addr %s1668, 8
      %s1670 = scalar_lea.vmem %s3, %s1669
      %p1671 = scmp.lt.s32.totalorder %s20, 1
      %s1672 = scalar_select %p1671, %s20, 1
      %p1673 = scmp.lt.s32.totalorder %s21, 7
      %s1674 = scalar_select %p1673, %s21, 7
      %s1675 = smul.addr %s1672, 8
      %s1676 = sadd.s32 %s1674, %s1675
      %s1677 = smul.addr %s1676, 2
      %s1678 = scalar_lea.vmem %s4, %s1677
      // Predicated region
      $region33: #{double_conv.4} parent=31 // pred_check
        %p1679 = pneg %p116
      $region34: #{double_conv.4} parent=31 // pred_check_branch
        %1681 = sbr.rel (%p1679) target = $region36
      $region35: #{double_conv.4} parent=31 // pred_region
        _
      $region36: #{double_conv.4} parent=31 // pred_fallthru
        _
      // Predicated region
      $region37: #{double_conv.4} parent=31 // pred_check
        %p1682 = pneg %p144
      $region38: #{double_conv.4} parent=31 // pred_check_branch
        %1684 = sbr.rel (%p1682) target = $region40
      $region39: #{double_conv.4} parent=31 // pred_region
        _
      $region40: #{double_conv.4} parent=31 // pred_fallthru
        _
    $region32: #{double_conv.4} parent=5 // pred_fallthru
      _
    %p1685 = scmp.le.s32.totalorder 2, %s11
    // Predicated region
    $region41: #{double_conv.4} parent=5 // pred_check
      %p1686 = pneg %p1685
    $region42: #{double_conv.4} parent=5 // pred_check_branch
      %1688 = sbr.rel (%p1686) target = $region44
    $region43: #{double_conv.4} parent=5 // pred_region
      %s1689 = ssub.s32 %s11, 2
      // Predicated region
      $region45: #{double_conv.4} parent=43 // pred_check
        %p1690 = pneg %p122
      $region46: #{double_conv.4} parent=43 // pred_check_branch
        %1692 = sbr.rel (%p1690) target = $region48
      $region47: #{double_conv.4} parent=43 // pred_region
        %p1693 = scmp.lt.s32.totalorder %s22, 1
        %s1694 = scalar_select %p1693, %s22, 1
        %p1695 = scmp.lt.s32.totalorder %s23, 7
        %s1696 = scalar_select %p1695, %s23, 7
        %s1697 = smul.addr %s1696, 8
        %s1698 = smul.addr %s1694, 64
        %s1699 = sadd.s32 %s1697, %s1698
        %s1700 = smul.addr %s1699, 8
        %s1701 = scalar_lea.vmem %s3, %s1700
      $region48: #{double_conv.4} parent=43 // pred_fallthru
        _
      // Predicated region
      $region49: #{double_conv.4} parent=43 // pred_check
        %p1702 = pneg %p150
      $region50: #{double_conv.4} parent=43 // pred_check_branch
        %1704 = sbr.rel (%p1702) target = $region52
      $region51: #{double_conv.4} parent=43 // pred_region
        %p1705 = scmp.lt.s32.totalorder %s22, 1
        %s1706 = scalar_select %p1705, %s22, 1
        %p1707 = scmp.lt.s32.totalorder %s23, 7
        %s1708 = scalar_select %p1707, %s23, 7
        %s1709 = smul.addr %s1706, 8
        %s1710 = sadd.s32 %s1708, %s1709
        %s1711 = smul.addr %s1710, 2
        %s1712 = scalar_lea.vmem %s4, %s1711
      $region52: #{double_conv.4} parent=43 // pred_fallthru
        _
    $region44: #{double_conv.4} parent=5 // pred_fallthru
      _
  $region6: #{double_conv.4} parent=0 // loop_footer
    %s15 = sadd.s32 1, %s11
  $region7: #{double_conv.4} parent=0 // loop_footer_branch
    %10 = sbr.rel target = $region3
  $region8: #{double_conv.4} parent=0 // loop_exit
    _

// kernel: double_conv.6
$region0: #{double_conv.6}
  #allocation0 [shape = 'u32[]', space=smem, size = 0x4, offset = 0x4, fixed_abs, tag = 'smem constant byte address 0x4 - core index']
  #allocation1 [shape = 'u32[144,128]{1,0:T(1,128)}', space=vmem, size = 0x12000, scoped, tag = 'internal scratch']
  %s0 = inlined_call_operand.vmem [shape: f32[2,12,96,40], index: 0, kind: input, shape index: {}]
  %s1 = inlined_call_operand.vmem [shape: bf16[1000,128], index: 1, kind: input, shape index: {}]
  %s2 = inlined_call_operand.vmem [shape: f32[1,128], index: 2, kind: input, shape index: {}]
  %s3 = inlined_call_operand.vmem [shape: f32[2,8,64,128], index: 3, kind: output, shape index: {0}]
  %s4 = inlined_call_operand.vmem [shape: f32[2,8,2,128], index: 4, kind: output, shape index: {1}]
  %5 = xla_tuple %s3, %s4
  %s6 = sld [smem:[#allocation0]]
  $region53: #{double_conv.6} parent=0
    _
  %s8 = ssub.s32 1, %s6
  %s9 = scalar_select 0, %s8, %s6
  loop: start=0, step=1, limit=18
  $region2: #{double_conv.6} parent=0 // loop_pre_header
    _
  $region3: #{double_conv.6} parent=0 // loop_header
    %s11 = sphi 0, %s15
    %p12 = scmp.ge.s32.totalorder %s11, 18
    %s18 = sphi 0, %s30
    %s19 = sphi 0, %s26
    %s20 = sphi 0, %s18
    %s21 = sphi 0, %s19
    %s22 = sphi 0, %s20
    %s23 = sphi 0, %s21
    %s33 = sphi 0, %s35
    %s36 = sphi 0, %s33
    %s37 = sphi 0, %s36
    %s53 = sphi 0, %s37
    %s57 = sphi 0, %s57
    %s59 = sphi 0, %s57
    %s60 = sphi 0, %s59
    %s74 = sphi 0, %s60
    %s78 = sphi 0, %s78
    %s80 = sphi 0, %s78
    %s81 = sphi 0, %s80
    %s95 = sphi 0, %s81
    %s103 = sphi 0, %s105
    %s106 = sphi 0, %s103
    %s107 = sphi 0, %s106
    %s123 = sphi 0, %s107
    %s131 = sphi 0, %s133
    %s134 = sphi 0, %s131
    %s135 = sphi 0, %s134
    %s151 = sphi 0, %s135
  $region4: #{double_conv.6} parent=0 // loop_header_branch
    %14 = sbr.rel (%p12) target = $region8
  $region5: #{double_conv.6} parent=0 // loop_body
    %s16 = ssub.s32 %s11, 1
    %s17 = ssub.s32 %s11, 2
    %s24 = sadd.s32 1, %s19
    %p25 = scmp.ge.s32.totalorder %s24, 8
    %s26 = scalar_select %p25, 0, %s24
    %s27 = sadd.s32 1, %s18
    %s28 = scalar_select %p25, %s27, %s18
    %p29 = scmp.ge.s32.totalorder %s28, 2
    %s30 = scalar_select %p29, 0, %s28
    %s31 = ssub.s32 %s18, %s30
    %p32 = scmp.eq.s32.totalorder %s31, 0
    %s34 = sadd.s32 %s33, 1
    %s35 = scalar_select %p32, %s33, %s34
    %p38 = pneg %p32
    %p39 = scmp.eq.s32.totalorder %s11, 15
    %p40 = por %p38, %p39
    %p41 = scmp.ne.s32.totalorder %s33, %s36
    %p42 = scmp.eq.s32.totalorder %s11, 0
    %p43 = por %p41, %p42
    %p44 = scmp.ne.s32.totalorder %s33, %s36
    %p45 = scmp.eq.s32.totalorder %s16, 15
    %p46 = por %p44, %p45
    %p47 = scmp.ne.s32.totalorder %s36, %s37
    %p48 = scmp.eq.s32.totalorder %s16, 0
    %p49 = por %p47, %p48
    %p50 = scmp.ne.s32.totalorder %s36, %s37
    %p51 = scmp.eq.s32.totalorder %s17, 15
    %p52 = por %p50, %p51
    %p54 = scmp.ne.s32.totalorder %s37, %s53
    %p55 = scmp.eq.s32.totalorder %s17, 0
    %p56 = por %p54, %p55
    %s58 = sadd.s32 %s57, 1
    %p61 = scmp.eq.s32.totalorder %s11, 15
    %p62 = scmp.ne.s32.totalorder %s57, %s59
    %p63 = scmp.eq.s32.totalorder %s11, 0
    %p64 = por %p62, %p63
    %p65 = scmp.ne.s32.totalorder %s57, %s59
    %p66 = scmp.eq.s32.totalorder %s16, 15
    %p67 = por %p65, %p66
    %p68 = scmp.ne.s32.totalorder %s59, %s60
    %p69 = scmp.eq.s32.totalorder %s16, 0
    %p70 = por %p68, %p69
    %p71 = scmp.ne.s32.totalorder %s59, %s60
    %p72 = scmp.eq.s32.totalorder %s17, 15
    %p73 = por %p71, %p72
    %p75 = scmp.ne.s32.totalorder %s60, %s74
    %p76 = scmp.eq.s32.totalorder %s17, 0
    %p77 = por %p75, %p76
    %s79 = sadd.s32 %s78, 1
    %p82 = scmp.eq.s32.totalorder %s11, 15
    %p83 = scmp.ne.s32.totalorder %s78, %s80
    %p84 = scmp.eq.s32.totalorder %s11, 0
    %p85 = por %p83, %p84
    %p86 = scmp.ne.s32.totalorder %s78, %s80
    %p87 = scmp.eq.s32.totalorder %s16, 15
    %p88 = por %p86, %p87
    %p89 = scmp.ne.s32.totalorder %s80, %s81
    %p90 = scmp.eq.s32.totalorder %s16, 0
    %p91 = por %p89, %p90
    %p92 = scmp.ne.s32.totalorder %s80, %s81
    %p93 = scmp.eq.s32.totalorder %s17, 15
    %p94 = por %p92, %p93
    %p96 = scmp.ne.s32.totalorder %s81, %s95
    %p97 = scmp.eq.s32.totalorder %s17, 0
    %p98 = por %p96, %p97
    %s99 = ssub.s32 %s18, %s30
    %s100 = ssub.s32 %s19, %s26
    %s101 = sor.u32 %s99, %s100
    %p102 = scmp.eq.s32.totalorder %s101, 0
    %s104 = sadd.s32 %s103, 1
    %s105 = scalar_select %p102, %s103, %s104
    %p108 = pneg %p102
    %p109 = scmp.eq.s32.totalorder %s11, 15
    %p110 = por %p108, %p109
    %p111 = scmp.ne.s32.totalorder %s103, %s106
    %p112 = scmp.eq.s32.totalorder %s11, 0
    %p113 = por %p111, %p112
    %p114 = scmp.ne.s32.totalorder %s103, %s106
    %p115 = scmp.eq.s32.totalorder %s16, 15
    %p116 = por %p114, %p115
    %p117 = scmp.ne.s32.totalorder %s106, %s107
    %p118 = scmp.eq.s32.totalorder %s16, 0
    %p119 = por %p117, %p118
    %p120 = scmp.ne.s32.totalorder %s106, %s107
    %p121 = scmp.eq.s32.totalorder %s17, 15
    %p122 = por %p120, %p121
    %p124 = scmp.ne.s32.totalorder %s107, %s123
    %p125 = scmp.eq.s32.totalorder %s17, 0
    %p126 = por %p124, %p125
    %s127 = ssub.s32 %s18, %s30
    %s128 = ssub.s32 %s19, %s26
    %s129 = sor.u32 %s127, %s128
    %p130 = scmp.eq.s32.totalorder %s129, 0
    %s132 = sadd.s32 %s131, 1
    %s133 = scalar_select %p130, %s131, %s132
    %p136 = pneg %p130
    %p137 = scmp.eq.s32.totalorder %s11, 15
    %p138 = por %p136, %p137
    %p139 = scmp.ne.s32.totalorder %s131, %s134
    %p140 = scmp.eq.s32.totalorder %s11, 0
    %p141 = por %p139, %p140
    %p142 = scmp.ne.s32.totalorder %s131, %s134
    %p143 = scmp.eq.s32.totalorder %s16, 15
    %p144 = por %p142, %p143
    %p145 = scmp.ne.s32.totalorder %s134, %s135
    %p146 = scmp.eq.s32.totalorder %s16, 0
    %p147 = por %p145, %p146
    %p148 = scmp.ne.s32.totalorder %s134, %s135
    %p149 = scmp.eq.s32.totalorder %s17, 15
    %p150 = por %p148, %p149
    %p152 = scmp.ne.s32.totalorder %s135, %s151
    %p153 = scmp.eq.s32.totalorder %s17, 0
    %p154 = por %p152, %p153
    %p155 = scmp.le.s32.totalorder 1, %s11
    %p156 = scmp.lt.s32.totalorder %s11, 17
    %p157 = pnand %p155, %p156
    %p158 = pneg %p157
    // Predicated region
    $region9: #{double_conv.6} parent=5 // pred_check
      _
    $region10: #{double_conv.6} parent=5 // pred_check_branch
      %160 = sbr.rel (%p157) target = $region12
    $region11: #{double_conv.6} parent=5 // pred_region
      %s161 = ssub.s32 %s11, 1
      // Predicated region
      $region13: #{double_conv.6} parent=11 // pred_check
        %p162 = pneg %p70
      $region14: #{double_conv.6} parent=11 // pred_check_branch
        %164 = sbr.rel (%p162) target = $region16
      $region15: #{double_conv.6} parent=11 // pred_region
        _
      $region16: #{double_conv.6} parent=11 // pred_fallthru
        _
      // Predicated region
      $region17: #{double_conv.6} parent=11 // pred_check
        %p165 = pneg %p91
      $region18: #{double_conv.6} parent=11 // pred_check_branch
        %167 = sbr.rel (%p165) target = $region20
      $region19: #{double_conv.6} parent=11 // pred_region
        _
      $region20: #{double_conv.6} parent=11 // pred_fallthru
        _
    $region12: #{double_conv.6} parent=5 // pred_fallthru
      _
    %p168 = scmp.lt.s32.totalorder %s11, 16
    // Predicated region
    $region21: #{double_conv.6} parent=5 // pred_check
      %p169 = pneg %p168
    $region22: #{double_conv.6} parent=5 // pred_check_branch
      %171 = sbr.rel (%p169) target = $region24
    $region23: #{double_conv.6} parent=5 // pred_region
      // Predicated region
      $region25: #{double_conv.6} parent=23 // pred_check
        %p172 = pneg %p43
      $region26: #{double_conv.6} parent=23 // pred_check_branch
        %174 = sbr.rel (%p172) target = $region28
      $region27: #{double_conv.6} parent=23 // pred_region
        %p175 = scmp.lt.s32.totalorder %s18, 1
        %s176 = scalar_select %p175, %s18, 1
        %s177 = smul.addr %s176, 144
        %s178 = smul.addr %s177, 8
        %s179 = scalar_lea.vmem %s0, %s178
      $region28: #{double_conv.6} parent=23 // pred_fallthru
        _
    $region24: #{double_conv.6} parent=5 // pred_fallthru
      _
    %p180 = scmp.le.s32.totalorder 1, %s11
    %p181 = scmp.lt.s32.totalorder %s11, 17
    %p182 = pnand %p180, %p181
    %p183 = pneg %p182
    // Predicated region
    $region29: #{double_conv.6} parent=5 // pred_check
      _
    $region30: #{double_conv.6} parent=5 // pred_check_branch
      %185 = sbr.rel (%p182) target = $region32
    $region31: #{double_conv.6} parent=5 // pred_region
      %s186 = ssub.s32 %s11, 1
      %p187 = scmp.lt.s32.totalorder %s20, 1
      %s188 = scalar_select %p187, %s20, 1
      %s189 = smul.addr %s188, 144
      %s190 = smul.addr %s189, 8
      %s191 = scalar_lea.vmem %s0, %s190
      %p192 = pneg %p49
      %p193 = pneg %p46
      %p194 = pneg %p70
      %p195 = pneg %p67
      %p196 = pneg %p91
      %p197 = pneg %p88
      %p198 = pneg %p119
      %p199 = pneg %p116
      %p200 = scmp.lt.s32.totalorder %s20, 1
      %s201 = scalar_select %p200, %s20, 1
      %p202 = scmp.lt.s32.totalorder %s21, 7
      %s203 = scalar_select %p202, %s21, 7
      %s204 = smul.addr %s203, 8
      %s205 = smul.addr %s201, 64
      %s206 = sadd.s32 %s204, %s205
      %s207 = smul.addr %s206, 8
      %s208 = scalar_lea.vmem %s3, %s207
      %p209 = pneg %p147
      %p210 = pneg %p144
      %p211 = scmp.lt.s32.totalorder %s20, 1
      %s212 = scalar_select %p211, %s20, 1
      %p213 = scmp.lt.s32.totalorder %s21, 7
      %s214 = scalar_select %p213, %s21, 7
      %s215 = smul.addr %s212, 8
      %s216 = sadd.s32 %s214, %s215
      %s217 = smul.addr %s216, 2
      %s218 = scalar_lea.vmem %s4, %s217
      %p219 = scmp.lt.s32.totalorder %s20, 1
      %s220 = scalar_select %p219, %s20, 1
      %s221 = smul.addr %s220, 144
      %s222 = smul.addr %s221, 8
      %s223 = scalar_lea.vmem %s0, %s222
      %p224 = scmp.lt.s32.totalorder %s20, 1
      %s225 = scalar_select %p224, %s20, 1
      %p226 = scmp.lt.s32.totalorder %s21, 7
      %s227 = scalar_select %p226, %s21, 7
      %s228 = smul.addr %s227, 8
      %s229 = smul.addr %s225, 64
      %s230 = sadd.s32 %s228, %s229
      %s231 = smul.addr %s230, 8
      %s232 = scalar_lea.vmem %s3, %s231
      %p233 = scmp.lt.s32.totalorder %s20, 1
      %s234 = scalar_select %p233, %s20, 1
      %p235 = scmp.lt.s32.totalorder %s21, 7
      %s236 = scalar_select %p235, %s21, 7
      %s237 = smul.addr %s234, 8
      %s238 = sadd.s32 %s236, %s237
      %s239 = smul.addr %s238, 2
      %s240 = scalar_lea.vmem %s4, %s239
      %s242 = smul.u32 %s21, 96
      %s243 = scalar_lea.vmem %s223, %s242
      %v244 = vld [vmem:[%s243] sm:$0xff]
      %v245 = vld [vmem:[%s243 + $0x8] sm:$0xff]
      %v246 = vld [vmem:[%s243 + $0x10] sm:$0xff]
      %v247 = vld [vmem:[%s243 + $0x18] sm:$0xff]
      %v248 = vld [vmem:[%s243 + $0x20] sm:$0xff]
      %v249 = vld [vmem:[%s243 + $0x28] sm:$0xff]
      %v250 = vld [vmem:[%s243 + $0x30] sm:$0xff]
      %v251 = vld [vmem:[%s243 + $0x38] sm:$0xff]
      %v252 = vld [vmem:[%s243 + $0x40] sm:$0xff]
      %v253 = vld [vmem:[%s243 + $0x48] sm:$0xff]
      %v254 = vld [vmem:[%s243 + $0x50] sm:$0xff]
      %v255 = vld [vmem:[%s243 + $0x58] sm:$0xff]
      %v256 = vld [vmem:[%s243 + $0x60] sm:$0xff]
      %v257 = vld [vmem:[%s243 + $0x68] sm:$0xff]
      %v258 = vld [vmem:[%s243 + $0x70] sm:$0xff]
      %v259 = vld [vmem:[%s243 + $0x78] sm:$0xff]
      %v260 = vld [vmem:[%s243 + $0x80] sm:$0xff]
      %v261 = vld [vmem:[%s243 + $0x88] sm:$0xff]
      %v262 = vld [vmem:[%s243 + $0x90] sm:$0xff]
      %v263 = vld [vmem:[%s243 + $0x98] sm:$0xff]
      %v264 = vld [vmem:[%s243 + $0xa0] sm:$0xff]
      %v265 = vld [vmem:[%s243 + $0xa8] sm:$0xff]
      %v266 = vld [vmem:[%s243 + $0xb0] sm:$0xff]
      %v267 = vld [vmem:[%s243 + $0xb8] sm:$0xff]
      %v268 = vld [vmem:[%s243 + $0xc0] sm:$0xff]
      %v269 = vld [vmem:[%s243 + $0xc8] sm:$0xff]
      %v270 = vld [vmem:[%s243 + $0xd0] sm:$0xff]
      %v271 = vld [vmem:[%s243 + $0xd8] sm:$0xff]
      %v272 = vld [vmem:[%s243 + $0xe0] sm:$0xff]
      %v273 = vld [vmem:[%s243 + $0xe8] sm:$0xff]
      %v274 = vld [vmem:[%s243 + $0xf0] sm:$0xff]
      %v275 = vld [vmem:[%s243 + $0xf8] sm:$0xff]
      %v276 = vld [vmem:[%s243 + $0x100] sm:$0xff]
      %v277 = vld [vmem:[%s243 + $0x108] sm:$0xff]
      %v278 = vld [vmem:[%s243 + $0x110] sm:$0xff]
      %v279 = vld [vmem:[%s243 + $0x118] sm:$0xff]
      %v280 = vld [vmem:[%s243 + $0x120] sm:$0xff]
      %v281 = vld [vmem:[%s243 + $0x128] sm:$0xff]
      %v282 = vld [vmem:[%s243 + $0x130] sm:$0xff]
      %v283 = vld [vmem:[%s243 + $0x138] sm:$0xff]
      %v284 = vld [vmem:[%s243 + $0x140] sm:$0xff]
      %v285 = vld [vmem:[%s243 + $0x148] sm:$0xff]
      %v286 = vld [vmem:[%s243 + $0x150] sm:$0xff]
      %v287 = vld [vmem:[%s243 + $0x158] sm:$0xff]
      %v288 = vld [vmem:[%s243 + $0x160] sm:$0xff]
      %v289 = vld [vmem:[%s243 + $0x168] sm:$0xff]
      %v290 = vld [vmem:[%s243 + $0x170] sm:$0xff]
      %v291 = vld [vmem:[%s243 + $0x178] sm:$0xff]
      %v292 = vld [vmem:[%s243 + $0x180] sm:$0xff]
      %v293 = vld [vmem:[%s243 + $0x188] sm:$0xff]
      %v294 = vld [vmem:[%s243 + $0x190] sm:$0xff]
      %v295 = vld [vmem:[%s243 + $0x198] sm:$0xff]
      %v296 = vld [vmem:[%s243 + $0x1a0] sm:$0xff]
      %v297 = vld [vmem:[%s243 + $0x1a8] sm:$0xff]
      %v298 = vld [vmem:[%s243 + $0x1b0] sm:$0xff]
      %v299 = vld [vmem:[%s243 + $0x1b8] sm:$0xff]
      %v300 = vld [vmem:[%s243 + $0x1c0] sm:$0xff]
      %v301 = vld [vmem:[%s243 + $0x1c8] sm:$0xff]
      %v302 = vld [vmem:[%s243 + $0x1d0] sm:$0xff]
      %v303 = vld [vmem:[%s243 + $0x1d8] sm:$0xff]
      %312 = vrot.lane.b32.xlu0 %v245, 40
      %v313 = vpop.permute.xlu0 %312
      %314 = vrot.lane.b32.xlu0 %v246, 40
      %v315 = vpop.permute.xlu0 %314
      %316 = vrot.lane.b32.xlu0 %v247, 40
      %v317 = vpop.permute.xlu0 %316
      %318 = vrot.lane.b32.xlu0 %v248, 40
      %v319 = vpop.permute.xlu0 %318
      %320 = vrot.lane.b32.xlu0 %v249, 40
      %v321 = vpop.permute.xlu0 %320
      %322 = vrot.lane.b32.xlu0 %v250, 40
      %v323 = vpop.permute.xlu0 %322
      %324 = vrot.lane.b32.xlu0 %v251, 40
      %v325 = vpop.permute.xlu0 %324
      %326 = vrot.lane.b32.xlu0 %v252, 40
      %v327 = vpop.permute.xlu0 %326
      %337 = vrot.lane.b32.xlu0 %v246, 80
      %v338 = vpop.permute.xlu0 %337
      %339 = vrot.lane.b32.xlu0 %v247, 80
      %v340 = vpop.permute.xlu0 %339
      %341 = vrot.lane.b32.xlu0 %v248, 80
      %v342 = vpop.permute.xlu0 %341
      %343 = vrot.lane.b32.xlu0 %v249, 80
      %v344 = vpop.permute.xlu0 %343
      %345 = vrot.lane.b32.xlu0 %v250, 80
      %v346 = vpop.permute.xlu0 %345
      %347 = vrot.lane.b32.xlu0 %v251, 80
      %v348 = vpop.permute.xlu0 %347
      %349 = vrot.lane.b32.xlu0 %v252, 80
      %v350 = vpop.permute.xlu0 %349
      %351 = vrot.lane.b32.xlu0 %v253, 80
      %v352 = vpop.permute.xlu0 %351
      %362 = vrot.lane.b32.xlu0 %v247, 120
      %v363 = vpop.permute.xlu0 %362
      %364 = vrot.lane.b32.xlu0 %v248, 120
      %v365 = vpop.permute.xlu0 %364
      %366 = vrot.lane.b32.xlu0 %v249, 120
      %v367 = vpop.permute.xlu0 %366
      %368 = vrot.lane.b32.xlu0 %v250, 120
      %v369 = vpop.permute.xlu0 %368
      %370 = vrot.lane.b32.xlu0 %v251, 120
      %v371 = vpop.permute.xlu0 %370
      %372 = vrot.lane.b32.xlu0 %v252, 120
      %v373 = vpop.permute.xlu0 %372
      %374 = vrot.lane.b32.xlu0 %v253, 120
      %v375 = vpop.permute.xlu0 %374
      %376 = vrot.lane.b32.xlu0 %v254, 120
      %v377 = vpop.permute.xlu0 %376
      %387 = vrot.lane.b32.xlu0 %v248, 32
      %v388 = vpop.permute.xlu0 %387
      %389 = vrot.lane.b32.xlu0 %v249, 32
      %v390 = vpop.permute.xlu0 %389
      %391 = vrot.lane.b32.xlu0 %v250, 32
      %v392 = vpop.permute.xlu0 %391
      %393 = vrot.lane.b32.xlu0 %v251, 32
      %v394 = vpop.permute.xlu0 %393
      %395 = vrot.lane.b32.xlu0 %v252, 32
      %v396 = vpop.permute.xlu0 %395
      %397 = vrot.lane.b32.xlu0 %v253, 32
      %v398 = vpop.permute.xlu0 %397
      %399 = vrot.lane.b32.xlu0 %v254, 32
      %v400 = vpop.permute.xlu0 %399
      %401 = vrot.lane.b32.xlu0 %v255, 32
      %v402 = vpop.permute.xlu0 %401
      %419 = vrot.lane.b32.xlu0 %v256, 72
      %v420 = vpop.permute.xlu0 %419
      %421 = vrot.lane.b32.xlu0 %v257, 72
      %v422 = vpop.permute.xlu0 %421
      %423 = vrot.lane.b32.xlu0 %v258, 72
      %v424 = vpop.permute.xlu0 %423
      %425 = vrot.lane.b32.xlu0 %v259, 72
      %v426 = vpop.permute.xlu0 %425
      %427 = vrot.lane.b32.xlu0 %v260, 72
      %v428 = vpop.permute.xlu0 %427
      %429 = vrot.lane.b32.xlu0 %v261, 72
      %v430 = vpop.permute.xlu0 %429
      %431 = vrot.lane.b32.xlu0 %v262, 72
      %v432 = vpop.permute.xlu0 %431
      %433 = vrot.lane.b32.xlu0 %v263, 72
      %v434 = vpop.permute.xlu0 %433
      %444 = vrot.lane.b32.xlu0 %v257, 112
      %v445 = vpop.permute.xlu0 %444
      %446 = vrot.lane.b32.xlu0 %v258, 112
      %v447 = vpop.permute.xlu0 %446
      %448 = vrot.lane.b32.xlu0 %v259, 112
      %v449 = vpop.permute.xlu0 %448
      %450 = vrot.lane.b32.xlu0 %v260, 112
      %v451 = vpop.permute.xlu0 %450
      %452 = vrot.lane.b32.xlu0 %v261, 112
      %v453 = vpop.permute.xlu0 %452
      %454 = vrot.lane.b32.xlu0 %v262, 112
      %v455 = vpop.permute.xlu0 %454
      %456 = vrot.lane.b32.xlu0 %v263, 112
      %v457 = vpop.permute.xlu0 %456
      %458 = vrot.lane.b32.xlu0 %v264, 112
      %v459 = vpop.permute.xlu0 %458
      %469 = vrot.lane.b32.xlu0 %v258, 24
      %v470 = vpop.permute.xlu0 %469
      %471 = vrot.lane.b32.xlu0 %v259, 24
      %v472 = vpop.permute.xlu0 %471
      %473 = vrot.lane.b32.xlu0 %v260, 24
      %v474 = vpop.permute.xlu0 %473
      %475 = vrot.lane.b32.xlu0 %v261, 24
      %v476 = vpop.permute.xlu0 %475
      %477 = vrot.lane.b32.xlu0 %v262, 24
      %v478 = vpop.permute.xlu0 %477
      %479 = vrot.lane.b32.xlu0 %v263, 24
      %v480 = vpop.permute.xlu0 %479
      %481 = vrot.lane.b32.xlu0 %v264, 24
      %v482 = vpop.permute.xlu0 %481
      %483 = vrot.lane.b32.xlu0 %v265, 24
      %v484 = vpop.permute.xlu0 %483
      %494 = vrot.lane.b32.xlu0 %v259, 64
      %v495 = vpop.permute.xlu0 %494
      %496 = vrot.lane.b32.xlu0 %v260, 64
      %v497 = vpop.permute.xlu0 %496
      %498 = vrot.lane.b32.xlu0 %v261, 64
      %v499 = vpop.permute.xlu0 %498
      %500 = vrot.lane.b32.xlu0 %v262, 64
      %v501 = vpop.permute.xlu0 %500
      %502 = vrot.lane.b32.xlu0 %v263, 64
      %v503 = vpop.permute.xlu0 %502
      %504 = vrot.lane.b32.xlu0 %v264, 64
      %v505 = vpop.permute.xlu0 %504
      %506 = vrot.lane.b32.xlu0 %v265, 64
      %v507 = vpop.permute.xlu0 %506
      %508 = vrot.lane.b32.xlu0 %v266, 64
      %v509 = vpop.permute.xlu0 %508
      %519 = vrot.lane.b32.xlu0 %v260, 104
      %v520 = vpop.permute.xlu0 %519
      %521 = vrot.lane.b32.xlu0 %v261, 104
      %v522 = vpop.permute.xlu0 %521
      %523 = vrot.lane.b32.xlu0 %v262, 104
      %v524 = vpop.permute.xlu0 %523
      %525 = vrot.lane.b32.xlu0 %v263, 104
      %v526 = vpop.permute.xlu0 %525
      %527 = vrot.lane.b32.xlu0 %v264, 104
      %v528 = vpop.permute.xlu0 %527
      %529 = vrot.lane.b32.xlu0 %v265, 104
      %v530 = vpop.permute.xlu0 %529
      %531 = vrot.lane.b32.xlu0 %v266, 104
      %v532 = vpop.permute.xlu0 %531
      %533 = vrot.lane.b32.xlu0 %v267, 104
      %v534 = vpop.permute.xlu0 %533
      %551 = vrot.lane.b32.xlu0 %v268, 16
      %v552 = vpop.permute.xlu0 %551
      %553 = vrot.lane.b32.xlu0 %v269, 16
      %v554 = vpop.permute.xlu0 %553
      %555 = vrot.lane.b32.xlu0 %v270, 16
      %v556 = vpop.permute.xlu0 %555
      %557 = vrot.lane.b32.xlu0 %v271, 16
      %v558 = vpop.permute.xlu0 %557
      %559 = vrot.lane.b32.xlu0 %v272, 16
      %v560 = vpop.permute.xlu0 %559
      %561 = vrot.lane.b32.xlu0 %v273, 16
      %v562 = vpop.permute.xlu0 %561
      %563 = vrot.lane.b32.xlu0 %v274, 16
      %v564 = vpop.permute.xlu0 %563
      %565 = vrot.lane.b32.xlu0 %v275, 16
      %v566 = vpop.permute.xlu0 %565
      %576 = vrot.lane.b32.xlu0 %v269, 56
      %v577 = vpop.permute.xlu0 %576
      %578 = vrot.lane.b32.xlu0 %v270, 56
      %v579 = vpop.permute.xlu0 %578
      %580 = vrot.lane.b32.xlu0 %v271, 56
      %v581 = vpop.permute.xlu0 %580
      %582 = vrot.lane.b32.xlu0 %v272, 56
      %v583 = vpop.permute.xlu0 %582
      %584 = vrot.lane.b32.xlu0 %v273, 56
      %v585 = vpop.permute.xlu0 %584
      %586 = vrot.lane.b32.xlu0 %v274, 56
      %v587 = vpop.permute.xlu0 %586
      %588 = vrot.lane.b32.xlu0 %v275, 56
      %v589 = vpop.permute.xlu0 %588
      %590 = vrot.lane.b32.xlu0 %v276, 56
      %v591 = vpop.permute.xlu0 %590
      %601 = vrot.lane.b32.xlu0 %v270, 96
      %v602 = vpop.permute.xlu0 %601
      %603 = vrot.lane.b32.xlu0 %v271, 96
      %v604 = vpop.permute.xlu0 %603
      %605 = vrot.lane.b32.xlu0 %v272, 96
      %v606 = vpop.permute.xlu0 %605
      %607 = vrot.lane.b32.xlu0 %v273, 96
      %v608 = vpop.permute.xlu0 %607
      %609 = vrot.lane.b32.xlu0 %v274, 96
      %v610 = vpop.permute.xlu0 %609
      %611 = vrot.lane.b32.xlu0 %v275, 96
      %v612 = vpop.permute.xlu0 %611
      %613 = vrot.lane.b32.xlu0 %v276, 96
      %v614 = vpop.permute.xlu0 %613
      %615 = vrot.lane.b32.xlu0 %v277, 96
      %v616 = vpop.permute.xlu0 %615
      %626 = vrot.lane.b32.xlu0 %v271, 8
      %v627 = vpop.permute.xlu0 %626
      %628 = vrot.lane.b32.xlu0 %v272, 8
      %v629 = vpop.permute.xlu0 %628
      %630 = vrot.lane.b32.xlu0 %v273, 8
      %v631 = vpop.permute.xlu0 %630
      %632 = vrot.lane.b32.xlu0 %v274, 8
      %v633 = vpop.permute.xlu0 %632
      %634 = vrot.lane.b32.xlu0 %v275, 8
      %v635 = vpop.permute.xlu0 %634
      %636 = vrot.lane.b32.xlu0 %v276, 8
      %v637 = vpop.permute.xlu0 %636
      %638 = vrot.lane.b32.xlu0 %v277, 8
      %v639 = vpop.permute.xlu0 %638
      %640 = vrot.lane.b32.xlu0 %v278, 8
      %v641 = vpop.permute.xlu0 %640
      %651 = vrot.lane.b32.xlu0 %v272, 48
      %v652 = vpop.permute.xlu0 %651
      %653 = vrot.lane.b32.xlu0 %v273, 48
      %v654 = vpop.permute.xlu0 %653
      %655 = vrot.lane.b32.xlu0 %v274, 48
      %v656 = vpop.permute.xlu0 %655
      %657 = vrot.lane.b32.xlu0 %v275, 48
      %v658 = vpop.permute.xlu0 %657
      %659 = vrot.lane.b32.xlu0 %v276, 48
      %v660 = vpop.permute.xlu0 %659
      %661 = vrot.lane.b32.xlu0 %v277, 48
      %v662 = vpop.permute.xlu0 %661
      %663 = vrot.lane.b32.xlu0 %v278, 48
      %v664 = vpop.permute.xlu0 %663
      %665 = vrot.lane.b32.xlu0 %v279, 48
      %v666 = vpop.permute.xlu0 %665
      %683 = vrot.lane.b32.xlu0 %v280, 88
      %v684 = vpop.permute.xlu0 %683
      %685 = vrot.lane.b32.xlu0 %v281, 88
      %v686 = vpop.permute.xlu0 %685
      %687 = vrot.lane.b32.xlu0 %v282, 88
      %v688 = vpop.permute.xlu0 %687
      %689 = vrot.lane.b32.xlu0 %v283, 88
      %v690 = vpop.permute.xlu0 %689
      %691 = vrot.lane.b32.xlu0 %v284, 88
      %v692 = vpop.permute.xlu0 %691
      %693 = vrot.lane.b32.xlu0 %v285, 88
      %v694 = vpop.permute.xlu0 %693
      %695 = vrot.lane.b32.xlu0 %v286, 88
      %v696 = vpop.permute.xlu0 %695
      %697 = vrot.lane.b32.xlu0 %v287, 88
      %v698 = vpop.permute.xlu0 %697
      %vm707 = vcmask 326656
      %v708 = vsel %vm707, %v244, %v313
      %v709 = vsel %vm707, %v245, %v315
      %v710 = vsel %vm707, %v246, %v317
      %v711 = vsel %vm707, %v247, %v319
      %v712 = vsel %vm707, %v248, %v321
      %v713 = vsel %vm707, %v249, %v323
      %v714 = vsel %vm707, %v250, %v325
      %v715 = vsel %vm707, %v251, %v327
      %vm716 = vcmask 654336
      %v717 = vsel %vm716, %v708, %v338
      %v718 = vsel %vm716, %v709, %v340
      %v719 = vsel %vm716, %v710, %v342
      %v720 = vsel %vm716, %v711, %v344
      %v721 = vsel %vm716, %v712, %v346
      %v722 = vsel %vm716, %v713, %v348
      %v723 = vsel %vm716, %v714, %v350
      %v724 = vsel %vm716, %v715, %v352
      %vm725 = vcmask 982016
      %v726 = vsel %vm725, %v717, %v363
      %v727 = vsel %vm725, %v718, %v365
      %v728 = vsel %vm725, %v719, %v367
      %v729 = vsel %vm725, %v720, %v369
      %v730 = vsel %vm725, %v721, %v371
      %v731 = vsel %vm725, %v722, %v373
      %v732 = vsel %vm725, %v723, %v375
      %v733 = vsel %vm725, %v724, %v377
      %vm734 = vcmask 261120
      %v735 = vsel %vm734, %v363, %v388
      %v736 = vsel %vm734, %v365, %v390
      %v737 = vsel %vm734, %v367, %v392
      %v738 = vsel %vm734, %v369, %v394
      %v739 = vsel %vm734, %v371, %v396
      %v740 = vsel %vm734, %v373, %v398
      %v741 = vsel %vm734, %v375, %v400
      %v742 = vsel %vm734, %v377, %v402
      %vm743 = vcmask 588800
      %v744 = vsel %vm743, %v735, %v420
      %v745 = vsel %vm743, %v736, %v422
      %v746 = vsel %vm743, %v737, %v424
      %v747 = vsel %vm743, %v738, %v426
      %v748 = vsel %vm743, %v739, %v428
      %v749 = vsel %vm743, %v740, %v430
      %v750 = vsel %vm743, %v741, %v432
      %v751 = vsel %vm743, %v742, %v434
      %vm752 = vcmask 916480
      %v753 = vsel %vm752, %v744, %v445
      %v754 = vsel %vm752, %v745, %v447
      %v755 = vsel %vm752, %v746, %v449
      %v756 = vsel %vm752, %v747, %v451
      %v757 = vsel %vm752, %v748, %v453
      %v758 = vsel %vm752, %v749, %v455
      %v759 = vsel %vm752, %v750, %v457
      %v760 = vsel %vm752, %v751, %v459
      %vm761 = vcmask 195584
      %v762 = vsel %vm761, %v445, %v470
      %v763 = vsel %vm761, %v447, %v472
      %v764 = vsel %vm761, %v449, %v474
      %v765 = vsel %vm761, %v451, %v476
      %v766 = vsel %vm761, %v453, %v478
      %v767 = vsel %vm761, %v455, %v480
      %v768 = vsel %vm761, %v457, %v482
      %v769 = vsel %vm761, %v459, %v484
      %vm770 = vcmask 523264
      %v771 = vsel %vm770, %v762, %v495
      %v772 = vsel %vm770, %v763, %v497
      %v773 = vsel %vm770, %v764, %v499
      %v774 = vsel %vm770, %v765, %v501
      %v775 = vsel %vm770, %v766, %v503
      %v776 = vsel %vm770, %v767, %v505
      %v777 = vsel %vm770, %v768, %v507
      %v778 = vsel %vm770, %v769, %v509
      %vm779 = vcmask 850944
      %v780 = vsel %vm779, %v771, %v520
      %v781 = vsel %vm779, %v772, %v522
      %v782 = vsel %vm779, %v773, %v524
      %v783 = vsel %vm779, %v774, %v526
      %v784 = vsel %vm779, %v775, %v528
      %v785 = vsel %vm779, %v776, %v530
      %v786 = vsel %vm779, %v777, %v532
      %v787 = vsel %vm779, %v778, %v534
      %vm788 = vcmask 130048
      %v789 = vsel %vm788, %v520, %v552
      %v790 = vsel %vm788, %v522, %v554
      %v791 = vsel %vm788, %v524, %v556
      %v792 = vsel %vm788, %v526, %v558
      %v793 = vsel %vm788, %v528, %v560
      %v794 = vsel %vm788, %v530, %v562
      %v795 = vsel %vm788, %v532, %v564
      %v796 = vsel %vm788, %v534, %v566
      %vm797 = vcmask 457728
      %v798 = vsel %vm797, %v789, %v577
      %v799 = vsel %vm797, %v790, %v579
      %v800 = vsel %vm797, %v791, %v581
      %v801 = vsel %vm797, %v792, %v583
      %v802 = vsel %vm797, %v793, %v585
      %v803 = vsel %vm797, %v794, %v587
      %v804 = vsel %vm797, %v795, %v589
      %v805 = vsel %vm797, %v796, %v591
      %vm806 = vcmask 785408
      %v807 = vsel %vm806, %v798, %v602
      %v808 = vsel %vm806, %v799, %v604
      %v809 = vsel %vm806, %v800, %v606
      %v810 = vsel %vm806, %v801, %v608
      %v811 = vsel %vm806, %v802, %v610
      %v812 = vsel %vm806, %v803, %v612
      %v813 = vsel %vm806, %v804, %v614
      %v814 = vsel %vm806, %v805, %v616
      %vm815 = vcmask 64512
      %v816 = vsel %vm815, %v602, %v627
      %v817 = vsel %vm815, %v604, %v629
      %v818 = vsel %vm815, %v606, %v631
      %v819 = vsel %vm815, %v608, %v633
      %v820 = vsel %vm815, %v610, %v635
      %v821 = vsel %vm815, %v612, %v637
      %v822 = vsel %vm815, %v614, %v639
      %v823 = vsel %vm815, %v616, %v641
      %vm824 = vcmask 392192
      %v825 = vsel %vm824, %v816, %v652
      %v826 = vsel %vm824, %v817, %v654
      %v827 = vsel %vm824, %v818, %v656
      %v828 = vsel %vm824, %v819, %v658
      %v829 = vsel %vm824, %v820, %v660
      %v830 = vsel %vm824, %v821, %v662
      %v831 = vsel %vm824, %v822, %v664
      %v832 = vsel %vm824, %v823, %v666
      %vm833 = vcmask 719872
      %v834 = vsel %vm833, %v825, %v684
      %v835 = vsel %vm833, %v826, %v686
      %v836 = vsel %vm833, %v827, %v688
      %v837 = vsel %vm833, %v828, %v690
      %v838 = vsel %vm833, %v829, %v692
      %v839 = vsel %vm833, %v830, %v694
      %v840 = vsel %vm833, %v831, %v696
      %v841 = vsel %vm833, %v832, %v698
      %844 = vrot.lane.b32.xlu0 %v282, 40
      %v845 = vpop.permute.xlu0 %844
      %846 = vrot.lane.b32.xlu0 %v283, 40
      %v847 = vpop.permute.xlu0 %846
      %848 = vrot.lane.b32.xlu0 %v284, 40
      %v849 = vpop.permute.xlu0 %848
      %850 = vrot.lane.b32.xlu0 %v285, 40
      %v851 = vpop.permute.xlu0 %850
      %852 = vrot.lane.b32.xlu0 %v286, 40
      %v853 = vpop.permute.xlu0 %852
      %854 = vrot.lane.b32.xlu0 %v287, 40
      %v855 = vpop.permute.xlu0 %854
      %856 = vrot.lane.b32.xlu0 %v288, 40
      %v857 = vpop.permute.xlu0 %856
      %858 = vrot.lane.b32.xlu0 %v289, 40
      %v859 = vpop.permute.xlu0 %858
      %869 = vrot.lane.b32.xlu0 %v283, 80
      %v870 = vpop.permute.xlu0 %869
      %871 = vrot.lane.b32.xlu0 %v284, 80
      %v872 = vpop.permute.xlu0 %871
      %873 = vrot.lane.b32.xlu0 %v285, 80
      %v874 = vpop.permute.xlu0 %873
      %875 = vrot.lane.b32.xlu0 %v286, 80
      %v876 = vpop.permute.xlu0 %875
      %877 = vrot.lane.b32.xlu0 %v287, 80
      %v878 = vpop.permute.xlu0 %877
      %879 = vrot.lane.b32.xlu0 %v288, 80
      %v880 = vpop.permute.xlu0 %879
      %881 = vrot.lane.b32.xlu0 %v289, 80
      %v882 = vpop.permute.xlu0 %881
      %883 = vrot.lane.b32.xlu0 %v290, 80
      %v884 = vpop.permute.xlu0 %883
      %894 = vrot.lane.b32.xlu0 %v284, 120
      %v895 = vpop.permute.xlu0 %894
      %896 = vrot.lane.b32.xlu0 %v285, 120
      %v897 = vpop.permute.xlu0 %896
      %898 = vrot.lane.b32.xlu0 %v286, 120
      %v899 = vpop.permute.xlu0 %898
      %900 = vrot.lane.b32.xlu0 %v287, 120
      %v901 = vpop.permute.xlu0 %900
      %902 = vrot.lane.b32.xlu0 %v288, 120
      %v903 = vpop.permute.xlu0 %902
      %904 = vrot.lane.b32.xlu0 %v289, 120
      %v905 = vpop.permute.xlu0 %904
      %906 = vrot.lane.b32.xlu0 %v290, 120
      %v907 = vpop.permute.xlu0 %906
      %908 = vrot.lane.b32.xlu0 %v291, 120
      %v909 = vpop.permute.xlu0 %908
      %926 = vrot.lane.b32.xlu0 %v292, 32
      %v927 = vpop.permute.xlu0 %926
      %928 = vrot.lane.b32.xlu0 %v293, 32
      %v929 = vpop.permute.xlu0 %928
      %930 = vrot.lane.b32.xlu0 %v294, 32
      %v931 = vpop.permute.xlu0 %930
      %932 = vrot.lane.b32.xlu0 %v295, 32
      %v933 = vpop.permute.xlu0 %932
      %934 = vrot.lane.b32.xlu0 %v296, 32
      %v935 = vpop.permute.xlu0 %934
      %936 = vrot.lane.b32.xlu0 %v297, 32
      %v937 = vpop.permute.xlu0 %936
      %938 = vrot.lane.b32.xlu0 %v298, 32
      %v939 = vpop.permute.xlu0 %938
      %940 = vrot.lane.b32.xlu0 %v299, 32
      %v941 = vpop.permute.xlu0 %940
      %951 = vrot.lane.b32.xlu0 %v293, 72
      %v952 = vpop.permute.xlu0 %951
      %953 = vrot.lane.b32.xlu0 %v294, 72
      %v954 = vpop.permute.xlu0 %953
      %955 = vrot.lane.b32.xlu0 %v295, 72
      %v956 = vpop.permute.xlu0 %955
      %957 = vrot.lane.b32.xlu0 %v296, 72
      %v958 = vpop.permute.xlu0 %957
      %959 = vrot.lane.b32.xlu0 %v297, 72
      %v960 = vpop.permute.xlu0 %959
      %961 = vrot.lane.b32.xlu0 %v298, 72
      %v962 = vpop.permute.xlu0 %961
      %963 = vrot.lane.b32.xlu0 %v299, 72
      %v964 = vpop.permute.xlu0 %963
      %965 = vrot.lane.b32.xlu0 %v300, 72
      %v966 = vpop.permute.xlu0 %965
      %976 = vrot.lane.b32.xlu0 %v294, 112
      %v977 = vpop.permute.xlu0 %976
      %978 = vrot.lane.b32.xlu0 %v295, 112
      %v979 = vpop.permute.xlu0 %978
      %980 = vrot.lane.b32.xlu0 %v296, 112
      %v981 = vpop.permute.xlu0 %980
      %982 = vrot.lane.b32.xlu0 %v297, 112
      %v983 = vpop.permute.xlu0 %982
      %984 = vrot.lane.b32.xlu0 %v298, 112
      %v985 = vpop.permute.xlu0 %984
      %986 = vrot.lane.b32.xlu0 %v299, 112
      %v987 = vpop.permute.xlu0 %986
      %988 = vrot.lane.b32.xlu0 %v300, 112
      %v989 = vpop.permute.xlu0 %988
      %990 = vrot.lane.b32.xlu0 %v301, 112
      %v991 = vpop.permute.xlu0 %990
      %1001 = vrot.lane.b32.xlu0 %v295, 24
      %v1002 = vpop.permute.xlu0 %1001
      %1003 = vrot.lane.b32.xlu0 %v296, 24
      %v1004 = vpop.permute.xlu0 %1003
      %1005 = vrot.lane.b32.xlu0 %v297, 24
      %v1006 = vpop.permute.xlu0 %1005
      %1007 = vrot.lane.b32.xlu0 %v298, 24
      %v1008 = vpop.permute.xlu0 %1007
      %1009 = vrot.lane.b32.xlu0 %v299, 24
      %v1010 = vpop.permute.xlu0 %1009
      %1011 = vrot.lane.b32.xlu0 %v300, 24
      %v1012 = vpop.permute.xlu0 %1011
      %1013 = vrot.lane.b32.xlu0 %v301, 24
      %v1014 = vpop.permute.xlu0 %1013
      %1015 = vrot.lane.b32.xlu0 %v302, 24
      %v1016 = vpop.permute.xlu0 %1015
      %1026 = vrot.lane.b32.xlu0 %v296, 64
      %v1027 = vpop.permute.xlu0 %1026
      %1028 = vrot.lane.b32.xlu0 %v297, 64
      %v1029 = vpop.permute.xlu0 %1028
      %1030 = vrot.lane.b32.xlu0 %v298, 64
      %v1031 = vpop.permute.xlu0 %1030
      %1032 = vrot.lane.b32.xlu0 %v299, 64
      %v1033 = vpop.permute.xlu0 %1032
      %1034 = vrot.lane.b32.xlu0 %v300, 64
      %v1035 = vpop.permute.xlu0 %1034
      %1036 = vrot.lane.b32.xlu0 %v301, 64
      %v1037 = vpop.permute.xlu0 %1036
      %1038 = vrot.lane.b32.xlu0 %v302, 64
      %v1039 = vpop.permute.xlu0 %1038
      %1040 = vrot.lane.b32.xlu0 %v303, 64
      %v1041 = vpop.permute.xlu0 %1040
      %v1050 = vsel %vm707, %v281, %v845
      %v1051 = vsel %vm707, %v282, %v847
      %v1052 = vsel %vm707, %v283, %v849
      %v1053 = vsel %vm707, %v284, %v851
      %v1054 = vsel %vm707, %v285, %v853
      %v1055 = vsel %vm707, %v286, %v855
      %v1056 = vsel %vm707, %v287, %v857
      %v1057 = vsel %vm707, %v288, %v859
      %v1058 = vsel %vm716, %v1050, %v870
      %v1059 = vsel %vm716, %v1051, %v872
      %v1060 = vsel %vm716, %v1052, %v874
      %v1061 = vsel %vm716, %v1053, %v876
      %v1062 = vsel %vm716, %v1054, %v878
      %v1063 = vsel %vm716, %v1055, %v880
      %v1064 = vsel %vm716, %v1056, %v882
      %v1065 = vsel %vm716, %v1057, %v884
      %v1066 = vsel %vm725, %v1058, %v895
      %v1067 = vsel %vm725, %v1059, %v897
      %v1068 = vsel %vm725, %v1060, %v899
      %v1069 = vsel %vm725, %v1061, %v901
      %v1070 = vsel %vm725, %v1062, %v903
      %v1071 = vsel %vm725, %v1063, %v905
      %v1072 = vsel %vm725, %v1064, %v907
      %v1073 = vsel %vm725, %v1065, %v909
      %v1074 = vsel %vm734, %v895, %v927
      %v1075 = vsel %vm734, %v897, %v929
      %v1076 = vsel %vm734, %v899, %v931
      %v1077 = vsel %vm734, %v901, %v933
      %v1078 = vsel %vm734, %v903, %v935
      %v1079 = vsel %vm734, %v905, %v937
      %v1080 = vsel %vm734, %v907, %v939
      %v1081 = vsel %vm734, %v909, %v941
      %v1082 = vsel %vm743, %v1074, %v952
      %v1083 = vsel %vm743, %v1075, %v954
      %v1084 = vsel %vm743, %v1076, %v956
      %v1085 = vsel %vm743, %v1077, %v958
      %v1086 = vsel %vm743, %v1078, %v960
      %v1087 = vsel %vm743, %v1079, %v962
      %v1088 = vsel %vm743, %v1080, %v964
      %v1089 = vsel %vm743, %v1081, %v966
      %v1090 = vsel %vm752, %v1082, %v977
      %v1091 = vsel %vm752, %v1083, %v979
      %v1092 = vsel %vm752, %v1084, %v981
      %v1093 = vsel %vm752, %v1085, %v983
      %v1094 = vsel %vm752, %v1086, %v985
      %v1095 = vsel %vm752, %v1087, %v987
      %v1096 = vsel %vm752, %v1088, %v989
      %v1097 = vsel %vm752, %v1089, %v991
      %v1098 = vsel %vm761, %v977, %v1002
      %v1099 = vsel %vm761, %v979, %v1004
      %v1100 = vsel %vm761, %v981, %v1006
      %v1101 = vsel %vm761, %v983, %v1008
      %v1102 = vsel %vm761, %v985, %v1010
      %v1103 = vsel %vm761, %v987, %v1012
      %v1104 = vsel %vm761, %v989, %v1014
      %v1105 = vsel %vm761, %v991, %v1016
      %v1106 = vsel %vm770, %v1098, %v1027
      %v1107 = vsel %vm770, %v1099, %v1029
      %v1108 = vsel %vm770, %v1100, %v1031
      %v1109 = vsel %vm770, %v1101, %v1033
      %v1110 = vsel %vm770, %v1102, %v1035
      %v1111 = vsel %vm770, %v1103, %v1037
      %v1112 = vsel %vm770, %v1104, %v1039
      %v1113 = vsel %vm770, %v1105, %v1041
      %v1114 = vpack.c.bf16 %v727, %v726
      %v1115 = vpack.c.bf16 %v754, %v753
      %v1116 = vpack.c.bf16 %v781, %v780
      %v1117 = vpack.c.bf16 %v808, %v807
      %v1118 = vpack.c.bf16 %v835, %v834
      %v1119 = vpack.c.bf16 %v1067, %v1066
      %v1120 = vpack.c.bf16 %v1091, %v1090
      %v1121 = vpack.c.bf16 %v1107, %v1106
      %v1122 = vpack.c.bf16 %v729, %v728
      %v1123 = vpack.c.bf16 %v756, %v755
      %v1124 = vpack.c.bf16 %v783, %v782
      %v1125 = vpack.c.bf16 %v810, %v809
      %v1126 = vpack.c.bf16 %v837, %v836
      %v1127 = vpack.c.bf16 %v1069, %v1068
      %v1128 = vpack.c.bf16 %v1093, %v1092
      %v1129 = vpack.c.bf16 %v1109, %v1108
      %v1130 = vpack.c.bf16 %v731, %v730
      %v1131 = vpack.c.bf16 %v758, %v757
      %v1132 = vpack.c.bf16 %v785, %v784
      %v1133 = vpack.c.bf16 %v812, %v811
      %v1134 = vpack.c.bf16 %v839, %v838
      %v1135 = vpack.c.bf16 %v1071, %v1070
      %v1136 = vpack.c.bf16 %v1095, %v1094
      %v1137 = vpack.c.bf16 %v1111, %v1110
      %v1138 = vpack.c.bf16 %v733, %v732
      %v1139 = vpack.c.bf16 %v760, %v759
      %v1140 = vpack.c.bf16 %v787, %v786
      %v1141 = vpack.c.bf16 %v814, %v813
      %v1142 = vpack.c.bf16 %v841, %v840
      %v1143 = vpack.c.bf16 %v1073, %v1072
      %v1144 = vpack.c.bf16 %v1097, %v1096
      %v1145 = vpack.c.bf16 %v1113, %v1112
      %v1146 = vld [vmem:[%s1] sm:$0xf]
      %v1147 = vld [vmem:[%s1 + $0x4] sm:$0xf]
      %v1148 = vld [vmem:[%s1 + $0x8] sm:$0xf]
      %v1149 = vld [vmem:[%s1 + $0xc] sm:$0xf]
      %v1150 = vld [vmem:[%s1 + $0x10] sm:$0xf]
      %v1151 = vld [vmem:[%s1 + $0x14] sm:$0xf]
      %v1152 = vld [vmem:[%s1 + $0x18] sm:$0xf]
      %v1153 = vld [vmem:[%s1 + $0x1c] sm:$0xf]
      %v1154 = vld [vmem:[%s1 + $0x20] sm:$0xf]
      %v1155 = vld [vmem:[%s1 + $0x24] sm:$0xf]
      %v1156 = vld [vmem:[%s1 + $0x28] sm:$0xf]
      %v1157 = vld [vmem:[%s1 + $0x2c] sm:$0xf]
      %v1158 = vld [vmem:[%s1 + $0x30] sm:$0xf]
      %v1159 = vld [vmem:[%s1 + $0x34] sm:$0xf]
      %v1160 = vld [vmem:[%s1 + $0x38] sm:$0xf]
      %v1161 = vld [vmem:[%s1 + $0x3c] sm:$0xf]
      %v1162 = vld [vmem:[%s1 + $0x40] sm:$0xf]
      %v1163 = vld [vmem:[%s1 + $0x44] sm:$0xf]
      %v1164 = vld [vmem:[%s1 + $0x48] sm:$0xf]
      %v1165 = vld [vmem:[%s1 + $0x4c] sm:$0xf]
      %v1166 = vld [vmem:[%s1 + $0x50] sm:$0xf]
      %v1167 = vld [vmem:[%s1 + $0x54] sm:$0xf]
      %v1168 = vld [vmem:[%s1 + $0x58] sm:$0xf]
      %v1169 = vld [vmem:[%s1 + $0x5c] sm:$0xf]
      %v1170 = vld [vmem:[%s1 + $0x60] sm:$0xf]
      %v1171 = vld [vmem:[%s1 + $0x64] sm:$0xf]
      %v1172 = vld [vmem:[%s1 + $0x68] sm:$0xf]
      %v1173 = vld [vmem:[%s1 + $0x6c] sm:$0xf]
      %v1174 = vld [vmem:[%s1 + $0x70] sm:$0xf]
      %v1175 = vld [vmem:[%s1 + $0x74] sm:$0xf]
      %v1176 = vld [vmem:[%s1 + $0x78] sm:$0xf]
      %v1177 = vld [vmem:[%s1 + $0x7c] sm:$0xf]
      %v1178 = vld [vmem:[%s1 + $0x80] sm:$0xf]
      %v1179 = vld [vmem:[%s1 + $0x84] sm:$0xf]
      %v1180 = vld [vmem:[%s1 + $0x88] sm:$0xf]
      %v1181 = vld [vmem:[%s1 + $0x8c] sm:$0xf]
      %v1182 = vld [vmem:[%s1 + $0x90] sm:$0xf]
      %v1183 = vld [vmem:[%s1 + $0x94] sm:$0xf]
      %v1184 = vld [vmem:[%s1 + $0x98] sm:$0xf]
      %v1185 = vld [vmem:[%s1 + $0x9c] sm:$0xf]
      %v1186 = vld [vmem:[%s1 + $0xa0] sm:$0xf]
      %v1187 = vld [vmem:[%s1 + $0xa4] sm:$0xf]
      %v1188 = vld [vmem:[%s1 + $0xa8] sm:$0xf]
      %v1189 = vld [vmem:[%s1 + $0xac] sm:$0xf]
      %v1190 = vld [vmem:[%s1 + $0xb0] sm:$0xf]
      %v1191 = vld [vmem:[%s1 + $0xb4] sm:$0xf]
      %v1192 = vld [vmem:[%s1 + $0xb8] sm:$0xf]
      %v1193 = vld [vmem:[%s1 + $0xbc] sm:$0xf]
      %v1194 = vld [vmem:[%s1 + $0xc0] sm:$0xf]
      %v1195 = vld [vmem:[%s1 + $0xc4] sm:$0xf]
      %v1196 = vld [vmem:[%s1 + $0xc8] sm:$0xf]
      %v1197 = vld [vmem:[%s1 + $0xcc] sm:$0xf]
      %v1198 = vld [vmem:[%s1 + $0xd0] sm:$0xf]
      %v1199 = vld [vmem:[%s1 + $0xd4] sm:$0xf]
      %v1200 = vld [vmem:[%s1 + $0xd8] sm:$0xf]
      %v1201 = vld [vmem:[%s1 + $0xdc] sm:$0xf]
      %v1202 = vld [vmem:[%s1 + $0xe0] sm:$0xf]
      %v1203 = vld [vmem:[%s1 + $0xe4] sm:$0xf]
      %v1204 = vld [vmem:[%s1 + $0xe8] sm:$0xf]
      %v1205 = vld [vmem:[%s1 + $0xec] sm:$0xf]
      %v1206 = vld [vmem:[%s1 + $0xf0] sm:$0xf]
      %v1207 = vld [vmem:[%s1 + $0xf4] sm:$0xf]
      %v1208 = vld [vmem:[%s1 + $0xf8] sm:$0xf]
      %v1209 = vld [vmem:[%s1 + $0xfc] sm:$0xf]
      %v1210 = vld [vmem:[%s1 + $0x100] sm:$0xf]
      %v1211 = vld [vmem:[%s1 + $0x104] sm:$0xf]
      %v1212 = vld [vmem:[%s1 + $0x108] sm:$0xf]
      %v1213 = vld [vmem:[%s1 + $0x10c] sm:$0xf]
      %v1214 = vld [vmem:[%s1 + $0x110] sm:$0xf]
      %v1215 = vld [vmem:[%s1 + $0x114] sm:$0xf]
      %v1216 = vld [vmem:[%s1 + $0x118] sm:$0xf]
      %v1217 = vld [vmem:[%s1 + $0x11c] sm:$0xf]
      %v1218 = vld [vmem:[%s1 + $0x120] sm:$0xf]
      %v1219 = vld [vmem:[%s1 + $0x124] sm:$0xf]
      %v1220 = vld [vmem:[%s1 + $0x128] sm:$0xf]
      %v1221 = vld [vmem:[%s1 + $0x12c] sm:$0xf]
      %v1222 = vld [vmem:[%s1 + $0x130] sm:$0xf]
      %v1223 = vld [vmem:[%s1 + $0x134] sm:$0xf]
      %v1224 = vld [vmem:[%s1 + $0x138] sm:$0xf]
      %v1225 = vld [vmem:[%s1 + $0x13c] sm:$0xf]
      %v1226 = vld [vmem:[%s1 + $0x140] sm:$0xf]
      %v1227 = vld [vmem:[%s1 + $0x144] sm:$0xf]
      %v1228 = vld [vmem:[%s1 + $0x148] sm:$0xf]
      %v1229 = vld [vmem:[%s1 + $0x14c] sm:$0xf]
      %v1230 = vld [vmem:[%s1 + $0x150] sm:$0xf]
      %v1231 = vld [vmem:[%s1 + $0x154] sm:$0xf]
      %v1232 = vld [vmem:[%s1 + $0x158] sm:$0xf]
      %v1233 = vld [vmem:[%s1 + $0x15c] sm:$0xf]
      %v1234 = vld [vmem:[%s1 + $0x160] sm:$0xf]
      %v1235 = vld [vmem:[%s1 + $0x164] sm:$0xf]
      %v1236 = vld [vmem:[%s1 + $0x168] sm:$0xf]
      %v1237 = vld [vmem:[%s1 + $0x16c] sm:$0xf]
      %v1238 = vld [vmem:[%s1 + $0x170] sm:$0xf]
      %v1239 = vld [vmem:[%s1 + $0x174] sm:$0xf]
      %v1240 = vld [vmem:[%s1 + $0x178] sm:$0xf]
      %v1241 = vld [vmem:[%s1 + $0x17c] sm:$0xf]
      %v1242 = vld [vmem:[%s1 + $0x180] sm:$0xf]
      %v1243 = vld [vmem:[%s1 + $0x184] sm:$0xf]
      %v1244 = vld [vmem:[%s1 + $0x188] sm:$0xf]
      %v1245 = vld [vmem:[%s1 + $0x18c] sm:$0xf]
      %v1246 = vld [vmem:[%s1 + $0x190] sm:$0xf]
      %v1247 = vld [vmem:[%s1 + $0x194] sm:$0xf]
      %v1248 = vld [vmem:[%s1 + $0x198] sm:$0xf]
      %v1249 = vld [vmem:[%s1 + $0x19c] sm:$0xf]
      %v1250 = vld [vmem:[%s1 + $0x1a0] sm:$0xf]
      %v1251 = vld [vmem:[%s1 + $0x1a4] sm:$0xf]
      %v1252 = vld [vmem:[%s1 + $0x1a8] sm:$0xf]
      %v1253 = vld [vmem:[%s1 + $0x1ac] sm:$0xf]
      %v1254 = vld [vmem:[%s1 + $0x1b0] sm:$0xf]
      %v1255 = vld [vmem:[%s1 + $0x1b4] sm:$0xf]
      %v1256 = vld [vmem:[%s1 + $0x1b8] sm:$0xf]
      %v1257 = vld [vmem:[%s1 + $0x1bc] sm:$0xf]
      %v1258 = vld [vmem:[%s1 + $0x1c0] sm:$0xf]
      %v1259 = vld [vmem:[%s1 + $0x1c4] sm:$0xf]
      %v1260 = vld [vmem:[%s1 + $0x1c8] sm:$0xf]
      %v1261 = vld [vmem:[%s1 + $0x1cc] sm:$0xf]
      %v1262 = vld [vmem:[%s1 + $0x1d0] sm:$0xf]
      %v1263 = vld [vmem:[%s1 + $0x1d4] sm:$0xf]
      %v1264 = vld [vmem:[%s1 + $0x1d8] sm:$0xf]
      %v1265 = vld [vmem:[%s1 + $0x1dc] sm:$0xf]
      %v1266 = vld [vmem:[%s1 + $0x1e0] sm:$0xf]
      %v1267 = vld [vmem:[%s1 + $0x1e4] sm:$0xf]
      %v1268 = vld [vmem:[%s1 + $0x1e8] sm:$0xf]
      %v1269 = vld [vmem:[%s1 + $0x1ec] sm:$0xf]
      %v1270 = vld [vmem:[%s1 + $0x1f0] sm:$0xf]
      %v1271 = vld [vmem:[%s2] sm:$0x1]
      %v1273 = vlaneseq
      %v1274 = vshrl.u32 %v1273, 7
      %v1275 = vsub.s32 0, %v1274
      %v1276 = vrot.slane %v1271, %v1275
      %v1403 = vunpack.c.l.b16 %v1146
      %v1404 = vunpack.c.l.b16 %v1147
      %v1405 = vunpack.c.l.b16 %v1148
      %v1406 = vunpack.c.l.b16 %v1149
      %v1407 = vunpack.c.l.b16 %v1150
      %v1408 = vunpack.c.l.b16 %v1151
      %v1409 = vunpack.c.l.b16 %v1152
      %v1410 = vunpack.c.l.b16 %v1153
      %v1411 = vunpack.c.l.b16 %v1154
      %v1412 = vunpack.c.l.b16 %v1155
      %v1413 = vunpack.c.l.b16 %v1156
      %v1414 = vunpack.c.l.b16 %v1157
      %v1415 = vunpack.c.l.b16 %v1158
      %v1416 = vunpack.c.l.b16 %v1159
      %v1417 = vunpack.c.l.b16 %v1160
      %v1418 = vunpack.c.l.b16 %v1161
      %v1419 = vunpack.c.l.b16 %v1162
      %v1420 = vunpack.c.l.b16 %v1163
      %v1421 = vunpack.c.l.b16 %v1164
      %v1422 = vunpack.c.l.b16 %v1165
      %v1423 = vunpack.c.l.b16 %v1166
      %v1424 = vunpack.c.l.b16 %v1167
      %v1425 = vunpack.c.l.b16 %v1168
      %v1426 = vunpack.c.l.b16 %v1169
      %v1427 = vunpack.c.l.b16 %v1170
      %v1428 = vunpack.c.l.b16 %v1171
      %v1429 = vunpack.c.l.b16 %v1172
      %v1430 = vunpack.c.l.b16 %v1173
      %v1431 = vunpack.c.l.b16 %v1174
      %v1432 = vunpack.c.l.b16 %v1175
      %v1433 = vunpack.c.l.b16 %v1176
      %v1434 = vunpack.c.l.b16 %v1177
      %v1435 = vunpack.c.l.b16 %v1178
      %v1436 = vunpack.c.l.b16 %v1179
      %v1437 = vunpack.c.l.b16 %v1180
      %v1438 = vunpack.c.l.b16 %v1181
      %v1439 = vunpack.c.l.b16 %v1182
      %v1440 = vunpack.c.l.b16 %v1183
      %v1441 = vunpack.c.l.b16 %v1184
      %v1442 = vunpack.c.l.b16 %v1185
      %v1443 = vunpack.c.l.b16 %v1186
      %v1444 = vunpack.c.l.b16 %v1187
      %v1445 = vunpack.c.l.b16 %v1188
      %v1446 = vunpack.c.l.b16 %v1189
      %v1447 = vunpack.c.l.b16 %v1190
      %v1448 = vunpack.c.l.b16 %v1191
      %v1449 = vunpack.c.l.b16 %v1192
      %v1450 = vunpack.c.l.b16 %v1193
      %v1451 = vunpack.c.l.b16 %v1194
      %v1452 = vunpack.c.l.b16 %v1195
      %v1453 = vunpack.c.l.b16 %v1196
      %v1454 = vunpack.c.l.b16 %v1197
      %v1455 = vunpack.c.l.b16 %v1198
      %v1456 = vunpack.c.l.b16 %v1199
      %v1457 = vunpack.c.l.b16 %v1200
      %v1458 = vunpack.c.l.b16 %v1201
      %v1459 = vunpack.c.l.b16 %v1202
      %v1460 = vunpack.c.l.b16 %v1203
      %v1461 = vunpack.c.l.b16 %v1204
      %v1462 = vunpack.c.l.b16 %v1205
      %v1463 = vunpack.c.l.b16 %v1206
      %v1464 = vunpack.c.l.b16 %v1207
      %v1465 = vunpack.c.l.b16 %v1208
      %v1466 = vunpack.c.l.b16 %v1209
      %v1467 = vunpack.c.l.b16 %v1210
      %v1468 = vunpack.c.l.b16 %v1211
      %v1469 = vunpack.c.l.b16 %v1212
      %v1470 = vunpack.c.l.b16 %v1213
      %v1471 = vunpack.c.l.b16 %v1214
      %v1472 = vunpack.c.l.b16 %v1215
      %v1473 = vunpack.c.l.b16 %v1216
      %v1474 = vunpack.c.l.b16 %v1217
      %v1475 = vunpack.c.l.b16 %v1218
      %v1476 = vunpack.c.l.b16 %v1219
      %v1477 = vunpack.c.l.b16 %v1220
      %v1478 = vunpack.c.l.b16 %v1221
      %v1479 = vunpack.c.l.b16 %v1222
      %v1480 = vunpack.c.l.b16 %v1223
      %v1481 = vunpack.c.l.b16 %v1224
      %v1482 = vunpack.c.l.b16 %v1225
      %v1483 = vunpack.c.l.b16 %v1226
      %v1484 = vunpack.c.l.b16 %v1227
      %v1485 = vunpack.c.l.b16 %v1228
      %v1486 = vunpack.c.l.b16 %v1229
      %v1487 = vunpack.c.l.b16 %v1230
      %v1488 = vunpack.c.l.b16 %v1231
      %v1489 = vunpack.c.l.b16 %v1232
      %v1490 = vunpack.c.l.b16 %v1233
      %v1491 = vunpack.c.l.b16 %v1234
      %v1492 = vunpack.c.l.b16 %v1235
      %v1493 = vunpack.c.l.b16 %v1236
      %v1494 = vunpack.c.l.b16 %v1237
      %v1495 = vunpack.c.l.b16 %v1238
      %v1496 = vunpack.c.l.b16 %v1239
      %v1497 = vunpack.c.l.b16 %v1240
      %v1498 = vunpack.c.l.b16 %v1241
      %v1499 = vunpack.c.l.b16 %v1242
      %v1500 = vunpack.c.l.b16 %v1243
      %v1501 = vunpack.c.l.b16 %v1244
      %v1502 = vunpack.c.l.b16 %v1245
      %v1503 = vunpack.c.l.b16 %v1246
      %v1504 = vunpack.c.l.b16 %v1247
      %v1505 = vunpack.c.l.b16 %v1248
      %v1506 = vunpack.c.l.b16 %v1249
      %v1507 = vunpack.c.l.b16 %v1250
      %v1508 = vunpack.c.l.b16 %v1251
      %v1509 = vunpack.c.l.b16 %v1252
      %v1510 = vunpack.c.l.b16 %v1253
      %v1511 = vunpack.c.l.b16 %v1254
      %v1512 = vunpack.c.l.b16 %v1255
      %v1513 = vunpack.c.l.b16 %v1256
      %v1514 = vunpack.c.l.b16 %v1257
      %v1515 = vunpack.c.l.b16 %v1258
      %v1516 = vunpack.c.l.b16 %v1259
      %v1517 = vunpack.c.l.b16 %v1260
      %v1518 = vunpack.c.l.b16 %v1261
      %v1519 = vunpack.c.l.b16 %v1262
      %v1520 = vunpack.c.l.b16 %v1263
      %v1521 = vunpack.c.l.b16 %v1264
      %v1522 = vunpack.c.l.b16 %v1265
      %v1523 = vunpack.c.l.b16 %v1266
      %v1524 = vunpack.c.l.b16 %v1267
      %v1525 = vunpack.c.l.b16 %v1268
      %v1526 = vunpack.c.l.b16 %v1269
      %v1527 = vunpack.c.l.b16 %v1270
      %v1528 = vpack.c.b16 %v1404, %v1403
      %v1529 = vpack.c.b16 %v1406, %v1405
      %v1530 = vpack.c.b16 %v1408, %v1407
      %v1531 = vpack.c.b16 %v1410, %v1409
      %v1532 = vpack.c.b16 %v1412, %v1411
      %v1533 = vpack.c.b16 %v1414, %v1413
      %v1534 = vpack.c.b16 %v1416, %v1415
      %v1535 = vpack.c.b16 %v1418, %v1417
      %v1536 = vpack.c.b16 %v1420, %v1419
      %v1537 = vpack.c.b16 %v1422, %v1421
      %v1538 = vpack.c.b16 %v1424, %v1423
      %v1539 = vpack.c.b16 %v1426, %v1425
      %v1540 = vpack.c.b16 %v1428, %v1427
      %v1541 = vpack.c.b16 %v1430, %v1429
      %v1542 = vpack.c.b16 %v1432, %v1431
      %v1543 = vpack.c.b16 %v1434, %v1433
      %v1544 = vpack.c.b16 %v1436, %v1435
      %v1545 = vpack.c.b16 %v1438, %v1437
      %v1546 = vpack.c.b16 %v1440, %v1439
      %v1547 = vpack.c.b16 %v1442, %v1441
      %v1548 = vpack.c.b16 %v1444, %v1443
      %v1549 = vpack.c.b16 %v1446, %v1445
      %v1550 = vpack.c.b16 %v1448, %v1447
      %v1551 = vpack.c.b16 %v1450, %v1449
      %v1552 = vpack.c.b16 %v1452, %v1451
      %v1553 = vpack.c.b16 %v1454, %v1453
      %v1554 = vpack.c.b16 %v1456, %v1455
      %v1555 = vpack.c.b16 %v1458, %v1457
      %v1556 = vpack.c.b16 %v1460, %v1459
      %v1557 = vpack.c.b16 %v1462, %v1461
      %v1558 = vpack.c.b16 %v1464, %v1463
      %v1559 = vpack.c.b16 %v1466, %v1465
      %v1560 = vpack.c.b16 %v1468, %v1467
      %v1561 = vpack.c.b16 %v1470, %v1469
      %v1562 = vpack.c.b16 %v1472, %v1471
      %v1563 = vpack.c.b16 %v1474, %v1473
      %v1564 = vpack.c.b16 %v1476, %v1475
      %v1565 = vpack.c.b16 %v1478, %v1477
      %v1566 = vpack.c.b16 %v1480, %v1479
      %v1567 = vpack.c.b16 %v1482, %v1481
      %v1568 = vpack.c.b16 %v1484, %v1483
      %v1569 = vpack.c.b16 %v1486, %v1485
      %v1570 = vpack.c.b16 %v1488, %v1487
      %v1571 = vpack.c.b16 %v1490, %v1489
      %v1572 = vpack.c.b16 %v1492, %v1491
      %v1573 = vpack.c.b16 %v1494, %v1493
      %v1574 = vpack.c.b16 %v1496, %v1495
      %v1575 = vpack.c.b16 %v1498, %v1497
      %v1576 = vpack.c.b16 %v1500, %v1499
      %v1577 = vpack.c.b16 %v1502, %v1501
      %v1578 = vpack.c.b16 %v1504, %v1503
      %v1579 = vpack.c.b16 %v1506, %v1505
      %v1580 = vpack.c.b16 %v1508, %v1507
      %v1581 = vpack.c.b16 %v1510, %v1509
      %v1582 = vpack.c.b16 %v1512, %v1511
      %v1583 = vpack.c.b16 %v1514, %v1513
      %v1584 = vpack.c.b16 %v1516, %v1515
      %v1585 = vpack.c.b16 %v1518, %v1517
      %v1586 = vpack.c.b16 %v1520, %v1519
      %v1587 = vpack.c.b16 %v1522, %v1521
      %v1588 = vpack.c.b16 %v1524, %v1523
      %v1589 = vpack.c.b16 %v1526, %v1525
      %v1590 = vpack.c.b16 %v1527, %v1527
      %v1654 = vsel %vm779, %v1121, 0
      %v1657 = vsel %vm779, %v1129, 0
      %v1660 = vsel %vm779, %v1137, 0
      %v1663 = vsel %vm779, %v1145, 0
      %vm1665 = vcmask 1043456
      %v1667 = vsel %vm1665, %v1590, 0
      %1669 = vmatprep.subr.bf16.mxu0 0
      %1670 = vmatpush1.bf16.msra.mxu0 %v1535
      %1671 = vmatprep.subr.bf16.mxu0 0
      %1672 = vmatpush1.bf16.msra.mxu0 %v1534
      %1673 = vmatprep.subr.bf16.mxu0 0
      %1674 = vmatpush1.bf16.msra.mxu0 %v1533
      %1675 = vmatprep.subr.bf16.mxu0 0
      %1676 = vmatpush1.bf16.msra.mxu0 %v1532
      %1677 = vmatprep.subr.bf16.mxu0 0
      %1678 = vmatpush1.bf16.msra.mxu0 %v1531
      %1679 = vmatprep.subr.bf16.mxu0 0
      %1680 = vmatpush1.bf16.msra.mxu0 %v1530
      %1681 = vmatprep.subr.bf16.mxu0 0
      %1682 = vmatpush1.bf16.msra.mxu0 %v1529
      %1683 = vmatprep.subr.bf16.mxu0 0
      %1684 = vmatpush1.bf16.msra.mxu0 %v1528
      %1685 = vmatprep.subr.bf16.mxu0 0
      %1686 = vmatpush2.bf16.msra.mxu0 %v1543
      %1687 = vmatprep.subr.bf16.mxu0 0
      %1688 = vmatpush2.bf16.msra.mxu0 %v1542
      %1689 = vmatprep.subr.bf16.mxu0 0
      %1690 = vmatpush2.bf16.msra.mxu0 %v1541
      %1691 = vmatprep.subr.bf16.mxu0 0
      %1692 = vmatpush2.bf16.msra.mxu0 %v1540
      %1693 = vmatprep.subr.bf16.mxu0 0
      %1694 = vmatpush2.bf16.msra.mxu0 %v1539
      %1695 = vmatprep.subr.bf16.mxu0 0
      %1696 = vmatpush2.bf16.msra.mxu0 %v1538
      %1697 = vmatprep.subr.bf16.mxu0 0
      %1698 = vmatpush2.bf16.msra.mxu0 %v1537
      %1699 = vmatprep.subr.bf16.mxu0 0
      %1700 = vmatpush2.bf16.msra.mxu0 %v1536
      %1701 = vmatprep.mubr.bf16.mxu0 %v1115
      %1702 = vmatmul.mubr.bf16.gmra.mxu0 %v1114
      %v1703 = vpop.f32.mrf.mxu0
      %v1704 = vadd.f32 %v1276, %v1703
      %v1705 = vpop.f32.mrf.mxu0
      %v1706 = vpop.f32.mrf.mxu0
      %v1707 = vadd.f32 %v1276, %v1706
      %v1708 = vpop.f32.mrf.mxu0
      %1709 = vmatprep.mubr.bf16.mxu0 %v1123
      %1710 = vmatmul.mubr.bf16.gmra.mxu0 %v1122
      %v1711 = vpop.f32.mrf.mxu0
      %v1712 = vadd.f32 %v1276, %v1711
      %v1713 = vpop.f32.mrf.mxu0
      %v1714 = vpop.f32.mrf.mxu0
      %v1715 = vadd.f32 %v1276, %v1714
      %v1716 = vpop.f32.mrf.mxu0
      %1717 = vmatprep.mubr.bf16.mxu0 %v1131
      %1718 = vmatmul.mubr.bf16.gmra.mxu0 %v1130
      %v1719 = vpop.f32.mrf.mxu0
      %v1720 = vadd.f32 %v1276, %v1719
      %v1721 = vpop.f32.mrf.mxu0
      %v1722 = vpop.f32.mrf.mxu0
      %v1723 = vadd.f32 %v1276, %v1722
      %v1724 = vpop.f32.mrf.mxu0
      %1725 = vmatprep.mubr.bf16.mxu0 %v1139
      %1726 = vmatmul.mubr.bf16.gmra.mxu0 %v1138
      %v1727 = vpop.f32.mrf.mxu0
      %v1728 = vadd.f32 %v1276, %v1727
      %v1729 = vpop.f32.mrf.mxu0
      %v1730 = vpop.f32.mrf.mxu0
      %v1731 = vadd.f32 %v1276, %v1730
      %v1732 = vpop.f32.mrf.mxu0
      %1733 = vdwg.mxu0
      %1734 = vmatprep.subr.bf16.mxu0 0
      %1735 = vmatpush1.bf16.msra.mxu0 %v1551
      %1736 = vmatprep.subr.bf16.mxu0 0
      %1737 = vmatpush1.bf16.msra.mxu0 %v1550
      %1738 = vmatprep.subr.bf16.mxu0 0
      %1739 = vmatpush1.bf16.msra.mxu0 %v1549
      %1740 = vmatprep.subr.bf16.mxu0 0
      %1741 = vmatpush1.bf16.msra.mxu0 %v1548
      %1742 = vmatprep.subr.bf16.mxu0 0
      %1743 = vmatpush1.bf16.msra.mxu0 %v1547
      %1744 = vmatprep.subr.bf16.mxu0 0
      %1745 = vmatpush1.bf16.msra.mxu0 %v1546
      %1746 = vmatprep.subr.bf16.mxu0 0
      %1747 = vmatpush1.bf16.msra.mxu0 %v1545
      %1748 = vmatprep.subr.bf16.mxu0 0
      %1749 = vmatpush1.bf16.msra.mxu0 %v1544
      %1750 = vmatprep.subr.bf16.mxu0 0
      %1751 = vmatpush2.bf16.msra.mxu0 %v1559
      %1752 = vmatprep.subr.bf16.mxu0 0
      %1753 = vmatpush2.bf16.msra.mxu0 %v1558
      %1754 = vmatprep.subr.bf16.mxu0 0
      %1755 = vmatpush2.bf16.msra.mxu0 %v1557
      %1756 = vmatprep.subr.bf16.mxu0 0
      %1757 = vmatpush2.bf16.msra.mxu0 %v1556
      %1758 = vmatprep.subr.bf16.mxu0 0
      %1759 = vmatpush2.bf16.msra.mxu0 %v1555
      %1760 = vmatprep.subr.bf16.mxu0 0
      %1761 = vmatpush2.bf16.msra.mxu0 %v1554
      %1762 = vmatprep.subr.bf16.mxu0 0
      %1763 = vmatpush2.bf16.msra.mxu0 %v1553
      %1764 = vmatprep.subr.bf16.mxu0 0
      %1765 = vmatpush2.bf16.msra.mxu0 %v1552
      %1766 = vmatprep.mubr.bf16.mxu0 %v1117
      %1767 = vmatmul.mubr.bf16.gmra.mxu0 %v1116
      %v1768 = vpop.f32.mrf.mxu0
      %v1769 = vadd.f32 %v1704, %v1768
      %v1770 = vpop.f32.mrf.mxu0
      %v1771 = vpop.f32.mrf.mxu0
      %v1772 = vadd.f32 %v1707, %v1771
      %v1773 = vpop.f32.mrf.mxu0
      %1774 = vmatprep.mubr.bf16.mxu0 %v1125
      %1775 = vmatmul.mubr.bf16.gmra.mxu0 %v1124
      %v1776 = vpop.f32.mrf.mxu0
      %v1777 = vadd.f32 %v1712, %v1776
      %v1778 = vpop.f32.mrf.mxu0
      %v1779 = vpop.f32.mrf.mxu0
      %v1780 = vadd.f32 %v1715, %v1779
      %v1781 = vpop.f32.mrf.mxu0
      %1782 = vmatprep.mubr.bf16.mxu0 %v1133
      %1783 = vmatmul.mubr.bf16.gmra.mxu0 %v1132
      %v1784 = vpop.f32.mrf.mxu0
      %v1785 = vadd.f32 %v1720, %v1784
      %v1786 = vpop.f32.mrf.mxu0
      %v1787 = vpop.f32.mrf.mxu0
      %v1788 = vadd.f32 %v1723, %v1787
      %v1789 = vpop.f32.mrf.mxu0
      %1790 = vmatprep.mubr.bf16.mxu0 %v1141
      %1791 = vmatmul.mubr.bf16.gmra.mxu0 %v1140
      %v1792 = vpop.f32.mrf.mxu0
      %v1793 = vadd.f32 %v1728, %v1792
      %v1794 = vpop.f32.mrf.mxu0
      %v1795 = vpop.f32.mrf.mxu0
      %v1796 = vadd.f32 %v1731, %v1795
      %v1797 = vpop.f32.mrf.mxu0
      %1798 = vdwg.mxu0
      %1799 = vmatprep.subr.bf16.mxu0 0
      %1800 = vmatpush1.bf16.msra.mxu0 %v1567
      %1801 = vmatprep.subr.bf16.mxu0 0
      %1802 = vmatpush1.bf16.msra.mxu0 %v1566
      %1803 = vmatprep.subr.bf16.mxu0 0
      %1804 = vmatpush1.bf16.msra.mxu0 %v1565
      %1805 = vmatprep.subr.bf16.mxu0 0
      %1806 = vmatpush1.bf16.msra.mxu0 %v1564
      %1807 = vmatprep.subr.bf16.mxu0 0
      %1808 = vmatpush1.bf16.msra.mxu0 %v1563
      %1809 = vmatprep.subr.bf16.mxu0 0
      %1810 = vmatpush1.bf16.msra.mxu0 %v1562
      %1811 = vmatprep.subr.bf16.mxu0 0
      %1812 = vmatpush1.bf16.msra.mxu0 %v1561
      %1813 = vmatprep.subr.bf16.mxu0 0
      %1814 = vmatpush1.bf16.msra.mxu0 %v1560
      %1815 = vmatprep.subr.bf16.mxu0 0
      %1816 = vmatpush2.bf16.msra.mxu0 %v1575
      %1817 = vmatprep.subr.bf16.mxu0 0
      %1818 = vmatpush2.bf16.msra.mxu0 %v1574
      %1819 = vmatprep.subr.bf16.mxu0 0
      %1820 = vmatpush2.bf16.msra.mxu0 %v1573
      %1821 = vmatprep.subr.bf16.mxu0 0
      %1822 = vmatpush2.bf16.msra.mxu0 %v1572
      %1823 = vmatprep.subr.bf16.mxu0 0
      %1824 = vmatpush2.bf16.msra.mxu0 %v1571
      %1825 = vmatprep.subr.bf16.mxu0 0
      %1826 = vmatpush2.bf16.msra.mxu0 %v1570
      %1827 = vmatprep.subr.bf16.mxu0 0
      %1828 = vmatpush2.bf16.msra.mxu0 %v1569
      %1829 = vmatprep.subr.bf16.mxu0 0
      %1830 = vmatpush2.bf16.msra.mxu0 %v1568
      %1831 = vmatprep.mubr.bf16.mxu0 %v1119
      %1832 = vmatmul.mubr.bf16.gmra.mxu0 %v1118
      %v1833 = vpop.f32.mrf.mxu0
      %v1834 = vadd.f32 %v1769, %v1833
      %v1835 = vpop.f32.mrf.mxu0
      %v1836 = vpop.f32.mrf.mxu0
      %v1837 = vadd.f32 %v1772, %v1836
      %v1838 = vpop.f32.mrf.mxu0
      %1839 = vmatprep.mubr.bf16.mxu0 %v1127
      %1840 = vmatmul.mubr.bf16.gmra.mxu0 %v1126
      %v1841 = vpop.f32.mrf.mxu0
      %v1842 = vadd.f32 %v1777, %v1841
      %v1843 = vpop.f32.mrf.mxu0
      %v1844 = vpop.f32.mrf.mxu0
      %v1845 = vadd.f32 %v1780, %v1844
      %v1846 = vpop.f32.mrf.mxu0
      %1847 = vmatprep.mubr.bf16.mxu0 %v1135
      %1848 = vmatmul.mubr.bf16.gmra.mxu0 %v1134
      %v1849 = vpop.f32.mrf.mxu0
      %v1850 = vadd.f32 %v1785, %v1849
      %v1851 = vpop.f32.mrf.mxu0
      %v1852 = vpop.f32.mrf.mxu0
      %v1853 = vadd.f32 %v1788, %v1852
      %v1854 = vpop.f32.mrf.mxu0
      %1855 = vmatprep.mubr.bf16.mxu0 %v1143
      %1856 = vmatmul.mubr.bf16.gmra.mxu0 %v1142
      %v1857 = vpop.f32.mrf.mxu0
      %v1858 = vadd.f32 %v1793, %v1857
      %v1859 = vpop.f32.mrf.mxu0
      %v1860 = vpop.f32.mrf.mxu0
      %v1861 = vadd.f32 %v1796, %v1860
      %v1862 = vpop.f32.mrf.mxu0
      %1863 = vdwg.mxu0
      %1864 = vmatprep.subr.bf16.mxu0 0
      %1865 = vmatpush1.bf16.msra.mxu0 %v1583
      %1866 = vmatprep.subr.bf16.mxu0 0
      %1867 = vmatpush1.bf16.msra.mxu0 %v1582
      %1868 = vmatprep.subr.bf16.mxu0 0
      %1869 = vmatpush1.bf16.msra.mxu0 %v1581
      %1870 = vmatprep.subr.bf16.mxu0 0
      %1871 = vmatpush1.bf16.msra.mxu0 %v1580
      %1872 = vmatprep.subr.bf16.mxu0 0
      %1873 = vmatpush1.bf16.msra.mxu0 %v1579
      %1874 = vmatprep.subr.bf16.mxu0 0
      %1875 = vmatpush1.bf16.msra.mxu0 %v1578
      %1876 = vmatprep.subr.bf16.mxu0 0
      %1877 = vmatpush1.bf16.msra.mxu0 %v1577
      %1878 = vmatprep.subr.bf16.mxu0 0
      %1879 = vmatpush1.bf16.msra.mxu0 %v1576
      %1880 = vmatprep.subr.bf16.mxu0 0
      %1881 = vmatpush2.bf16.msra.mxu0 0
      %1882 = vmatprep.subr.bf16.mxu0 0
      %1883 = vmatpush2.bf16.msra.mxu0 %v1667
      %1884 = vmatprep.subr.bf16.mxu0 0
      %1885 = vmatpush2.bf16.msra.mxu0 %v1589
      %1886 = vmatprep.subr.bf16.mxu0 0
      %1887 = vmatpush2.bf16.msra.mxu0 %v1588
      %1888 = vmatprep.subr.bf16.mxu0 0
      %1889 = vmatpush2.bf16.msra.mxu0 %v1587
      %1890 = vmatprep.subr.bf16.mxu0 0
      %1891 = vmatpush2.bf16.msra.mxu0 %v1586
      %1892 = vmatprep.subr.bf16.mxu0 0
      %1893 = vmatpush2.bf16.msra.mxu0 %v1585
      %1894 = vmatprep.subr.bf16.mxu0 0
      %1895 = vmatpush2.bf16.msra.mxu0 %v1584
      %1896 = vmatprep.mubr.bf16.mxu0 %v1654
      %1897 = vmatmul.mubr.bf16.gmra.mxu0 %v1120
      %v1898 = vpop.f32.mrf.mxu0
      %v1899 = vadd.f32 %v1834, %v1898
      %v1900 = vpop.f32.mrf.mxu0
      %v1901 = vpop.f32.mrf.mxu0
      %v1902 = vadd.f32 %v1837, %v1901
      %v1903 = vpop.f32.mrf.mxu0
      %1904 = vmatprep.mubr.bf16.mxu0 %v1657
      %1905 = vmatmul.mubr.bf16.gmra.mxu0 %v1128
      %v1906 = vpop.f32.mrf.mxu0
      %v1907 = vadd.f32 %v1842, %v1906
      %v1908 = vpop.f32.mrf.mxu0
      %v1909 = vpop.f32.mrf.mxu0
      %v1910 = vadd.f32 %v1845, %v1909
      %v1911 = vpop.f32.mrf.mxu0
      %1912 = vmatprep.mubr.bf16.mxu0 %v1660
      %1913 = vmatmul.mubr.bf16.gmra.mxu0 %v1136
      %v1914 = vpop.f32.mrf.mxu0
      %v1915 = vadd.f32 %v1850, %v1914
      %v1916 = vpop.f32.mrf.mxu0
      %v1917 = vpop.f32.mrf.mxu0
      %v1918 = vadd.f32 %v1853, %v1917
      %v1919 = vpop.f32.mrf.mxu0
      %1920 = vmatprep.mubr.bf16.mxu0 %v1663
      %1921 = vmatmul.mubr.bf16.gmra.mxu0 %v1144
      %v1922 = vpop.f32.mrf.mxu0
      %v1923 = vadd.f32 %v1858, %v1922
      %v1924 = vpop.f32.mrf.mxu0
      %v1925 = vpop.f32.mrf.mxu0
      %v1926 = vadd.f32 %v1861, %v1925
      %v1927 = vpop.f32.mrf.mxu0
      %1928 = vdwg.mxu0
      %1929 = vst [vmem:[%s232] sm:$0xff] %v1899
      %1930 = vst [vmem:[%s232 + $0x8] sm:$0xff] %v1902
      %1931 = vst [vmem:[%s232 + $0x10] sm:$0xff] %v1907
      %1932 = vst [vmem:[%s232 + $0x18] sm:$0xff] %v1910
      %1933 = vst [vmem:[%s232 + $0x20] sm:$0xff] %v1915
      %1934 = vst [vmem:[%s232 + $0x28] sm:$0xff] %v1918
      %1935 = vst [vmem:[%s232 + $0x30] sm:$0xff] %v1923
      %1936 = vst [vmem:[%s232 + $0x38] sm:$0xff] %v1926
      %v1937 = vadd.f32 %v1899, %v1902
      %v1938 = vadd.f32 %v1937, %v1907
      %v1939 = vadd.f32 %v1938, %v1910
      %v1940 = vadd.f32 %v1939, %v1915
      %v1941 = vadd.f32 %v1940, %v1918
      %v1942 = vadd.f32 %v1941, %v1923
      %v1943 = vadd.f32 %v1942, %v1926
      %v1944 = vrot.slane %v1943, 4
      %v1945 = vadd.f32 %v1943, %v1944
      %v1946 = vrot.slane %v1945, 2
      %v1947 = vadd.f32 %v1945, %v1946
      %v1948 = vrot.slane %v1947, 1
      %v1949 = vadd.f32 %v1947, %v1948
      %v1950 = vmul.f32 %v1899, %v1899
      %v1951 = vmul.f32 %v1902, %v1902
      %v1952 = vmul.f32 %v1907, %v1907
      %v1953 = vmul.f32 %v1910, %v1910
      %v1954 = vmul.f32 %v1915, %v1915
      %v1955 = vmul.f32 %v1918, %v1918
      %v1956 = vmul.f32 %v1923, %v1923
      %v1957 = vmul.f32 %v1926, %v1926
      %v1958 = vadd.f32 %v1950, %v1951
      %v1959 = vadd.f32 %v1958, %v1952
      %v1960 = vadd.f32 %v1959, %v1953
      %v1961 = vadd.f32 %v1960, %v1954
      %v1962 = vadd.f32 %v1961, %v1955
      %v1963 = vadd.f32 %v1962, %v1956
      %v1964 = vadd.f32 %v1963, %v1957
      %v1965 = vrot.slane %v1964, 4
      %v1966 = vadd.f32 %v1964, %v1965
      %v1967 = vrot.slane %v1966, 2
      %v1968 = vadd.f32 %v1966, %v1967
      %v1969 = vrot.slane %v1968, 1
      %v1970 = vadd.f32 %v1968, %v1969
      %vm1971 = vcmask 1040384
      %v1972 = vsel %vm1971, %v1949, %v1970
      %1973 = vst [vmem:[%s240] sm:$0x3] %v1972
      %p1974 = scmp.lt.s32.totalorder %s20, 1
      %s1975 = scalar_select %p1974, %s20, 1
      %p1976 = scmp.lt.s32.totalorder %s21, 7
      %s1977 = scalar_select %p1976, %s21, 7
      %s1978 = smul.addr %s1977, 8
      %s1979 = smul.addr %s1975, 64
      %s1980 = sadd.s32 %s1978, %s1979
      %s1981 = smul.addr %s1980, 8
      %s1982 = scalar_lea.vmem %s3, %s1981
      %p1983 = scmp.lt.s32.totalorder %s20, 1
      %s1984 = scalar_select %p1983, %s20, 1
      %p1985 = scmp.lt.s32.totalorder %s21, 7
      %s1986 = scalar_select %p1985, %s21, 7
      %s1987 = smul.addr %s1984, 8
      %s1988 = sadd.s32 %s1986, %s1987
      %s1989 = smul.addr %s1988, 2
      %s1990 = scalar_lea.vmem %s4, %s1989
      // Predicated region
      $region33: #{double_conv.6} parent=31 // pred_check
        %p1991 = pneg %p116
      $region34: #{double_conv.6} parent=31 // pred_check_branch
        %1993 = sbr.rel (%p1991) target = $region36
      $region35: #{double_conv.6} parent=31 // pred_region
        _
      $region36: #{double_conv.6} parent=31 // pred_fallthru
        _
      // Predicated region
      $region37: #{double_conv.6} parent=31 // pred_check
        %p1994 = pneg %p144
      $region38: #{double_conv.6} parent=31 // pred_check_branch
        %1996 = sbr.rel (%p1994) target = $region40
      $region39: #{double_conv.6} parent=31 // pred_region
        _
      $region40: #{double_conv.6} parent=31 // pred_fallthru
        _
    $region32: #{double_conv.6} parent=5 // pred_fallthru
      _
    %p1997 = scmp.le.s32.totalorder 2, %s11
    // Predicated region
    $region41: #{double_conv.6} parent=5 // pred_check
      %p1998 = pneg %p1997
    $region42: #{double_conv.6} parent=5 // pred_check_branch
      %2000 = sbr.rel (%p1998) target = $region44
    $region43: #{double_conv.6} parent=5 // pred_region
      %s2001 = ssub.s32 %s11, 2
      // Predicated region
      $region45: #{double_conv.6} parent=43 // pred_check
        %p2002 = pneg %p122
      $region46: #{double_conv.6} parent=43 // pred_check_branch
        %2004 = sbr.rel (%p2002) target = $region48
      $region47: #{double_conv.6} parent=43 // pred_region
        %p2005 = scmp.lt.s32.totalorder %s22, 1
        %s2006 = scalar_select %p2005, %s22, 1
        %p2007 = scmp.lt.s32.totalorder %s23, 7
        %s2008 = scalar_select %p2007, %s23, 7
        %s2009 = smul.addr %s2008, 8
        %s2010 = smul.addr %s2006, 64
        %s2011 = sadd.s32 %s2009, %s2010
        %s2012 = smul.addr %s2011, 8
        %s2013 = scalar_lea.vmem %s3, %s2012
      $region48: #{double_conv.6} parent=43 // pred_fallthru
        _
      // Predicated region
      $region49: #{double_conv.6} parent=43 // pred_check
        %p2014 = pneg %p150
      $region50: #{double_conv.6} parent=43 // pred_check_branch
        %2016 = sbr.rel (%p2014) target = $region52
      $region51: #{double_conv.6} parent=43 // pred_region
        %p2017 = scmp.lt.s32.totalorder %s22, 1
        %s2018 = scalar_select %p2017, %s22, 1
        %p2019 = scmp.lt.s32.totalorder %s23, 7
        %s2020 = scalar_select %p2019, %s23, 7
        %s2021 = smul.addr %s2018, 8
        %s2022 = sadd.s32 %s2020, %s2021
        %s2023 = smul.addr %s2022, 2
        %s2024 = scalar_lea.vmem %s4, %s2023
      $region52: #{double_conv.6} parent=43 // pred_fallthru
        _
    $region44: #{double_conv.6} parent=5 // pred_fallthru
      _
  $region6: #{double_conv.6} parent=0 // loop_footer
    %s15 = sadd.s32 1, %s11
  $region7: #{double_conv.6} parent=0 // loop_footer_branch
    %10 = sbr.rel target = $region3
  $region8: #{double_conv.6} parent=0 // loop_exit
    _

</llo_original>
